<compile_context>
chip_gen: v7x
topology: tpu7x:2x2x1
jax: 0.10.0
libtpu: 0.0.40
codegen_flags: <defaults>
</compile_context>

<pallas_src>
import functools
import math

import jax
import jax.numpy as jnp
from jax import lax
from jax.experimental import pallas as pl
from jax.experimental.pallas import tpu as pltpu


def _regression_fused_kernel(x_ref, w0_ref, wh_ref, w4_ref, bh_ref, b4_ref,
                             o_ref,
                             pad_in, pad_a, pad_b, col_ref,
                             *, H, W):
    """One grid step = one batch image; all 5 conv layers fused in VMEM."""
    col_dtype = col_ref.dtype

    def zero_halo(ref):
        # Zero only the 1-pixel frame: interiors are fully overwritten
        # before every read (input staging / per-layer outputs), so the
        # halo stays zero for every conv. Re-done each grid step because
        # scratch is uninitialized per-core under "parallel" semantics.
        Hp, Wp, C = ref.shape
        z_row = jnp.zeros((1, Wp, C), ref.dtype)
        z_col = jnp.zeros((Hp, 1, C), ref.dtype)
        ref[0:1, :, :] = z_row
        ref[Hp - 1:Hp, :, :] = z_row
        ref[:, 0:1, :] = z_col
        ref[:, Wp - 1:Wp, :] = z_col

    zero_halo(pad_in)
    zero_halo(pad_a)
    zero_halo(pad_b)

    # Stage this image into the padded scratch interior (in-VMEM "pad").
    pad_in[1:H + 1, 1:W + 1, :] = x_ref[0]

    def conv3x3(src_ref, w, b, relu):
        # src_ref : (H+2, W+2, cin) f32 zero-framed activations
        # w       : (9*cin, cout)   im2col-layout weights (compute dtype)
        # b       : (1, cout)       f32 bias
        cin = src_ref.shape[-1]
        # On-the-fly im2col: 9 shifted windows -> one (H*W, 9*cin) VMEM
        # matrix, so the whole conv is ONE MXU dot with K = 9*cin instead
        # of 9 small K=cin dots plus 8 f32 accumulator adds.
        for dy in range(3):
            for dx in range(3):
                tap = dy * 3 + dx
                patch = src_ref[dy:dy + H, dx:dx + W, :]           # (H, W, cin)
                col_ref[:, tap * cin:(tap + 1) * cin] = (
                    patch.reshape(H * W, cin).astype(col_dtype))
        if 9 * cin == col_ref.shape[1]:
            lhs = col_ref[...]
        else:
            lhs = col_ref[:, :9 * cin]
        acc = jnp.dot(lhs, w, preferred_element_type=jnp.float32)  # single dot
        acc = acc + b                                              # f32 epilogue
        if relu:
            acc = jnp.maximum(acc, 0.0)
        return acc                                                 # (H*W, cout) f32

    def store_hidden(dst_ref, acc):
        dst_ref[1:H + 1, 1:W + 1, :] = (
            acc.reshape(H, W, acc.shape[-1]).astype(dst_ref.dtype))

    # Four hidden conv+ReLU layers, ping-ponging between two VMEM buffers.
    store_hidden(pad_a, conv3x3(pad_in, w0_ref[...], bh_ref[0], True))
    store_hidden(pad_b, conv3x3(pad_a, wh_ref[0], bh_ref[1], True))
    store_hidden(pad_a, conv3x3(pad_b, wh_ref[1], bh_ref[2], True))
    store_hidden(pad_b, conv3x3(pad_a, wh_ref[2], bh_ref[3], True))
    # Post layer (no ReLU), channel-padded to a lane-dense width; one
    # unmasked, lane-dense HBM store per image.
    out = conv3x3(pad_b, w4_ref[...], b4_ref[...], False)          # (H*W, c_post_pad)
    o_ref[...] = out.reshape(o_ref.shape).astype(o_ref.dtype)


def regression_forward(x_nchw, params, anchor_num, *,
                       compute_dtype=jnp.bfloat16):
    """Forward pass of the Regression head. x_nchw is PyTorch-style NCHW.

    params: list of 5 (w, b) pairs, w in HWIO layout (3, 3, cin, cout).
    (A real PyTorch OIHW checkpoint needs w.transpose(2, 3, 1, 0).)
    """
    x = jnp.transpose(x_nchw, (0, 2, 3, 1)).astype(jnp.float32)   # -> NHWC
    B, H, W, c_in = x.shape
    c_hid = params[0][0].shape[-1]
    c_post = params[4][0].shape[-1]                               # anchor*4
    c_post_pad = ((c_post + 127) // 128) * 128                    # lane-dense out

    def prep_w(w):
        # HWIO (3,3,cin,cout) -> im2col layout (9*cin, cout); K index is
        # (ky*3+kx)*cin + ci, matching the in-kernel col-buffer layout.
        kh, kw, ci, co = w.shape
        return w.reshape(kh * kw * ci, co).astype(compute_dtype)

    w4_raw, b4_raw = params[4]
    if c_post_pad != c_post:
        # Invariant: padded weight columns AND padded bias entries are both
        # zero, so the padded output channels are exactly zero (sliced off).
        w4_raw = jnp.pad(w4_raw,
                         ((0, 0), (0, 0), (0, 0), (0, c_post_pad - c_post)))
        b4_raw = jnp.pad(b4_raw, ((0, c_post_pad - c_post),))

    w0 = prep_w(params[0][0])                                     # (9*c_in, c_hid)
    wh = jnp.stack([prep_w(params[i][0]) for i in range(1, 4)])   # (3, 9*c_hid, c_hid)
    w4 = prep_w(w4_raw)                                           # (9*c_hid, c_post_pad)
    bh = jnp.stack([params[i][1].reshape(1, -1)
                    for i in range(4)]).astype(jnp.float32)       # (4, 1, c_hid)
    b4 = b4_raw.reshape(1, -1).astype(jnp.float32)                # (1, c_post_pad)

    c_col = 9 * max(c_in, c_hid)
    kernel = functools.partial(_regression_fused_kernel, H=H, W=W)

    out = pl.pallas_call(
        kernel,
        out_shape=jax.ShapeDtypeStruct((B, H * W, c_post_pad), jnp.float32),
        grid_spec=pltpu.PrefetchScalarGridSpec(
            num_scalar_prefetch=0,
            grid=(B,),                       # batch axis; megacore-shardable
            in_specs=[
                pl.BlockSpec((1, H, W, c_in), lambda b: (b, 0, 0, 0)),
                pl.BlockSpec(w0.shape, lambda b: (0, 0)),
                pl.BlockSpec(wh.shape, lambda b: (0, 0, 0)),
                pl.BlockSpec(w4.shape, lambda b: (0, 0)),
                pl.BlockSpec(bh.shape, lambda b: (0, 0, 0)),
                pl.BlockSpec(b4.shape, lambda b: (0, 0)),
            ],
            out_specs=pl.BlockSpec((1, H * W, c_post_pad),
                                   lambda b: (b, 0, 0)),
            scratch_shapes=[
                pltpu.VMEM((H + 2, W + 2, c_in), jnp.float32),    # pad_in
                pltpu.VMEM((H + 2, W + 2, c_hid), jnp.float32),   # pad_a
                pltpu.VMEM((H + 2, W + 2, c_hid), jnp.float32),   # pad_b
                pltpu.VMEM((H * W, c_col), compute_dtype),        # im2col matrix
            ],
        ),
        compiler_params=pltpu.CompilerParams(
            dimension_semantics=("parallel",)),
    )(x, w0, wh, w4, bh, b4)

    # Strip channel padding; NHWC channels hold (anchor, 4) contiguously,
    # matching torch's permute(0,2,3,1).view(B,H,W,anchor,4).view(B,-1,4).
    out = out[:, :, :c_post]
    return out.reshape(B, H * W * anchor_num, 4)


def regression_reference(x_nchw, params, anchor_num):
    """Pure-JAX reference (NHWC convs, exact f32) for parity checking."""
    out = jnp.transpose(x_nchw, (0, 2, 3, 1)).astype(jnp.float32)
    for i, (w, b) in enumerate(params):
        out = lax.conv_general_dilated(
            out, w.astype(jnp.float32), window_strides=(1, 1),
            padding=((1, 1), (1, 1)),
            dimension_numbers=('NHWC', 'HWIO', 'NHWC'),
            precision=lax.Precision.HIGHEST)
        out = out + b.reshape(1, 1, 1, -1)
        if i < 4:
            out = jnp.maximum(out, 0.0)
    B, H, W, _ = out.shape
    return out.reshape(B, H * W * anchor_num, 4)


def init_regression_params(key, in_channel, out_channel, anchor_num):
    """Deterministic init mirroring the PyTorch module:
       weights ~ N(0, 0.01); hidden biases = 0; post bias = -log((1-0.1)/0.1)."""
    keys = jax.random.split(key, 5)
    params = []
    c_in = in_channel
    for i in range(4):
        w = 0.01 * jax.random.normal(keys[i], (3, 3, c_in, out_channel),
                                     jnp.float32)
        b = jnp.zeros((out_channel,), jnp.float32)
        params.append((w, b))
        c_in = out_channel
    post_c = anchor_num * 4
    w_post = 0.01 * jax.random.normal(keys[4], (3, 3, out_channel, post_c),
                                      jnp.float32)
    b_post = jnp.full((post_c,), -math.log((1.0 - 0.1) / 0.1), jnp.float32)
    params.append((w_post, b_post))
    return params


if __name__ == "__main__":
    # Small, self-consistent shapes: batch=2, inChannel=outChannel=32,
    # anchorNum=9, spatial 8x8 (NCHW input, as in PyTorch).
    batch, in_ch, out_ch, anchor_num, H, W = 2, 32, 32, 9, 8, 8

    key = jax.random.PRNGKey(0)
    k_x, k_p = jax.random.split(key)
    x = jax.random.normal(k_x, (batch, in_ch, H, W), jnp.float32)
    params = init_regression_params(k_p, in_ch, out_ch, anchor_num)

    ref = jax.block_until_ready(regression_reference(x, params, anchor_num))

    # Exact-f32 path: validates im2col indexing / halo handling tightly.
    out_f32 = jax.block_until_ready(
        regression_forward(x, params, anchor_num, compute_dtype=jnp.float32))
    assert out_f32.shape == (batch, H * W * anchor_num, 4), out_f32.shape
    err_f32 = float(jnp.max(jnp.abs(out_f32 - ref)))
    assert err_f32 < 1e-3, f"f32 parity failed: max abs err {err_f32}"

    # Default bf16-MXU path (f32 accumulation / epilogue).
    out = jax.block_until_ready(regression_forward(x, params, anchor_num))
    assert out.shape == (batch, H * W * anchor_num, 4), out.shape
    assert bool(jnp.all(jnp.isfinite(out)))
    err_bf16 = float(jnp.max(jnp.abs(out - ref)))
    assert err_bf16 < 2e-2, f"bf16 parity failed: max abs err {err_bf16}"

    print("KERNEL_OK")
</pallas_src>

<mosaic_0001>
module attributes {stable_mosaic.version = 11 : i64} {
  func.func @_regression_fused_kernel(%arg0: i32, %arg1: memref<1x8x8x32xf32, #tpu.memory_space<vmem>>, %arg2: memref<288x32xf32, #tpu.memory_space<vmem>>, %arg3: memref<3x288x32xf32, #tpu.memory_space<vmem>>, %arg4: memref<288x128xf32, #tpu.memory_space<vmem>>, %arg5: memref<4x1x32xf32, #tpu.memory_space<vmem>>, %arg6: memref<1x128xf32, #tpu.memory_space<vmem>>, %arg7: memref<1x64x128xf32, #tpu.memory_space<vmem>>, %arg8: memref<10x10x32xf32, #tpu.memory_space<vmem>>, %arg9: memref<10x10x32xf32, #tpu.memory_space<vmem>>, %arg10: memref<10x10x32xf32, #tpu.memory_space<vmem>>, %arg11: memref<64x288xf32, #tpu.memory_space<vmem>>) attributes {dimension_semantics = [#tpu.dimension_semantics<parallel>], iteration_bounds = array<i64: 2>, scalar_prefetch = 0 : i64, scratch_operands = 4 : i64, tpu.core_type = #tpu.core_type<tc>, window_params = [{transform_indices = @transform_0, window_bounds = array<i64: 1, 8, 8, 32>}, {pipeline_mode = #tpu.pipeline_mode<synchronous>, transform_indices = @transform_1, window_bounds = array<i64: 288, 32>}, {pipeline_mode = #tpu.pipeline_mode<synchronous>, transform_indices = @transform_2, window_bounds = array<i64: 3, 288, 32>}, {pipeline_mode = #tpu.pipeline_mode<synchronous>, transform_indices = @transform_3, window_bounds = array<i64: 288, 128>}, {pipeline_mode = #tpu.pipeline_mode<synchronous>, transform_indices = @transform_4, window_bounds = array<i64: 4, 1, 32>}, {pipeline_mode = #tpu.pipeline_mode<synchronous>, transform_indices = @transform_5, window_bounds = array<i64: 1, 128>}, {transform_indices = @transform_6, window_bounds = array<i64: 1, 64, 128>}]} {
    %cst = arith.constant 0.000000e+00 : f32
    %0 = vector.broadcast %cst : f32 to vector<1x10x32xf32>
    %cst_0 = arith.constant 0.000000e+00 : f32
    %1 = vector.broadcast %cst_0 : f32 to vector<10x1x32xf32>
    %c0 = arith.constant 0 : index
    %c0_1 = arith.constant 0 : index
    %c0_2 = arith.constant 0 : index
    %2 = vector.load %arg8[%c0, %c0_1, %c0_2] : memref<10x10x32xf32, #tpu.memory_space<vmem>>, vector<1x10x32xf32>
    tpu.vector_store %arg8[%c0, %c0_1, %c0_2], %0 {strides = array<i32>} : memref<10x10x32xf32, #tpu.memory_space<vmem>>, vector<1x10x32xf32>,
    %c9 = arith.constant 9 : index
    %c0_3 = arith.constant 0 : index
    %c0_4 = arith.constant 0 : index
    %3 = vector.load %arg8[%c9, %c0_3, %c0_4] : memref<10x10x32xf32, #tpu.memory_space<vmem>>, vector<1x10x32xf32>
    tpu.vector_store %arg8[%c9, %c0_3, %c0_4], %0 {strides = array<i32>} : memref<10x10x32xf32, #tpu.memory_space<vmem>>, vector<1x10x32xf32>,
    %c0_5 = arith.constant 0 : index
    %c0_6 = arith.constant 0 : index
    %c0_7 = arith.constant 0 : index
    %4 = vector.load %arg8[%c0_5, %c0_6, %c0_7] : memref<10x10x32xf32, #tpu.memory_space<vmem>>, vector<10x1x32xf32>
    tpu.vector_store %arg8[%c0_5, %c0_6, %c0_7], %1 {strides = array<i32>} : memref<10x10x32xf32, #tpu.memory_space<vmem>>, vector<10x1x32xf32>,
    %c0_8 = arith.constant 0 : index
    %c9_9 = arith.constant 9 : index
    %c0_10 = arith.constant 0 : index
    %5 = vector.load %arg8[%c0_8, %c9_9, %c0_10] : memref<10x10x32xf32, #tpu.memory_space<vmem>>, vector<10x1x32xf32>
    tpu.vector_store %arg8[%c0_8, %c9_9, %c0_10], %1 {strides = array<i32>} : memref<10x10x32xf32, #tpu.memory_space<vmem>>, vector<10x1x32xf32>,
    %cst_11 = arith.constant 0.000000e+00 : f32
    %6 = vector.broadcast %cst_11 : f32 to vector<1x10x32xf32>
    %cst_12 = arith.constant 0.000000e+00 : f32
    %7 = vector.broadcast %cst_12 : f32 to vector<10x1x32xf32>
    %c0_13 = arith.constant 0 : index
    %c0_14 = arith.constant 0 : index
    %c0_15 = arith.constant 0 : index
    %8 = vector.load %arg9[%c0_13, %c0_14, %c0_15] : memref<10x10x32xf32, #tpu.memory_space<vmem>>, vector<1x10x32xf32>
    tpu.vector_store %arg9[%c0_13, %c0_14, %c0_15], %6 {strides = array<i32>} : memref<10x10x32xf32, #tpu.memory_space<vmem>>, vector<1x10x32xf32>,
    %c9_16 = arith.constant 9 : index
    %c0_17 = arith.constant 0 : index
    %c0_18 = arith.constant 0 : index
    %9 = vector.load %arg9[%c9_16, %c0_17, %c0_18] : memref<10x10x32xf32, #tpu.memory_space<vmem>>, vector<1x10x32xf32>
    tpu.vector_store %arg9[%c9_16, %c0_17, %c0_18], %6 {strides = array<i32>} : memref<10x10x32xf32, #tpu.memory_space<vmem>>, vector<1x10x32xf32>,
    %c0_19 = arith.constant 0 : index
    %c0_20 = arith.constant 0 : index
    %c0_21 = arith.constant 0 : index
    %10 = vector.load %arg9[%c0_19, %c0_20, %c0_21] : memref<10x10x32xf32, #tpu.memory_space<vmem>>, vector<10x1x32xf32>
    tpu.vector_store %arg9[%c0_19, %c0_20, %c0_21], %7 {strides = array<i32>} : memref<10x10x32xf32, #tpu.memory_space<vmem>>, vector<10x1x32xf32>,
    %c0_22 = arith.constant 0 : index
    %c9_23 = arith.constant 9 : index
    %c0_24 = arith.constant 0 : index
    %11 = vector.load %arg9[%c0_22, %c9_23, %c0_24] : memref<10x10x32xf32, #tpu.memory_space<vmem>>, vector<10x1x32xf32>
    tpu.vector_store %arg9[%c0_22, %c9_23, %c0_24], %7 {strides = array<i32>} : memref<10x10x32xf32, #tpu.memory_space<vmem>>, vector<10x1x32xf32>,
    %cst_25 = arith.constant 0.000000e+00 : f32
    %12 = vector.broadcast %cst_25 : f32 to vector<1x10x32xf32>
    %cst_26 = arith.constant 0.000000e+00 : f32
    %13 = vector.broadcast %cst_26 : f32 to vector<10x1x32xf32>
    %c0_27 = arith.constant 0 : index
    %c0_28 = arith.constant 0 : index
    %c0_29 = arith.constant 0 : index
    %14 = vector.load %arg10[%c0_27, %c0_28, %c0_29] : memref<10x10x32xf32, #tpu.memory_space<vmem>>, vector<1x10x32xf32>
    tpu.vector_store %arg10[%c0_27, %c0_28, %c0_29], %12 {strides = array<i32>} : memref<10x10x32xf32, #tpu.memory_space<vmem>>, vector<1x10x32xf32>,
    %c9_30 = arith.constant 9 : index
    %c0_31 = arith.constant 0 : index
    %c0_32 = arith.constant 0 : index
    %15 = vector.load %arg10[%c9_30, %c0_31, %c0_32] : memref<10x10x32xf32, #tpu.memory_space<vmem>>, vector<1x10x32xf32>
    tpu.vector_store %arg10[%c9_30, %c0_31, %c0_32], %12 {strides = array<i32>} : memref<10x10x32xf32, #tpu.memory_space<vmem>>, vector<1x10x32xf32>,
    %c0_33 = arith.constant 0 : index
    %c0_34 = arith.constant 0 : index
    %c0_35 = arith.constant 0 : index
    %16 = vector.load %arg10[%c0_33, %c0_34, %c0_35] : memref<10x10x32xf32, #tpu.memory_space<vmem>>, vector<10x1x32xf32>
    tpu.vector_store %arg10[%c0_33, %c0_34, %c0_35], %13 {strides = array<i32>} : memref<10x10x32xf32, #tpu.memory_space<vmem>>, vector<10x1x32xf32>,
    %c0_36 = arith.constant 0 : index
    %c9_37 = arith.constant 9 : index
    %c0_38 = arith.constant 0 : index
    %17 = vector.load %arg10[%c0_36, %c9_37, %c0_38] : memref<10x10x32xf32, #tpu.memory_space<vmem>>, vector<10x1x32xf32>
    tpu.vector_store %arg10[%c0_36, %c9_37, %c0_38], %13 {strides = array<i32>} : memref<10x10x32xf32, #tpu.memory_space<vmem>>, vector<10x1x32xf32>,
    %c0_39 = arith.constant 0 : index
    %c0_40 = arith.constant 0 : index
    %c0_41 = arith.constant 0 : index
    %c0_42 = arith.constant 0 : index
    %18 = vector.load %arg1[%c0_39, %c0_40, %c0_41, %c0_42] : memref<1x8x8x32xf32, #tpu.memory_space<vmem>>, vector<1x8x8x32xf32>
    %19 = vector.shape_cast %18 : vector<1x8x8x32xf32> to vector<8x8x32xf32>
    %c1 = arith.constant 1 : index
    %c1_43 = arith.constant 1 : index
    %c0_44 = arith.constant 0 : index
    %20 = vector.load %arg8[%c1, %c1_43, %c0_44] : memref<10x10x32xf32, #tpu.memory_space<vmem>>, vector<8x8x32xf32>
    tpu.vector_store %arg8[%c1, %c1_43, %c0_44], %19 {strides = array<i32>} : memref<10x10x32xf32, #tpu.memory_space<vmem>>, vector<8x8x32xf32>,
    %c0_45 = arith.constant 0 : index
    %c0_46 = arith.constant 0 : index
    %21 = vector.load %arg2[%c0_45, %c0_46] : memref<288x32xf32, #tpu.memory_space<vmem>>, vector<288x32xf32>
    %c0_47 = arith.constant 0 : index
    %c0_48 = arith.constant 0 : index
    %c0_49 = arith.constant 0 : index
    %22 = vector.load %arg5[%c0_47, %c0_48, %c0_49] : memref<4x1x32xf32, #tpu.memory_space<vmem>>, vector<1x1x32xf32>
    %23 = vector.shape_cast %22 : vector<1x1x32xf32> to vector<1x32xf32>
    %c0_50 = arith.constant 0 : index
    %c0_51 = arith.constant 0 : index
    %c0_52 = arith.constant 0 : index
    %24 = vector.load %arg8[%c0_50, %c0_51, %c0_52] : memref<10x10x32xf32, #tpu.memory_space<vmem>>, vector<8x8x32xf32>
    %25 = vector.shape_cast %24 : vector<8x8x32xf32> to vector<64x32xf32>
    %c0_53 = arith.constant 0 : index
    %c0_54 = arith.constant 0 : index
    %26 = vector.load %arg11[%c0_53, %c0_54] : memref<64x288xf32, #tpu.memory_space<vmem>>, vector<64x32xf32>
    tpu.vector_store %arg11[%c0_53, %c0_54], %25 {strides = array<i32>} : memref<64x288xf32, #tpu.memory_space<vmem>>, vector<64x32xf32>,
    %c0_55 = arith.constant 0 : index
    %c1_56 = arith.constant 1 : index
    %c0_57 = arith.constant 0 : index
    %27 = vector.load %arg8[%c0_55, %c1_56, %c0_57] : memref<10x10x32xf32, #tpu.memory_space<vmem>>, vector<8x8x32xf32>
    %28 = vector.shape_cast %27 : vector<8x8x32xf32> to vector<64x32xf32>
    %c0_58 = arith.constant 0 : index
    %c32 = arith.constant 32 : index
    %29 = vector.load %arg11[%c0_58, %c32] : memref<64x288xf32, #tpu.memory_space<vmem>>, vector<64x32xf32>
    tpu.vector_store %arg11[%c0_58, %c32], %28 {strides = array<i32>} : memref<64x288xf32, #tpu.memory_space<vmem>>, vector<64x32xf32>,
    %c0_59 = arith.constant 0 : index
    %c2 = arith.constant 2 : index
    %c0_60 = arith.constant 0 : index
    %30 = vector.load %arg8[%c0_59, %c2, %c0_60] : memref<10x10x32xf32, #tpu.memory_space<vmem>>, vector<8x8x32xf32>
    %31 = vector.shape_cast %30 : vector<8x8x32xf32> to vector<64x32xf32>
    %c0_61 = arith.constant 0 : index
    %c64 = arith.constant 64 : index
    %32 = vector.load %arg11[%c0_61, %c64] : memref<64x288xf32, #tpu.memory_space<vmem>>, vector<64x32xf32>
    tpu.vector_store %arg11[%c0_61, %c64], %31 {strides = array<i32>} : memref<64x288xf32, #tpu.memory_space<vmem>>, vector<64x32xf32>,
    %c1_62 = arith.constant 1 : index
    %c0_63 = arith.constant 0 : index
    %c0_64 = arith.constant 0 : index
    %33 = vector.load %arg8[%c1_62, %c0_63, %c0_64] : memref<10x10x32xf32, #tpu.memory_space<vmem>>, vector<8x8x32xf32>
    %34 = vector.shape_cast %33 : vector<8x8x32xf32> to vector<64x32xf32>
    %c0_65 = arith.constant 0 : index
    %c96 = arith.constant 96 : index
    %35 = vector.load %arg11[%c0_65, %c96] : memref<64x288xf32, #tpu.memory_space<vmem>>, vector<64x32xf32>
    tpu.vector_store %arg11[%c0_65, %c96], %34 {strides = array<i32>} : memref<64x288xf32, #tpu.memory_space<vmem>>, vector<64x32xf32>,
    %c1_66 = arith.constant 1 : index
    %c1_67 = arith.constant 1 : index
    %c0_68 = arith.constant 0 : index
    %36 = vector.load %arg8[%c1_66, %c1_67, %c0_68] : memref<10x10x32xf32, #tpu.memory_space<vmem>>, vector<8x8x32xf32>
    %37 = vector.shape_cast %36 : vector<8x8x32xf32> to vector<64x32xf32>
    %c0_69 = arith.constant 0 : index
    %c128 = arith.constant 128 : index
    %38 = vector.load %arg11[%c0_69, %c128] : memref<64x288xf32, #tpu.memory_space<vmem>>, vector<64x32xf32>
    tpu.vector_store %arg11[%c0_69, %c128], %37 {strides = array<i32>} : memref<64x288xf32, #tpu.memory_space<vmem>>, vector<64x32xf32>,
    %c1_70 = arith.constant 1 : index
    %c2_71 = arith.constant 2 : index
    %c0_72 = arith.constant 0 : index
    %39 = vector.load %arg8[%c1_70, %c2_71, %c0_72] : memref<10x10x32xf32, #tpu.memory_space<vmem>>, vector<8x8x32xf32>
    %40 = vector.shape_cast %39 : vector<8x8x32xf32> to vector<64x32xf32>
    %c0_73 = arith.constant 0 : index
    %c160 = arith.constant 160 : index
    %41 = vector.load %arg11[%c0_73, %c160] : memref<64x288xf32, #tpu.memory_space<vmem>>, vector<64x32xf32>
    tpu.vector_store %arg11[%c0_73, %c160], %40 {strides = array<i32>} : memref<64x288xf32, #tpu.memory_space<vmem>>, vector<64x32xf32>,
    %c2_74 = arith.constant 2 : index
    %c0_75 = arith.constant 0 : index
    %c0_76 = arith.constant 0 : index
    %42 = vector.load %arg8[%c2_74, %c0_75, %c0_76] : memref<10x10x32xf32, #tpu.memory_space<vmem>>, vector<8x8x32xf32>
    %43 = vector.shape_cast %42 : vector<8x8x32xf32> to vector<64x32xf32>
    %c0_77 = arith.constant 0 : index
    %c192 = arith.constant 192 : index
    %44 = vector.load %arg11[%c0_77, %c192] : memref<64x288xf32, #tpu.memory_space<vmem>>, vector<64x32xf32>
    tpu.vector_store %arg11[%c0_77, %c192], %43 {strides = array<i32>} : memref<64x288xf32, #tpu.memory_space<vmem>>, vector<64x32xf32>,
    %c2_78 = arith.constant 2 : index
    %c1_79 = arith.constant 1 : index
    %c0_80 = arith.constant 0 : index
    %45 = vector.load %arg8[%c2_78, %c1_79, %c0_80] : memref<10x10x32xf32, #tpu.memory_space<vmem>>, vector<8x8x32xf32>
    %46 = vector.shape_cast %45 : vector<8x8x32xf32> to vector<64x32xf32>
    %c0_81 = arith.constant 0 : index
    %c224 = arith.constant 224 : index
    %47 = vector.load %arg11[%c0_81, %c224] : memref<64x288xf32, #tpu.memory_space<vmem>>, vector<64x32xf32>
    tpu.vector_store %arg11[%c0_81, %c224], %46 {strides = array<i32>} : memref<64x288xf32, #tpu.memory_space<vmem>>, vector<64x32xf32>,
    %c2_82 = arith.constant 2 : index
    %c2_83 = arith.constant 2 : index
    %c0_84 = arith.constant 0 : index
    %48 = vector.load %arg8[%c2_82, %c2_83, %c0_84] : memref<10x10x32xf32, #tpu.memory_space<vmem>>, vector<8x8x32xf32>
    %49 = vector.shape_cast %48 : vector<8x8x32xf32> to vector<64x32xf32>
    %c0_85 = arith.constant 0 : index
    %c256 = arith.constant 256 : index
    %50 = vector.load %arg11[%c0_85, %c256] : memref<64x288xf32, #tpu.memory_space<vmem>>, vector<64x32xf32>
    tpu.vector_store %arg11[%c0_85, %c256], %49 {strides = array<i32>} : memref<64x288xf32, #tpu.memory_space<vmem>>, vector<64x32xf32>,
    %c0_86 = arith.constant 0 : index
    %c0_87 = arith.constant 0 : index
    %51 = vector.load %arg11[%c0_86, %c0_87] : memref<64x288xf32, #tpu.memory_space<vmem>>, vector<64x288xf32>
    %cst_88 = arith.constant dense<0.000000e+00> : vector<64x32xf32>
    %52 = tpu.matmul %51, %21, %cst_88 {dimension_numbers = #tpu.dot_dimension_numbers<[1], [0], [0], [1], [0, 0, 1, 1], [], []>} : vector<64x288xf32>, vector<288x32xf32>, vector<64x32xf32> -> vector<64x32xf32>
    %53 = vector.broadcast %23 : vector<1x32xf32> to vector<64x32xf32>
    %54 = arith.addf %52, %53 : vector<64x32xf32>
    %cst_89 = arith.constant 0.000000e+00 : f32
    %55 = vector.broadcast %cst_89 : f32 to vector<64x32xf32>
    %56 = arith.maximumf %54, %55 : vector<64x32xf32>
    %57 = vector.shape_cast %56 : vector<64x32xf32> to vector<8x8x32xf32>
    %c1_90 = arith.constant 1 : index
    %c1_91 = arith.constant 1 : index
    %c0_92 = arith.constant 0 : index
    %58 = vector.load %arg9[%c1_90, %c1_91, %c0_92] : memref<10x10x32xf32, #tpu.memory_space<vmem>>, vector<8x8x32xf32>
    tpu.vector_store %arg9[%c1_90, %c1_91, %c0_92], %57 {strides = array<i32>} : memref<10x10x32xf32, #tpu.memory_space<vmem>>, vector<8x8x32xf32>,
    %c0_93 = arith.constant 0 : index
    %c0_94 = arith.constant 0 : index
    %c0_95 = arith.constant 0 : index
    %59 = vector.load %arg3[%c0_93, %c0_94, %c0_95] : memref<3x288x32xf32, #tpu.memory_space<vmem>>, vector<1x288x32xf32>
    %60 = vector.shape_cast %59 : vector<1x288x32xf32> to vector<288x32xf32>
    %c1_96 = arith.constant 1 : index
    %c0_97 = arith.constant 0 : index
    %c0_98 = arith.constant 0 : index
    %61 = vector.load %arg5[%c1_96, %c0_97, %c0_98] : memref<4x1x32xf32, #tpu.memory_space<vmem>>, vector<1x1x32xf32>
    %62 = vector.shape_cast %61 : vector<1x1x32xf32> to vector<1x32xf32>
    %c0_99 = arith.constant 0 : index
    %c0_100 = arith.constant 0 : index
    %c0_101 = arith.constant 0 : index
    %63 = vector.load %arg9[%c0_99, %c0_100, %c0_101] : memref<10x10x32xf32, #tpu.memory_space<vmem>>, vector<8x8x32xf32>
    %64 = vector.shape_cast %63 : vector<8x8x32xf32> to vector<64x32xf32>
    %c0_102 = arith.constant 0 : index
    %c0_103 = arith.constant 0 : index
    %65 = vector.load %arg11[%c0_102, %c0_103] : memref<64x288xf32, #tpu.memory_space<vmem>>, vector<64x32xf32>
    tpu.vector_store %arg11[%c0_102, %c0_103], %64 {strides = array<i32>} : memref<64x288xf32, #tpu.memory_space<vmem>>, vector<64x32xf32>,
    %c0_104 = arith.constant 0 : index
    %c1_105 = arith.constant 1 : index
    %c0_106 = arith.constant 0 : index
    %66 = vector.load %arg9[%c0_104, %c1_105, %c0_106] : memref<10x10x32xf32, #tpu.memory_space<vmem>>, vector<8x8x32xf32>
    %67 = vector.shape_cast %66 : vector<8x8x32xf32> to vector<64x32xf32>
    %c0_107 = arith.constant 0 : index
    %c32_108 = arith.constant 32 : index
    %68 = vector.load %arg11[%c0_107, %c32_108] : memref<64x288xf32, #tpu.memory_space<vmem>>, vector<64x32xf32>
    tpu.vector_store %arg11[%c0_107, %c32_108], %67 {strides = array<i32>} : memref<64x288xf32, #tpu.memory_space<vmem>>, vector<64x32xf32>,
    %c0_109 = arith.constant 0 : index
    %c2_110 = arith.constant 2 : index
    %c0_111 = arith.constant 0 : index
    %69 = vector.load %arg9[%c0_109, %c2_110, %c0_111] : memref<10x10x32xf32, #tpu.memory_space<vmem>>, vector<8x8x32xf32>
    %70 = vector.shape_cast %69 : vector<8x8x32xf32> to vector<64x32xf32>
    %c0_112 = arith.constant 0 : index
    %c64_113 = arith.constant 64 : index
    %71 = vector.load %arg11[%c0_112, %c64_113] : memref<64x288xf32, #tpu.memory_space<vmem>>, vector<64x32xf32>
    tpu.vector_store %arg11[%c0_112, %c64_113], %70 {strides = array<i32>} : memref<64x288xf32, #tpu.memory_space<vmem>>, vector<64x32xf32>,
    %c1_114 = arith.constant 1 : index
    %c0_115 = arith.constant 0 : index
    %c0_116 = arith.constant 0 : index
    %72 = vector.load %arg9[%c1_114, %c0_115, %c0_116] : memref<10x10x32xf32, #tpu.memory_space<vmem>>, vector<8x8x32xf32>
    %73 = vector.shape_cast %72 : vector<8x8x32xf32> to vector<64x32xf32>
    %c0_117 = arith.constant 0 : index
    %c96_118 = arith.constant 96 : index
    %74 = vector.load %arg11[%c0_117, %c96_118] : memref<64x288xf32, #tpu.memory_space<vmem>>, vector<64x32xf32>
    tpu.vector_store %arg11[%c0_117, %c96_118], %73 {strides = array<i32>} : memref<64x288xf32, #tpu.memory_space<vmem>>, vector<64x32xf32>,
    %c1_119 = arith.constant 1 : index
    %c1_120 = arith.constant 1 : index
    %c0_121 = arith.constant 0 : index
    %75 = vector.load %arg9[%c1_119, %c1_120, %c0_121] : memref<10x10x32xf32, #tpu.memory_space<vmem>>, vector<8x8x32xf32>
    %76 = vector.shape_cast %75 : vector<8x8x32xf32> to vector<64x32xf32>
    %c0_122 = arith.constant 0 : index
    %c128_123 = arith.constant 128 : index
    %77 = vector.load %arg11[%c0_122, %c128_123] : memref<64x288xf32, #tpu.memory_space<vmem>>, vector<64x32xf32>
    tpu.vector_store %arg11[%c0_122, %c128_123], %76 {strides = array<i32>} : memref<64x288xf32, #tpu.memory_space<vmem>>, vector<64x32xf32>,
    %c1_124 = arith.constant 1 : index
    %c2_125 = arith.constant 2 : index
    %c0_126 = arith.constant 0 : index
    %78 = vector.load %arg9[%c1_124, %c2_125, %c0_126] : memref<10x10x32xf32, #tpu.memory_space<vmem>>, vector<8x8x32xf32>
    %79 = vector.shape_cast %78 : vector<8x8x32xf32> to vector<64x32xf32>
    %c0_127 = arith.constant 0 : index
    %c160_128 = arith.constant 160 : index
    %80 = vector.load %arg11[%c0_127, %c160_128] : memref<64x288xf32, #tpu.memory_space<vmem>>, vector<64x32xf32>
    tpu.vector_store %arg11[%c0_127, %c160_128], %79 {strides = array<i32>} : memref<64x288xf32, #tpu.memory_space<vmem>>, vector<64x32xf32>,
    %c2_129 = arith.constant 2 : index
    %c0_130 = arith.constant 0 : index
    %c0_131 = arith.constant 0 : index
    %81 = vector.load %arg9[%c2_129, %c0_130, %c0_131] : memref<10x10x32xf32, #tpu.memory_space<vmem>>, vector<8x8x32xf32>
    %82 = vector.shape_cast %81 : vector<8x8x32xf32> to vector<64x32xf32>
    %c0_132 = arith.constant 0 : index
    %c192_133 = arith.constant 192 : index
    %83 = vector.load %arg11[%c0_132, %c192_133] : memref<64x288xf32, #tpu.memory_space<vmem>>, vector<64x32xf32>
    tpu.vector_store %arg11[%c0_132, %c192_133], %82 {strides = array<i32>} : memref<64x288xf32, #tpu.memory_space<vmem>>, vector<64x32xf32>,
    %c2_134 = arith.constant 2 : index
    %c1_135 = arith.constant 1 : index
    %c0_136 = arith.constant 0 : index
    %84 = vector.load %arg9[%c2_134, %c1_135, %c0_136] : memref<10x10x32xf32, #tpu.memory_space<vmem>>, vector<8x8x32xf32>
    %85 = vector.shape_cast %84 : vector<8x8x32xf32> to vector<64x32xf32>
    %c0_137 = arith.constant 0 : index
    %c224_138 = arith.constant 224 : index
    %86 = vector.load %arg11[%c0_137, %c224_138] : memref<64x288xf32, #tpu.memory_space<vmem>>, vector<64x32xf32>
    tpu.vector_store %arg11[%c0_137, %c224_138], %85 {strides = array<i32>} : memref<64x288xf32, #tpu.memory_space<vmem>>, vector<64x32xf32>,
    %c2_139 = arith.constant 2 : index
    %c2_140 = arith.constant 2 : index
    %c0_141 = arith.constant 0 : index
    %87 = vector.load %arg9[%c2_139, %c2_140, %c0_141] : memref<10x10x32xf32, #tpu.memory_space<vmem>>, vector<8x8x32xf32>
    %88 = vector.shape_cast %87 : vector<8x8x32xf32> to vector<64x32xf32>
    %c0_142 = arith.constant 0 : index
    %c256_143 = arith.constant 256 : index
    %89 = vector.load %arg11[%c0_142, %c256_143] : memref<64x288xf32, #tpu.memory_space<vmem>>, vector<64x32xf32>
    tpu.vector_store %arg11[%c0_142, %c256_143], %88 {strides = array<i32>} : memref<64x288xf32, #tpu.memory_space<vmem>>, vector<64x32xf32>,
    %c0_144 = arith.constant 0 : index
    %c0_145 = arith.constant 0 : index
    %90 = vector.load %arg11[%c0_144, %c0_145] : memref<64x288xf32, #tpu.memory_space<vmem>>, vector<64x288xf32>
    %cst_146 = arith.constant dense<0.000000e+00> : vector<64x32xf32>
    %91 = tpu.matmul %90, %60, %cst_146 {dimension_numbers = #tpu.dot_dimension_numbers<[1], [0], [0], [1], [0, 0, 1, 1], [], []>} : vector<64x288xf32>, vector<288x32xf32>, vector<64x32xf32> -> vector<64x32xf32>
    %92 = vector.broadcast %62 : vector<1x32xf32> to vector<64x32xf32>
    %93 = arith.addf %91, %92 : vector<64x32xf32>
    %cst_147 = arith.constant 0.000000e+00 : f32
    %94 = vector.broadcast %cst_147 : f32 to vector<64x32xf32>
    %95 = arith.maximumf %93, %94 : vector<64x32xf32>
    %96 = vector.shape_cast %95 : vector<64x32xf32> to vector<8x8x32xf32>
    %c1_148 = arith.constant 1 : index
    %c1_149 = arith.constant 1 : index
    %c0_150 = arith.constant 0 : index
    %97 = vector.load %arg10[%c1_148, %c1_149, %c0_150] : memref<10x10x32xf32, #tpu.memory_space<vmem>>, vector<8x8x32xf32>
    tpu.vector_store %arg10[%c1_148, %c1_149, %c0_150], %96 {strides = array<i32>} : memref<10x10x32xf32, #tpu.memory_space<vmem>>, vector<8x8x32xf32>,
    %c1_151 = arith.constant 1 : index
    %c0_152 = arith.constant 0 : index
    %c0_153 = arith.constant 0 : index
    %98 = vector.load %arg3[%c1_151, %c0_152, %c0_153] : memref<3x288x32xf32, #tpu.memory_space<vmem>>, vector<1x288x32xf32>
    %99 = vector.shape_cast %98 : vector<1x288x32xf32> to vector<288x32xf32>
    %c2_154 = arith.constant 2 : index
    %c0_155 = arith.constant 0 : index
    %c0_156 = arith.constant 0 : index
    %100 = vector.load %arg5[%c2_154, %c0_155, %c0_156] : memref<4x1x32xf32, #tpu.memory_space<vmem>>, vector<1x1x32xf32>
    %101 = vector.shape_cast %100 : vector<1x1x32xf32> to vector<1x32xf32>
    %c0_157 = arith.constant 0 : index
    %c0_158 = arith.constant 0 : index
    %c0_159 = arith.constant 0 : index
    %102 = vector.load %arg10[%c0_157, %c0_158, %c0_159] : memref<10x10x32xf32, #tpu.memory_space<vmem>>, vector<8x8x32xf32>
    %103 = vector.shape_cast %102 : vector<8x8x32xf32> to vector<64x32xf32>
    %c0_160 = arith.constant 0 : index
    %c0_161 = arith.constant 0 : index
    %104 = vector.load %arg11[%c0_160, %c0_161] : memref<64x288xf32, #tpu.memory_space<vmem>>, vector<64x32xf32>
    tpu.vector_store %arg11[%c0_160, %c0_161], %103 {strides = array<i32>} : memref<64x288xf32, #tpu.memory_space<vmem>>, vector<64x32xf32>,
    %c0_162 = arith.constant 0 : index
    %c1_163 = arith.constant 1 : index
    %c0_164 = arith.constant 0 : index
    %105 = vector.load %arg10[%c0_162, %c1_163, %c0_164] : memref<10x10x32xf32, #tpu.memory_space<vmem>>, vector<8x8x32xf32>
    %106 = vector.shape_cast %105 : vector<8x8x32xf32> to vector<64x32xf32>
    %c0_165 = arith.constant 0 : index
    %c32_166 = arith.constant 32 : index
    %107 = vector.load %arg11[%c0_165, %c32_166] : memref<64x288xf32, #tpu.memory_space<vmem>>, vector<64x32xf32>
    tpu.vector_store %arg11[%c0_165, %c32_166], %106 {strides = array<i32>} : memref<64x288xf32, #tpu.memory_space<vmem>>, vector<64x32xf32>,
    %c0_167 = arith.constant 0 : index
    %c2_168 = arith.constant 2 : index
    %c0_169 = arith.constant 0 : index
    %108 = vector.load %arg10[%c0_167, %c2_168, %c0_169] : memref<10x10x32xf32, #tpu.memory_space<vmem>>, vector<8x8x32xf32>
    %109 = vector.shape_cast %108 : vector<8x8x32xf32> to vector<64x32xf32>
    %c0_170 = arith.constant 0 : index
    %c64_171 = arith.constant 64 : index
    %110 = vector.load %arg11[%c0_170, %c64_171] : memref<64x288xf32, #tpu.memory_space<vmem>>, vector<64x32xf32>
    tpu.vector_store %arg11[%c0_170, %c64_171], %109 {strides = array<i32>} : memref<64x288xf32, #tpu.memory_space<vmem>>, vector<64x32xf32>,
    %c1_172 = arith.constant 1 : index
    %c0_173 = arith.constant 0 : index
    %c0_174 = arith.constant 0 : index
    %111 = vector.load %arg10[%c1_172, %c0_173, %c0_174] : memref<10x10x32xf32, #tpu.memory_space<vmem>>, vector<8x8x32xf32>
    %112 = vector.shape_cast %111 : vector<8x8x32xf32> to vector<64x32xf32>
    %c0_175 = arith.constant 0 : index
    %c96_176 = arith.constant 96 : index
    %113 = vector.load %arg11[%c0_175, %c96_176] : memref<64x288xf32, #tpu.memory_space<vmem>>, vector<64x32xf32>
    tpu.vector_store %arg11[%c0_175, %c96_176], %112 {strides = array<i32>} : memref<64x288xf32, #tpu.memory_space<vmem>>, vector<64x32xf32>,
    %c1_177 = arith.constant 1 : index
    %c1_178 = arith.constant 1 : index
    %c0_179 = arith.constant 0 : index
    %114 = vector.load %arg10[%c1_177, %c1_178, %c0_179] : memref<10x10x32xf32, #tpu.memory_space<vmem>>, vector<8x8x32xf32>
    %115 = vector.shape_cast %114 : vector<8x8x32xf32> to vector<64x32xf32>
    %c0_180 = arith.constant 0 : index
    %c128_181 = arith.constant 128 : index
    %116 = vector.load %arg11[%c0_180, %c128_181] : memref<64x288xf32, #tpu.memory_space<vmem>>, vector<64x32xf32>
    tpu.vector_store %arg11[%c0_180, %c128_181], %115 {strides = array<i32>} : memref<64x288xf32, #tpu.memory_space<vmem>>, vector<64x32xf32>,
    %c1_182 = arith.constant 1 : index
    %c2_183 = arith.constant 2 : index
    %c0_184 = arith.constant 0 : index
    %117 = vector.load %arg10[%c1_182, %c2_183, %c0_184] : memref<10x10x32xf32, #tpu.memory_space<vmem>>, vector<8x8x32xf32>
    %118 = vector.shape_cast %117 : vector<8x8x32xf32> to vector<64x32xf32>
    %c0_185 = arith.constant 0 : index
    %c160_186 = arith.constant 160 : index
    %119 = vector.load %arg11[%c0_185, %c160_186] : memref<64x288xf32, #tpu.memory_space<vmem>>, vector<64x32xf32>
    tpu.vector_store %arg11[%c0_185, %c160_186], %118 {strides = array<i32>} : memref<64x288xf32, #tpu.memory_space<vmem>>, vector<64x32xf32>,
    %c2_187 = arith.constant 2 : index
    %c0_188 = arith.constant 0 : index
    %c0_189 = arith.constant 0 : index
    %120 = vector.load %arg10[%c2_187, %c0_188, %c0_189] : memref<10x10x32xf32, #tpu.memory_space<vmem>>, vector<8x8x32xf32>
    %121 = vector.shape_cast %120 : vector<8x8x32xf32> to vector<64x32xf32>
    %c0_190 = arith.constant 0 : index
    %c192_191 = arith.constant 192 : index
    %122 = vector.load %arg11[%c0_190, %c192_191] : memref<64x288xf32, #tpu.memory_space<vmem>>, vector<64x32xf32>
    tpu.vector_store %arg11[%c0_190, %c192_191], %121 {strides = array<i32>} : memref<64x288xf32, #tpu.memory_space<vmem>>, vector<64x32xf32>,
    %c2_192 = arith.constant 2 : index
    %c1_193 = arith.constant 1 : index
    %c0_194 = arith.constant 0 : index
    %123 = vector.load %arg10[%c2_192, %c1_193, %c0_194] : memref<10x10x32xf32, #tpu.memory_space<vmem>>, vector<8x8x32xf32>
    %124 = vector.shape_cast %123 : vector<8x8x32xf32> to vector<64x32xf32>
    %c0_195 = arith.constant 0 : index
    %c224_196 = arith.constant 224 : index
    %125 = vector.load %arg11[%c0_195, %c224_196] : memref<64x288xf32, #tpu.memory_space<vmem>>, vector<64x32xf32>
    tpu.vector_store %arg11[%c0_195, %c224_196], %124 {strides = array<i32>} : memref<64x288xf32, #tpu.memory_space<vmem>>, vector<64x32xf32>,
    %c2_197 = arith.constant 2 : index
    %c2_198 = arith.constant 2 : index
    %c0_199 = arith.constant 0 : index
    %126 = vector.load %arg10[%c2_197, %c2_198, %c0_199] : memref<10x10x32xf32, #tpu.memory_space<vmem>>, vector<8x8x32xf32>
    %127 = vector.shape_cast %126 : vector<8x8x32xf32> to vector<64x32xf32>
    %c0_200 = arith.constant 0 : index
    %c256_201 = arith.constant 256 : index
    %128 = vector.load %arg11[%c0_200, %c256_201] : memref<64x288xf32, #tpu.memory_space<vmem>>, vector<64x32xf32>
    tpu.vector_store %arg11[%c0_200, %c256_201], %127 {strides = array<i32>} : memref<64x288xf32, #tpu.memory_space<vmem>>, vector<64x32xf32>,
    %c0_202 = arith.constant 0 : index
    %c0_203 = arith.constant 0 : index
    %129 = vector.load %arg11[%c0_202, %c0_203] : memref<64x288xf32, #tpu.memory_space<vmem>>, vector<64x288xf32>
    %cst_204 = arith.constant dense<0.000000e+00> : vector<64x32xf32>
    %130 = tpu.matmul %129, %99, %cst_204 {dimension_numbers = #tpu.dot_dimension_numbers<[1], [0], [0], [1], [0, 0, 1, 1], [], []>} : vector<64x288xf32>, vector<288x32xf32>, vector<64x32xf32> -> vector<64x32xf32>
    %131 = vector.broadcast %101 : vector<1x32xf32> to vector<64x32xf32>
    %132 = arith.addf %130, %131 : vector<64x32xf32>
    %cst_205 = arith.constant 0.000000e+00 : f32
    %133 = vector.broadcast %cst_205 : f32 to vector<64x32xf32>
    %134 = arith.maximumf %132, %133 : vector<64x32xf32>
    %135 = vector.shape_cast %134 : vector<64x32xf32> to vector<8x8x32xf32>
    %c1_206 = arith.constant 1 : index
    %c1_207 = arith.constant 1 : index
    %c0_208 = arith.constant 0 : index
    %136 = vector.load %arg9[%c1_206, %c1_207, %c0_208] : memref<10x10x32xf32, #tpu.memory_space<vmem>>, vector<8x8x32xf32>
    tpu.vector_store %arg9[%c1_206, %c1_207, %c0_208], %135 {strides = array<i32>} : memref<10x10x32xf32, #tpu.memory_space<vmem>>, vector<8x8x32xf32>,
    %c2_209 = arith.constant 2 : index
    %c0_210 = arith.constant 0 : index
    %c0_211 = arith.constant 0 : index
    %137 = vector.load %arg3[%c2_209, %c0_210, %c0_211] : memref<3x288x32xf32, #tpu.memory_space<vmem>>, vector<1x288x32xf32>
    %138 = vector.shape_cast %137 : vector<1x288x32xf32> to vector<288x32xf32>
    %c3 = arith.constant 3 : index
    %c0_212 = arith.constant 0 : index
    %c0_213 = arith.constant 0 : index
    %139 = vector.load %arg5[%c3, %c0_212, %c0_213] : memref<4x1x32xf32, #tpu.memory_space<vmem>>, vector<1x1x32xf32>
    %140 = vector.shape_cast %139 : vector<1x1x32xf32> to vector<1x32xf32>
    %c0_214 = arith.constant 0 : index
    %c0_215 = arith.constant 0 : index
    %c0_216 = arith.constant 0 : index
    %141 = vector.load %arg9[%c0_214, %c0_215, %c0_216] : memref<10x10x32xf32, #tpu.memory_space<vmem>>, vector<8x8x32xf32>
    %142 = vector.shape_cast %141 : vector<8x8x32xf32> to vector<64x32xf32>
    %c0_217 = arith.constant 0 : index
    %c0_218 = arith.constant 0 : index
    %143 = vector.load %arg11[%c0_217, %c0_218] : memref<64x288xf32, #tpu.memory_space<vmem>>, vector<64x32xf32>
    tpu.vector_store %arg11[%c0_217, %c0_218], %142 {strides = array<i32>} : memref<64x288xf32, #tpu.memory_space<vmem>>, vector<64x32xf32>,
    %c0_219 = arith.constant 0 : index
    %c1_220 = arith.constant 1 : index
    %c0_221 = arith.constant 0 : index
    %144 = vector.load %arg9[%c0_219, %c1_220, %c0_221] : memref<10x10x32xf32, #tpu.memory_space<vmem>>, vector<8x8x32xf32>
    %145 = vector.shape_cast %144 : vector<8x8x32xf32> to vector<64x32xf32>
    %c0_222 = arith.constant 0 : index
    %c32_223 = arith.constant 32 : index
    %146 = vector.load %arg11[%c0_222, %c32_223] : memref<64x288xf32, #tpu.memory_space<vmem>>, vector<64x32xf32>
    tpu.vector_store %arg11[%c0_222, %c32_223], %145 {strides = array<i32>} : memref<64x288xf32, #tpu.memory_space<vmem>>, vector<64x32xf32>,
    %c0_224 = arith.constant 0 : index
    %c2_225 = arith.constant 2 : index
    %c0_226 = arith.constant 0 : index
    %147 = vector.load %arg9[%c0_224, %c2_225, %c0_226] : memref<10x10x32xf32, #tpu.memory_space<vmem>>, vector<8x8x32xf32>
    %148 = vector.shape_cast %147 : vector<8x8x32xf32> to vector<64x32xf32>
    %c0_227 = arith.constant 0 : index
    %c64_228 = arith.constant 64 : index
    %149 = vector.load %arg11[%c0_227, %c64_228] : memref<64x288xf32, #tpu.memory_space<vmem>>, vector<64x32xf32>
    tpu.vector_store %arg11[%c0_227, %c64_228], %148 {strides = array<i32>} : memref<64x288xf32, #tpu.memory_space<vmem>>, vector<64x32xf32>,
    %c1_229 = arith.constant 1 : index
    %c0_230 = arith.constant 0 : index
    %c0_231 = arith.constant 0 : index
    %150 = vector.load %arg9[%c1_229, %c0_230, %c0_231] : memref<10x10x32xf32, #tpu.memory_space<vmem>>, vector<8x8x32xf32>
    %151 = vector.shape_cast %150 : vector<8x8x32xf32> to vector<64x32xf32>
    %c0_232 = arith.constant 0 : index
    %c96_233 = arith.constant 96 : index
    %152 = vector.load %arg11[%c0_232, %c96_233] : memref<64x288xf32, #tpu.memory_space<vmem>>, vector<64x32xf32>
    tpu.vector_store %arg11[%c0_232, %c96_233], %151 {strides = array<i32>} : memref<64x288xf32, #tpu.memory_space<vmem>>, vector<64x32xf32>,
    %c1_234 = arith.constant 1 : index
    %c1_235 = arith.constant 1 : index
    %c0_236 = arith.constant 0 : index
    %153 = vector.load %arg9[%c1_234, %c1_235, %c0_236] : memref<10x10x32xf32, #tpu.memory_space<vmem>>, vector<8x8x32xf32>
    %154 = vector.shape_cast %153 : vector<8x8x32xf32> to vector<64x32xf32>
    %c0_237 = arith.constant 0 : index
    %c128_238 = arith.constant 128 : index
    %155 = vector.load %arg11[%c0_237, %c128_238] : memref<64x288xf32, #tpu.memory_space<vmem>>, vector<64x32xf32>
    tpu.vector_store %arg11[%c0_237, %c128_238], %154 {strides = array<i32>} : memref<64x288xf32, #tpu.memory_space<vmem>>, vector<64x32xf32>,
    %c1_239 = arith.constant 1 : index
    %c2_240 = arith.constant 2 : index
    %c0_241 = arith.constant 0 : index
    %156 = vector.load %arg9[%c1_239, %c2_240, %c0_241] : memref<10x10x32xf32, #tpu.memory_space<vmem>>, vector<8x8x32xf32>
    %157 = vector.shape_cast %156 : vector<8x8x32xf32> to vector<64x32xf32>
    %c0_242 = arith.constant 0 : index
    %c160_243 = arith.constant 160 : index
    %158 = vector.load %arg11[%c0_242, %c160_243] : memref<64x288xf32, #tpu.memory_space<vmem>>, vector<64x32xf32>
    tpu.vector_store %arg11[%c0_242, %c160_243], %157 {strides = array<i32>} : memref<64x288xf32, #tpu.memory_space<vmem>>, vector<64x32xf32>,
    %c2_244 = arith.constant 2 : index
    %c0_245 = arith.constant 0 : index
    %c0_246 = arith.constant 0 : index
    %159 = vector.load %arg9[%c2_244, %c0_245, %c0_246] : memref<10x10x32xf32, #tpu.memory_space<vmem>>, vector<8x8x32xf32>
    %160 = vector.shape_cast %159 : vector<8x8x32xf32> to vector<64x32xf32>
    %c0_247 = arith.constant 0 : index
    %c192_248 = arith.constant 192 : index
    %161 = vector.load %arg11[%c0_247, %c192_248] : memref<64x288xf32, #tpu.memory_space<vmem>>, vector<64x32xf32>
    tpu.vector_store %arg11[%c0_247, %c192_248], %160 {strides = array<i32>} : memref<64x288xf32, #tpu.memory_space<vmem>>, vector<64x32xf32>,
    %c2_249 = arith.constant 2 : index
    %c1_250 = arith.constant 1 : index
    %c0_251 = arith.constant 0 : index
    %162 = vector.load %arg9[%c2_249, %c1_250, %c0_251] : memref<10x10x32xf32, #tpu.memory_space<vmem>>, vector<8x8x32xf32>
    %163 = vector.shape_cast %162 : vector<8x8x32xf32> to vector<64x32xf32>
    %c0_252 = arith.constant 0 : index
    %c224_253 = arith.constant 224 : index
    %164 = vector.load %arg11[%c0_252, %c224_253] : memref<64x288xf32, #tpu.memory_space<vmem>>, vector<64x32xf32>
    tpu.vector_store %arg11[%c0_252, %c224_253], %163 {strides = array<i32>} : memref<64x288xf32, #tpu.memory_space<vmem>>, vector<64x32xf32>,
    %c2_254 = arith.constant 2 : index
    %c2_255 = arith.constant 2 : index
    %c0_256 = arith.constant 0 : index
    %165 = vector.load %arg9[%c2_254, %c2_255, %c0_256] : memref<10x10x32xf32, #tpu.memory_space<vmem>>, vector<8x8x32xf32>
    %166 = vector.shape_cast %165 : vector<8x8x32xf32> to vector<64x32xf32>
    %c0_257 = arith.constant 0 : index
    %c256_258 = arith.constant 256 : index
    %167 = vector.load %arg11[%c0_257, %c256_258] : memref<64x288xf32, #tpu.memory_space<vmem>>, vector<64x32xf32>
    tpu.vector_store %arg11[%c0_257, %c256_258], %166 {strides = array<i32>} : memref<64x288xf32, #tpu.memory_space<vmem>>, vector<64x32xf32>,
    %c0_259 = arith.constant 0 : index
    %c0_260 = arith.constant 0 : index
    %168 = vector.load %arg11[%c0_259, %c0_260] : memref<64x288xf32, #tpu.memory_space<vmem>>, vector<64x288xf32>
    %cst_261 = arith.constant dense<0.000000e+00> : vector<64x32xf32>
    %169 = tpu.matmul %168, %138, %cst_261 {dimension_numbers = #tpu.dot_dimension_numbers<[1], [0], [0], [1], [0, 0, 1, 1], [], []>} : vector<64x288xf32>, vector<288x32xf32>, vector<64x32xf32> -> vector<64x32xf32>
    %170 = vector.broadcast %140 : vector<1x32xf32> to vector<64x32xf32>
    %171 = arith.addf %169, %170 : vector<64x32xf32>
    %cst_262 = arith.constant 0.000000e+00 : f32
    %172 = vector.broadcast %cst_262 : f32 to vector<64x32xf32>
    %173 = arith.maximumf %171, %172 : vector<64x32xf32>
    %174 = vector.shape_cast %173 : vector<64x32xf32> to vector<8x8x32xf32>
    %c1_263 = arith.constant 1 : index
    %c1_264 = arith.constant 1 : index
    %c0_265 = arith.constant 0 : index
    %175 = vector.load %arg10[%c1_263, %c1_264, %c0_265] : memref<10x10x32xf32, #tpu.memory_space<vmem>>, vector<8x8x32xf32>
    tpu.vector_store %arg10[%c1_263, %c1_264, %c0_265], %174 {strides = array<i32>} : memref<10x10x32xf32, #tpu.memory_space<vmem>>, vector<8x8x32xf32>,
    %c0_266 = arith.constant 0 : index
    %c0_267 = arith.constant 0 : index
    %176 = vector.load %arg4[%c0_266, %c0_267] : memref<288x128xf32, #tpu.memory_space<vmem>>, vector<288x128xf32>
    %c0_268 = arith.constant 0 : index
    %c0_269 = arith.constant 0 : index
    %177 = vector.load %arg6[%c0_268, %c0_269] : memref<1x128xf32, #tpu.memory_space<vmem>>, vector<1x128xf32>
    %c0_270 = arith.constant 0 : index
    %c0_271 = arith.constant 0 : index
    %c0_272 = arith.constant 0 : index
    %178 = vector.load %arg10[%c0_270, %c0_271, %c0_272] : memref<10x10x32xf32, #tpu.memory_space<vmem>>, vector<8x8x32xf32>
    %179 = vector.shape_cast %178 : vector<8x8x32xf32> to vector<64x32xf32>
    %c0_273 = arith.constant 0 : index
    %c0_274 = arith.constant 0 : index
    %180 = vector.load %arg11[%c0_273, %c0_274] : memref<64x288xf32, #tpu.memory_space<vmem>>, vector<64x32xf32>
    tpu.vector_store %arg11[%c0_273, %c0_274], %179 {strides = array<i32>} : memref<64x288xf32, #tpu.memory_space<vmem>>, vector<64x32xf32>,
    %c0_275 = arith.constant 0 : index
    %c1_276 = arith.constant 1 : index
    %c0_277 = arith.constant 0 : index
    %181 = vector.load %arg10[%c0_275, %c1_276, %c0_277] : memref<10x10x32xf32, #tpu.memory_space<vmem>>, vector<8x8x32xf32>
    %182 = vector.shape_cast %181 : vector<8x8x32xf32> to vector<64x32xf32>
    %c0_278 = arith.constant 0 : index
    %c32_279 = arith.constant 32 : index
    %183 = vector.load %arg11[%c0_278, %c32_279] : memref<64x288xf32, #tpu.memory_space<vmem>>, vector<64x32xf32>
    tpu.vector_store %arg11[%c0_278, %c32_279], %182 {strides = array<i32>} : memref<64x288xf32, #tpu.memory_space<vmem>>, vector<64x32xf32>,
    %c0_280 = arith.constant 0 : index
    %c2_281 = arith.constant 2 : index
    %c0_282 = arith.constant 0 : index
    %184 = vector.load %arg10[%c0_280, %c2_281, %c0_282] : memref<10x10x32xf32, #tpu.memory_space<vmem>>, vector<8x8x32xf32>
    %185 = vector.shape_cast %184 : vector<8x8x32xf32> to vector<64x32xf32>
    %c0_283 = arith.constant 0 : index
    %c64_284 = arith.constant 64 : index
    %186 = vector.load %arg11[%c0_283, %c64_284] : memref<64x288xf32, #tpu.memory_space<vmem>>, vector<64x32xf32>
    tpu.vector_store %arg11[%c0_283, %c64_284], %185 {strides = array<i32>} : memref<64x288xf32, #tpu.memory_space<vmem>>, vector<64x32xf32>,
    %c1_285 = arith.constant 1 : index
    %c0_286 = arith.constant 0 : index
    %c0_287 = arith.constant 0 : index
    %187 = vector.load %arg10[%c1_285, %c0_286, %c0_287] : memref<10x10x32xf32, #tpu.memory_space<vmem>>, vector<8x8x32xf32>
    %188 = vector.shape_cast %187 : vector<8x8x32xf32> to vector<64x32xf32>
    %c0_288 = arith.constant 0 : index
    %c96_289 = arith.constant 96 : index
    %189 = vector.load %arg11[%c0_288, %c96_289] : memref<64x288xf32, #tpu.memory_space<vmem>>, vector<64x32xf32>
    tpu.vector_store %arg11[%c0_288, %c96_289], %188 {strides = array<i32>} : memref<64x288xf32, #tpu.memory_space<vmem>>, vector<64x32xf32>,
    %c1_290 = arith.constant 1 : index
    %c1_291 = arith.constant 1 : index
    %c0_292 = arith.constant 0 : index
    %190 = vector.load %arg10[%c1_290, %c1_291, %c0_292] : memref<10x10x32xf32, #tpu.memory_space<vmem>>, vector<8x8x32xf32>
    %191 = vector.shape_cast %190 : vector<8x8x32xf32> to vector<64x32xf32>
    %c0_293 = arith.constant 0 : index
    %c128_294 = arith.constant 128 : index
    %192 = vector.load %arg11[%c0_293, %c128_294] : memref<64x288xf32, #tpu.memory_space<vmem>>, vector<64x32xf32>
    tpu.vector_store %arg11[%c0_293, %c128_294], %191 {strides = array<i32>} : memref<64x288xf32, #tpu.memory_space<vmem>>, vector<64x32xf32>,
    %c1_295 = arith.constant 1 : index
    %c2_296 = arith.constant 2 : index
    %c0_297 = arith.constant 0 : index
    %193 = vector.load %arg10[%c1_295, %c2_296, %c0_297] : memref<10x10x32xf32, #tpu.memory_space<vmem>>, vector<8x8x32xf32>
    %194 = vector.shape_cast %193 : vector<8x8x32xf32> to vector<64x32xf32>
    %c0_298 = arith.constant 0 : index
    %c160_299 = arith.constant 160 : index
    %195 = vector.load %arg11[%c0_298, %c160_299] : memref<64x288xf32, #tpu.memory_space<vmem>>, vector<64x32xf32>
    tpu.vector_store %arg11[%c0_298, %c160_299], %194 {strides = array<i32>} : memref<64x288xf32, #tpu.memory_space<vmem>>, vector<64x32xf32>,
    %c2_300 = arith.constant 2 : index
    %c0_301 = arith.constant 0 : index
    %c0_302 = arith.constant 0 : index
    %196 = vector.load %arg10[%c2_300, %c0_301, %c0_302] : memref<10x10x32xf32, #tpu.memory_space<vmem>>, vector<8x8x32xf32>
    %197 = vector.shape_cast %196 : vector<8x8x32xf32> to vector<64x32xf32>
    %c0_303 = arith.constant 0 : index
    %c192_304 = arith.constant 192 : index
    %198 = vector.load %arg11[%c0_303, %c192_304] : memref<64x288xf32, #tpu.memory_space<vmem>>, vector<64x32xf32>
    tpu.vector_store %arg11[%c0_303, %c192_304], %197 {strides = array<i32>} : memref<64x288xf32, #tpu.memory_space<vmem>>, vector<64x32xf32>,
    %c2_305 = arith.constant 2 : index
    %c1_306 = arith.constant 1 : index
    %c0_307 = arith.constant 0 : index
    %199 = vector.load %arg10[%c2_305, %c1_306, %c0_307] : memref<10x10x32xf32, #tpu.memory_space<vmem>>, vector<8x8x32xf32>
    %200 = vector.shape_cast %199 : vector<8x8x32xf32> to vector<64x32xf32>
    %c0_308 = arith.constant 0 : index
    %c224_309 = arith.constant 224 : index
    %201 = vector.load %arg11[%c0_308, %c224_309] : memref<64x288xf32, #tpu.memory_space<vmem>>, vector<64x32xf32>
    tpu.vector_store %arg11[%c0_308, %c224_309], %200 {strides = array<i32>} : memref<64x288xf32, #tpu.memory_space<vmem>>, vector<64x32xf32>,
    %c2_310 = arith.constant 2 : index
    %c2_311 = arith.constant 2 : index
    %c0_312 = arith.constant 0 : index
    %202 = vector.load %arg10[%c2_310, %c2_311, %c0_312] : memref<10x10x32xf32, #tpu.memory_space<vmem>>, vector<8x8x32xf32>
    %203 = vector.shape_cast %202 : vector<8x8x32xf32> to vector<64x32xf32>
    %c0_313 = arith.constant 0 : index
    %c256_314 = arith.constant 256 : index
    %204 = vector.load %arg11[%c0_313, %c256_314] : memref<64x288xf32, #tpu.memory_space<vmem>>, vector<64x32xf32>
    tpu.vector_store %arg11[%c0_313, %c256_314], %203 {strides = array<i32>} : memref<64x288xf32, #tpu.memory_space<vmem>>, vector<64x32xf32>,
    %c0_315 = arith.constant 0 : index
    %c0_316 = arith.constant 0 : index
    %205 = vector.load %arg11[%c0_315, %c0_316] : memref<64x288xf32, #tpu.memory_space<vmem>>, vector<64x288xf32>
    %cst_317 = arith.constant dense<0.000000e+00> : vector<64x128xf32>
    %206 = tpu.matmul %205, %176, %cst_317 {dimension_numbers = #tpu.dot_dimension_numbers<[1], [0], [0], [1], [0, 0, 1, 1], [], []>} : vector<64x288xf32>, vector<288x128xf32>, vector<64x128xf32> -> vector<64x128xf32>
    %207 = vector.broadcast %177 : vector<1x128xf32> to vector<64x128xf32>
    %208 = arith.addf %206, %207 : vector<64x128xf32>
    %209 = vector.shape_cast %208 : vector<64x128xf32> to vector<1x64x128xf32>
    %c0_318 = arith.constant 0 : index
    %c0_319 = arith.constant 0 : index
    %c0_320 = arith.constant 0 : index
    %210 = vector.load %arg7[%c0_318, %c0_319, %c0_320] : memref<1x64x128xf32, #tpu.memory_space<vmem>>, vector<1x64x128xf32>
    tpu.vector_store %arg7[%c0_318, %c0_319, %c0_320], %209 {strides = array<i32>} : memref<1x64x128xf32, #tpu.memory_space<vmem>>, vector<1x64x128xf32>,
    return
  }
  func.func @transform_0(%arg0: i32) -> (i32, i32, i32, i32) {
    %c0_i32 = arith.constant 0 : i32
    %c0_i32_0 = arith.constant 0 : i32
    %c0_i32_1 = arith.constant 0 : i32
    %c0_i32_2 = arith.constant 0 : i32
    return %arg0, %c0_i32, %c0_i32_0, %c0_i32_1 : i32, i32, i32, i32
  }
  func.func @transform_1(%arg0: i32) -> (i32, i32) {
    %c0_i32 = arith.constant 0 : i32
    %c0_i32_0 = arith.constant 0 : i32
    %c0_i32_1 = arith.constant 0 : i32
    return %c0_i32, %c0_i32_0 : i32, i32
  }
  func.func @transform_2(%arg0: i32) -> (i32, i32, i32) {
    %c0_i32 = arith.constant 0 : i32
    %c0_i32_0 = arith.constant 0 : i32
    %c0_i32_1 = arith.constant 0 : i32
    %c0_i32_2 = arith.constant 0 : i32
    return %c0_i32, %c0_i32_0, %c0_i32_1 : i32, i32, i32
  }
  func.func @transform_3(%arg0: i32) -> (i32, i32) {
    %c0_i32 = arith.constant 0 : i32
    %c0_i32_0 = arith.constant 0 : i32
    %c0_i32_1 = arith.constant 0 : i32
    return %c0_i32, %c0_i32_0 : i32, i32
  }
  func.func @transform_4(%arg0: i32) -> (i32, i32, i32) {
    %c0_i32 = arith.constant 0 : i32
    %c0_i32_0 = arith.constant 0 : i32
    %c0_i32_1 = arith.constant 0 : i32
    %c0_i32_2 = arith.constant 0 : i32
    return %c0_i32, %c0_i32_0, %c0_i32_1 : i32, i32, i32
  }
  func.func @transform_5(%arg0: i32) -> (i32, i32) {
    %c0_i32 = arith.constant 0 : i32
    %c0_i32_0 = arith.constant 0 : i32
    %c0_i32_1 = arith.constant 0 : i32
    return %c0_i32, %c0_i32_0 : i32, i32
  }
  func.func @transform_6(%arg0: i32) -> (i32, i32, i32) {
    %c0_i32 = arith.constant 0 : i32
    %c0_i32_0 = arith.constant 0 : i32
    %c0_i32_1 = arith.constant 0 : i32
    return %arg0, %c0_i32, %c0_i32_0 : i32, i32, i32
  }
}

</mosaic_0001>

<llo_original>
// kernel: tpu_custom_call.1
$region0: #{tpu_custom_call.1}
  #allocation0 [shape = 'u32[]', space=smem, size = 0x4, offset = 0x4, fixed_abs, tag = 'smem constant byte address 0x4 - core index']
  #allocation1 [shape = 'u32[144,128]{1,0:T(1,128)}', space=vmem, size = 0x12000, scoped, tag = 'internal scratch']
  #allocation2 [shape = 'f32[10,10,32]{2,1,0:T(8,128)}', space=vmem, size = 0x14000, scoped, tag = 'scratch operand']
  #allocation3 [shape = 'f32[10,10,32]{2,1,0:T(8,128)}', space=vmem, size = 0x14000, scoped, tag = 'scratch operand']
  #allocation4 [shape = 'f32[10,10,32]{2,1,0:T(8,128)}', space=vmem, size = 0x14000, scoped, tag = 'scratch operand']
  #allocation5 [shape = 'f32[64,288]{1,0:T(8,128)}', space=vmem, size = 0x18000, scoped, tag = 'scratch operand']
  %s0 = inlined_call_operand.vmem [shape: f32[2,8,8,32], index: 0, kind: input, shape index: {}]
  %s1 = inlined_call_operand.vmem [shape: f32[288,32], index: 1, kind: input, shape index: {}]
  %s2 = inlined_call_operand.vmem [shape: f32[3,288,32], index: 2, kind: input, shape index: {}]
  %s3 = inlined_call_operand.vmem [shape: f32[288,128], index: 3, kind: input, shape index: {}]
  %s4 = inlined_call_operand.vmem [shape: f32[4,1,32], index: 4, kind: input, shape index: {}]
  %s5 = inlined_call_operand.vmem [shape: f32[1,128], index: 5, kind: input, shape index: {}]
  %s6 = inlined_call_operand.hbm [shape: f32[2,64,128], index: 6, kind: output, shape index: {}]
  %s7 = sld [smem:[#allocation0]]
  $region57: #{tpu_custom_call.1} parent=0
    _
  %s9 = ssub.s32 1, %s7
  %s10 = scalar_select 0, %s9, %s7
  $region1: #{tpu_custom_call.1} parent=0
    #allocation6 [shape = 'u8[65536]{0}', space=vmem, size = 0x10000, scoped, tag = 'output window, operand 0']
    #allocation7 [shape = 's32[2]{0}', space=sflag, size = 0x8, scoped, tag = 'scoped memory for tpu_custom_call.1']
    %11 = vsyncpa [#allocation7], 0
    %s12 = scalar_lea.sflag [#allocation7], 1
    %13 = vsyncpa %s12, 0
    loop: start=0, step=1, limit=4
    $region2: #{tpu_custom_call.1} parent=1 // loop_pre_header
      _
    $region3: #{tpu_custom_call.1} parent=1 // loop_header
      %s15 = sphi 0, %s19
      %p16 = scmp.ge.s32.totalorder %s15, 4
      %s25 = sphi 0, %s27
      %s28 = sphi 0, %s25
      %s29 = sphi 0, %s28
      %s45 = sphi 0, %s29
      %s49 = sphi 0, %s49
      %s51 = sphi 0, %s49
      %s52 = sphi 0, %s51
      %s66 = sphi 0, %s52
      %s70 = sphi 0, %s70
      %s72 = sphi 0, %s70
      %s73 = sphi 0, %s72
      %s87 = sphi 0, %s73
      %s91 = sphi 0, %s91
      %s93 = sphi 0, %s91
      %s94 = sphi 0, %s93
      %s108 = sphi 0, %s94
      %s112 = sphi 0, %s112
      %s114 = sphi 0, %s112
      %s115 = sphi 0, %s114
      %s129 = sphi 0, %s115
      %s133 = sphi 0, %s133
      %s135 = sphi 0, %s133
      %s136 = sphi 0, %s135
      %s150 = sphi 0, %s136
      %s156 = sphi 0, %s158
      %s159 = sphi 0, %s156
      %s160 = sphi 0, %s159
      %s176 = sphi 0, %s160
    $region4: #{tpu_custom_call.1} parent=1 // loop_header_branch
      %18 = sbr.rel (%p16) target = $region8
    $region5: #{tpu_custom_call.1} parent=1 // loop_body
      %s20 = ssub.s32 %s15, 1
      %s21 = ssub.s32 %s15, 2
      %s22 = sadd.s32 %s15, 1
      %s23 = ssub.s32 %s15, %s22
      %p24 = scmp.eq.s32.totalorder %s23, 0
      %s26 = sadd.s32 %s25, 1
      %s27 = scalar_select %p24, %s25, %s26
      %p30 = pneg %p24
      %p31 = scmp.eq.s32.totalorder %s15, 1
      %p32 = por %p30, %p31
      %p33 = scmp.ne.s32.totalorder %s25, %s28
      %p34 = scmp.eq.s32.totalorder %s15, 0
      %p35 = por %p33, %p34
      %p36 = scmp.ne.s32.totalorder %s25, %s28
      %p37 = scmp.eq.s32.totalorder %s20, 1
      %p38 = por %p36, %p37
      %p39 = scmp.ne.s32.totalorder %s28, %s29
      %p40 = scmp.eq.s32.totalorder %s20, 0
      %p41 = por %p39, %p40
      %p42 = scmp.ne.s32.totalorder %s28, %s29
      %p43 = scmp.eq.s32.totalorder %s21, 1
      %p44 = por %p42, %p43
      %p46 = scmp.ne.s32.totalorder %s29, %s45
      %p47 = scmp.eq.s32.totalorder %s21, 0
      %p48 = por %p46, %p47
      %s50 = sadd.s32 %s49, 1
      %p53 = scmp.eq.s32.totalorder %s15, 1
      %p54 = scmp.ne.s32.totalorder %s49, %s51
      %p55 = scmp.eq.s32.totalorder %s15, 0
      %p56 = por %p54, %p55
      %p57 = scmp.ne.s32.totalorder %s49, %s51
      %p58 = scmp.eq.s32.totalorder %s20, 1
      %p59 = por %p57, %p58
      %p60 = scmp.ne.s32.totalorder %s51, %s52
      %p61 = scmp.eq.s32.totalorder %s20, 0
      %p62 = por %p60, %p61
      %p63 = scmp.ne.s32.totalorder %s51, %s52
      %p64 = scmp.eq.s32.totalorder %s21, 1
      %p65 = por %p63, %p64
      %p67 = scmp.ne.s32.totalorder %s52, %s66
      %p68 = scmp.eq.s32.totalorder %s21, 0
      %p69 = por %p67, %p68
      %s71 = sadd.s32 %s70, 1
      %p74 = scmp.eq.s32.totalorder %s15, 1
      %p75 = scmp.ne.s32.totalorder %s70, %s72
      %p76 = scmp.eq.s32.totalorder %s15, 0
      %p77 = por %p75, %p76
      %p78 = scmp.ne.s32.totalorder %s70, %s72
      %p79 = scmp.eq.s32.totalorder %s20, 1
      %p80 = por %p78, %p79
      %p81 = scmp.ne.s32.totalorder %s72, %s73
      %p82 = scmp.eq.s32.totalorder %s20, 0
      %p83 = por %p81, %p82
      %p84 = scmp.ne.s32.totalorder %s72, %s73
      %p85 = scmp.eq.s32.totalorder %s21, 1
      %p86 = por %p84, %p85
      %p88 = scmp.ne.s32.totalorder %s73, %s87
      %p89 = scmp.eq.s32.totalorder %s21, 0
      %p90 = por %p88, %p89
      %s92 = sadd.s32 %s91, 1
      %p95 = scmp.eq.s32.totalorder %s15, 1
      %p96 = scmp.ne.s32.totalorder %s91, %s93
      %p97 = scmp.eq.s32.totalorder %s15, 0
      %p98 = por %p96, %p97
      %p99 = scmp.ne.s32.totalorder %s91, %s93
      %p100 = scmp.eq.s32.totalorder %s20, 1
      %p101 = por %p99, %p100
      %p102 = scmp.ne.s32.totalorder %s93, %s94
      %p103 = scmp.eq.s32.totalorder %s20, 0
      %p104 = por %p102, %p103
      %p105 = scmp.ne.s32.totalorder %s93, %s94
      %p106 = scmp.eq.s32.totalorder %s21, 1
      %p107 = por %p105, %p106
      %p109 = scmp.ne.s32.totalorder %s94, %s108
      %p110 = scmp.eq.s32.totalorder %s21, 0
      %p111 = por %p109, %p110
      %s113 = sadd.s32 %s112, 1
      %p116 = scmp.eq.s32.totalorder %s15, 1
      %p117 = scmp.ne.s32.totalorder %s112, %s114
      %p118 = scmp.eq.s32.totalorder %s15, 0
      %p119 = por %p117, %p118
      %p120 = scmp.ne.s32.totalorder %s112, %s114
      %p121 = scmp.eq.s32.totalorder %s20, 1
      %p122 = por %p120, %p121
      %p123 = scmp.ne.s32.totalorder %s114, %s115
      %p124 = scmp.eq.s32.totalorder %s20, 0
      %p125 = por %p123, %p124
      %p126 = scmp.ne.s32.totalorder %s114, %s115
      %p127 = scmp.eq.s32.totalorder %s21, 1
      %p128 = por %p126, %p127
      %p130 = scmp.ne.s32.totalorder %s115, %s129
      %p131 = scmp.eq.s32.totalorder %s21, 0
      %p132 = por %p130, %p131
      %s134 = sadd.s32 %s133, 1
      %p137 = scmp.eq.s32.totalorder %s15, 1
      %p138 = scmp.ne.s32.totalorder %s133, %s135
      %p139 = scmp.eq.s32.totalorder %s15, 0
      %p140 = por %p138, %p139
      %p141 = scmp.ne.s32.totalorder %s133, %s135
      %p142 = scmp.eq.s32.totalorder %s20, 1
      %p143 = por %p141, %p142
      %p144 = scmp.ne.s32.totalorder %s135, %s136
      %p145 = scmp.eq.s32.totalorder %s20, 0
      %p146 = por %p144, %p145
      %p147 = scmp.ne.s32.totalorder %s135, %s136
      %p148 = scmp.eq.s32.totalorder %s21, 1
      %p149 = por %p147, %p148
      %p151 = scmp.ne.s32.totalorder %s136, %s150
      %p152 = scmp.eq.s32.totalorder %s21, 0
      %p153 = por %p151, %p152
      %s154 = ssub.s32 %s15, %s22
      %p155 = scmp.eq.s32.totalorder %s154, 0
      %s157 = sadd.s32 %s156, 1
      %s158 = scalar_select %p155, %s156, %s157
      %p161 = pneg %p155
      %p162 = scmp.eq.s32.totalorder %s15, 1
      %p163 = por %p161, %p162
      %p164 = scmp.ne.s32.totalorder %s156, %s159
      %p165 = scmp.eq.s32.totalorder %s15, 0
      %p166 = por %p164, %p165
      %p167 = scmp.ne.s32.totalorder %s156, %s159
      %p168 = scmp.eq.s32.totalorder %s20, 1
      %p169 = por %p167, %p168
      %p170 = scmp.ne.s32.totalorder %s159, %s160
      %p171 = scmp.eq.s32.totalorder %s20, 0
      %p172 = por %p170, %p171
      %p173 = scmp.ne.s32.totalorder %s159, %s160
      %p174 = scmp.eq.s32.totalorder %s21, 1
      %p175 = por %p173, %p174
      %p177 = scmp.ne.s32.totalorder %s160, %s176
      %p178 = scmp.eq.s32.totalorder %s21, 0
      %p179 = por %p177, %p178
      %p180 = scmp.le.s32.totalorder 1, %s15
      %p181 = scmp.lt.s32.totalorder %s15, 3
      %p182 = pnand %p180, %p181
      %p183 = pneg %p182
      // Predicated region
      $region9: #{tpu_custom_call.1} parent=5 // pred_check
        _
      $region10: #{tpu_custom_call.1} parent=5 // pred_check_branch
        %185 = sbr.rel (%p182) target = $region12
      $region11: #{tpu_custom_call.1} parent=5 // pred_region
        %s186 = ssub.s32 %s15, 1
        // Predicated region
        $region13: #{tpu_custom_call.1} parent=11 // pred_check
          %p187 = pneg %p62
        $region14: #{tpu_custom_call.1} parent=11 // pred_check_branch
          %189 = sbr.rel (%p187) target = $region16
        $region15: #{tpu_custom_call.1} parent=11 // pred_region
          _
        $region16: #{tpu_custom_call.1} parent=11 // pred_fallthru
          _
        // Predicated region
        $region17: #{tpu_custom_call.1} parent=11 // pred_check
          %p190 = pneg %p83
        $region18: #{tpu_custom_call.1} parent=11 // pred_check_branch
          %192 = sbr.rel (%p190) target = $region20
        $region19: #{tpu_custom_call.1} parent=11 // pred_region
          _
        $region20: #{tpu_custom_call.1} parent=11 // pred_fallthru
          _
        // Predicated region
        $region21: #{tpu_custom_call.1} parent=11 // pred_check
          %p193 = pneg %p104
        $region22: #{tpu_custom_call.1} parent=11 // pred_check_branch
          %195 = sbr.rel (%p193) target = $region24
        $region23: #{tpu_custom_call.1} parent=11 // pred_region
          _
        $region24: #{tpu_custom_call.1} parent=11 // pred_fallthru
          _
        // Predicated region
        $region25: #{tpu_custom_call.1} parent=11 // pred_check
          %p196 = pneg %p125
        $region26: #{tpu_custom_call.1} parent=11 // pred_check_branch
          %198 = sbr.rel (%p196) target = $region28
        $region27: #{tpu_custom_call.1} parent=11 // pred_region
          _
        $region28: #{tpu_custom_call.1} parent=11 // pred_fallthru
          _
        // Predicated region
        $region29: #{tpu_custom_call.1} parent=11 // pred_check
          %p199 = pneg %p146
        $region30: #{tpu_custom_call.1} parent=11 // pred_check_branch
          %201 = sbr.rel (%p199) target = $region32
        $region31: #{tpu_custom_call.1} parent=11 // pred_region
          _
        $region32: #{tpu_custom_call.1} parent=11 // pred_fallthru
          _
      $region12: #{tpu_custom_call.1} parent=5 // pred_fallthru
        _
      %p202 = scmp.lt.s32.totalorder %s15, 2
      // Predicated region
      $region33: #{tpu_custom_call.1} parent=5 // pred_check
        %p203 = pneg %p202
      $region34: #{tpu_custom_call.1} parent=5 // pred_check_branch
        %205 = sbr.rel (%p203) target = $region36
      $region35: #{tpu_custom_call.1} parent=5 // pred_region
        // Predicated region
        $region37: #{tpu_custom_call.1} parent=35 // pred_check
          %p206 = pneg %p35
        $region38: #{tpu_custom_call.1} parent=35 // pred_check_branch
          %208 = sbr.rel (%p206) target = $region40
        $region39: #{tpu_custom_call.1} parent=35 // pred_region
          %p209 = scmp.lt.s32.totalorder %s15, 1
          %s210 = scalar_select %p209, %s15, 1
          %s211 = smul.addr %s210, 8
          %s212 = smul.addr %s211, 8
          %s213 = scalar_lea.vmem %s0, %s212
        $region40: #{tpu_custom_call.1} parent=35 // pred_fallthru
          _
      $region36: #{tpu_custom_call.1} parent=5 // pred_fallthru
        _
      %p214 = scmp.le.s32.totalorder 1, %s15
      %p215 = scmp.lt.s32.totalorder %s15, 3
      %p216 = pnand %p214, %p215
      %p217 = pneg %p216
      // Predicated region
      $region41: #{tpu_custom_call.1} parent=5 // pred_check
        _
      $region42: #{tpu_custom_call.1} parent=5 // pred_check_branch
        %219 = sbr.rel (%p216) target = $region44
      $region43: #{tpu_custom_call.1} parent=5 // pred_region
        %s220 = ssub.s32 %s15, 1
        %p221 = scmp.lt.s32.totalorder %s20, 1
        %s222 = scalar_select %p221, %s20, 1
        %s223 = smul.addr %s222, 8
        %s224 = smul.addr %s223, 8
        %s225 = scalar_lea.vmem %s0, %s224
        %p226 = pneg %p41
        %p227 = pneg %p38
        %p228 = pneg %p62
        %p229 = pneg %p59
        %p230 = pneg %p83
        %p231 = pneg %p80
        %p232 = pneg %p104
        %p233 = pneg %p101
        %p234 = pneg %p125
        %p235 = pneg %p122
        %p236 = pneg %p146
        %p237 = pneg %p143
        %p238 = pneg %p172
        %p239 = pneg %p169
        %s240 = sand.u32 %s159, 1
        %s241 = scalar_lea.sflag [#allocation7], %s240
        %s242 = sand.u32 %s159, 1
        %s243 = smul.addr %s242, 64
        %s244 = scalar_lea.vmem [#allocation6], %s243
        %p245 = scmp.lt.s32.totalorder %s20, 1
        %s246 = scalar_select %p245, %s20, 1
        %s247 = smul.addr %s246, 8
        %s248 = smul.addr %s247, 8
        %s249 = scalar_lea.vmem %s0, %s248
        %vm250 = vcmask 261120
        %251 = vst.msk [vmem:[#allocation2] sm:$0xff] %vm250, 0.0
        %vm252 = vcmask 254976
        %253 = vst.msk [vmem:[#allocation2 + $0x8] sm:$0x3] %vm252, 0.0
        %s254 = scalar_lea.vmem [#allocation2], 144
        %255 = vst.msk [vmem:[%s254] sm:$0xff] %vm250, 0.0
        %256 = vst.msk [vmem:[%s254 + $0x8] sm:$0x3] %vm252, 0.0
        %vm257 = vcmask 253952
        %258 = vst.msk [vmem:[#allocation2] sm:$0x1] %vm257, 0.0
        %259 = vst.msk [vmem:[#allocation2 + $0x10] sm:$0x1] %vm257, 0.0
        %260 = vst.msk [vmem:[#allocation2 + $0x20] sm:$0x1] %vm257, 0.0
        %261 = vst.msk [vmem:[#allocation2 + $0x30] sm:$0x1] %vm257, 0.0
        %262 = vst.msk [vmem:[#allocation2 + $0x40] sm:$0x1] %vm257, 0.0
        %263 = vst.msk [vmem:[#allocation2 + $0x50] sm:$0x1] %vm257, 0.0
        %264 = vst.msk [vmem:[#allocation2 + $0x60] sm:$0x1] %vm257, 0.0
        %265 = vst.msk [vmem:[#allocation2 + $0x70] sm:$0x1] %vm257, 0.0
        %266 = vst.msk [vmem:[#allocation2 + $0x80] sm:$0x1] %vm257, 0.0
        %267 = vst.msk [vmem:[#allocation2 + $0x90] sm:$0x1] %vm257, 0.0
        %268 = vst.msk [vmem:[#allocation2 + $0x9] sm:$0x1] %vm257, 0.0
        %269 = vst.msk [vmem:[#allocation2 + $0x19] sm:$0x1] %vm257, 0.0
        %270 = vst.msk [vmem:[#allocation2 + $0x29] sm:$0x1] %vm257, 0.0
        %271 = vst.msk [vmem:[#allocation2 + $0x39] sm:$0x1] %vm257, 0.0
        %272 = vst.msk [vmem:[#allocation2 + $0x49] sm:$0x1] %vm257, 0.0
        %273 = vst.msk [vmem:[#allocation2 + $0x59] sm:$0x1] %vm257, 0.0
        %274 = vst.msk [vmem:[#allocation2 + $0x69] sm:$0x1] %vm257, 0.0
        %275 = vst.msk [vmem:[#allocation2 + $0x79] sm:$0x1] %vm257, 0.0
        %276 = vst.msk [vmem:[#allocation2 + $0x89] sm:$0x1] %vm257, 0.0
        %277 = vst.msk [vmem:[#allocation2 + $0x99] sm:$0x1] %vm257, 0.0
        %278 = vst.msk [vmem:[#allocation3] sm:$0xff] %vm250, 0.0
        %279 = vst.msk [vmem:[#allocation3 + $0x8] sm:$0x3] %vm252, 0.0
        %s280 = scalar_lea.vmem [#allocation3], 144
        %281 = vst.msk [vmem:[%s280] sm:$0xff] %vm250, 0.0
        %282 = vst.msk [vmem:[%s280 + $0x8] sm:$0x3] %vm252, 0.0
        %283 = vst.msk [vmem:[#allocation3] sm:$0x1] %vm257, 0.0
        %284 = vst.msk [vmem:[#allocation3 + $0x10] sm:$0x1] %vm257, 0.0
        %285 = vst.msk [vmem:[#allocation3 + $0x20] sm:$0x1] %vm257, 0.0
        %286 = vst.msk [vmem:[#allocation3 + $0x30] sm:$0x1] %vm257, 0.0
        %287 = vst.msk [vmem:[#allocation3 + $0x40] sm:$0x1] %vm257, 0.0
        %288 = vst.msk [vmem:[#allocation3 + $0x50] sm:$0x1] %vm257, 0.0
        %289 = vst.msk [vmem:[#allocation3 + $0x60] sm:$0x1] %vm257, 0.0
        %290 = vst.msk [vmem:[#allocation3 + $0x70] sm:$0x1] %vm257, 0.0
        %291 = vst.msk [vmem:[#allocation3 + $0x80] sm:$0x1] %vm257, 0.0
        %292 = vst.msk [vmem:[#allocation3 + $0x90] sm:$0x1] %vm257, 0.0
        %293 = vst.msk [vmem:[#allocation3 + $0x9] sm:$0x1] %vm257, 0.0
        %294 = vst.msk [vmem:[#allocation3 + $0x19] sm:$0x1] %vm257, 0.0
        %295 = vst.msk [vmem:[#allocation3 + $0x29] sm:$0x1] %vm257, 0.0
        %296 = vst.msk [vmem:[#allocation3 + $0x39] sm:$0x1] %vm257, 0.0
        %297 = vst.msk [vmem:[#allocation3 + $0x49] sm:$0x1] %vm257, 0.0
        %298 = vst.msk [vmem:[#allocation3 + $0x59] sm:$0x1] %vm257, 0.0
        %299 = vst.msk [vmem:[#allocation3 + $0x69] sm:$0x1] %vm257, 0.0
        %300 = vst.msk [vmem:[#allocation3 + $0x79] sm:$0x1] %vm257, 0.0
        %301 = vst.msk [vmem:[#allocation3 + $0x89] sm:$0x1] %vm257, 0.0
        %302 = vst.msk [vmem:[#allocation3 + $0x99] sm:$0x1] %vm257, 0.0
        %303 = vst.msk [vmem:[#allocation4] sm:$0xff] %vm250, 0.0
        %304 = vst.msk [vmem:[#allocation4 + $0x8] sm:$0x3] %vm252, 0.0
        %s305 = scalar_lea.vmem [#allocation4], 144
        %306 = vst.msk [vmem:[%s305] sm:$0xff] %vm250, 0.0
        %307 = vst.msk [vmem:[%s305 + $0x8] sm:$0x3] %vm252, 0.0
        %308 = vst.msk [vmem:[#allocation4] sm:$0x1] %vm257, 0.0
        %309 = vst.msk [vmem:[#allocation4 + $0x10] sm:$0x1] %vm257, 0.0
        %310 = vst.msk [vmem:[#allocation4 + $0x20] sm:$0x1] %vm257, 0.0
        %311 = vst.msk [vmem:[#allocation4 + $0x30] sm:$0x1] %vm257, 0.0
        %312 = vst.msk [vmem:[#allocation4 + $0x40] sm:$0x1] %vm257, 0.0
        %313 = vst.msk [vmem:[#allocation4 + $0x50] sm:$0x1] %vm257, 0.0
        %314 = vst.msk [vmem:[#allocation4 + $0x60] sm:$0x1] %vm257, 0.0
        %315 = vst.msk [vmem:[#allocation4 + $0x70] sm:$0x1] %vm257, 0.0
        %316 = vst.msk [vmem:[#allocation4 + $0x80] sm:$0x1] %vm257, 0.0
        %317 = vst.msk [vmem:[#allocation4 + $0x90] sm:$0x1] %vm257, 0.0
        %318 = vst.msk [vmem:[#allocation4 + $0x9] sm:$0x1] %vm257, 0.0
        %319 = vst.msk [vmem:[#allocation4 + $0x19] sm:$0x1] %vm257, 0.0
        %320 = vst.msk [vmem:[#allocation4 + $0x29] sm:$0x1] %vm257, 0.0
        %321 = vst.msk [vmem:[#allocation4 + $0x39] sm:$0x1] %vm257, 0.0
        %322 = vst.msk [vmem:[#allocation4 + $0x49] sm:$0x1] %vm257, 0.0
        %323 = vst.msk [vmem:[#allocation4 + $0x59] sm:$0x1] %vm257, 0.0
        %324 = vst.msk [vmem:[#allocation4 + $0x69] sm:$0x1] %vm257, 0.0
        %325 = vst.msk [vmem:[#allocation4 + $0x79] sm:$0x1] %vm257, 0.0
        %326 = vst.msk [vmem:[#allocation4 + $0x89] sm:$0x1] %vm257, 0.0
        %327 = vst.msk [vmem:[#allocation4 + $0x99] sm:$0x1] %vm257, 0.0
        %v328 = vld [vmem:[%s249] sm:$0xff]
        %v329 = vld [vmem:[%s249 + $0x8] sm:$0xff]
        %v330 = vld [vmem:[%s249 + $0x10] sm:$0xff]
        %v331 = vld [vmem:[%s249 + $0x18] sm:$0xff]
        %v332 = vld [vmem:[%s249 + $0x20] sm:$0xff]
        %v333 = vld [vmem:[%s249 + $0x28] sm:$0xff]
        %v334 = vld [vmem:[%s249 + $0x30] sm:$0xff]
        %v335 = vld [vmem:[%s249 + $0x38] sm:$0xff]
        %s336 = scalar_lea.vmem [#allocation2], 16
        %337 = vst.msk [vmem:[%s336 + $0x1] sm:$0xff] %vm250, %v328
        %338 = vst.msk [vmem:[%s336 + $0x11] sm:$0xff] %vm250, %v329
        %339 = vst.msk [vmem:[%s336 + $0x21] sm:$0xff] %vm250, %v330
        %340 = vst.msk [vmem:[%s336 + $0x31] sm:$0xff] %vm250, %v331
        %341 = vst.msk [vmem:[%s336 + $0x41] sm:$0xff] %vm250, %v332
        %342 = vst.msk [vmem:[%s336 + $0x51] sm:$0xff] %vm250, %v333
        %343 = vst.msk [vmem:[%s336 + $0x61] sm:$0xff] %vm250, %v334
        %344 = vst.msk [vmem:[%s336 + $0x71] sm:$0xff] %vm250, %v335
        %v345 = vld [vmem:[%s1] sm:$0xff]
        %v346 = vld [vmem:[%s1 + $0x8] sm:$0xff]
        %v347 = vld [vmem:[%s1 + $0x10] sm:$0xff]
        %v348 = vld [vmem:[%s1 + $0x18] sm:$0xff]
        %v349 = vld [vmem:[%s1 + $0x20] sm:$0xff]
        %v350 = vld [vmem:[%s1 + $0x28] sm:$0xff]
        %v351 = vld [vmem:[%s1 + $0x30] sm:$0xff]
        %v352 = vld [vmem:[%s1 + $0x38] sm:$0xff]
        %v353 = vld [vmem:[%s1 + $0x40] sm:$0xff]
        %v354 = vld [vmem:[%s1 + $0x48] sm:$0xff]
        %v355 = vld [vmem:[%s1 + $0x50] sm:$0xff]
        %v356 = vld [vmem:[%s1 + $0x58] sm:$0xff]
        %v357 = vld [vmem:[%s1 + $0x60] sm:$0xff]
        %v358 = vld [vmem:[%s1 + $0x68] sm:$0xff]
        %v359 = vld [vmem:[%s1 + $0x70] sm:$0xff]
        %v360 = vld [vmem:[%s1 + $0x78] sm:$0xff]
        %v361 = vld [vmem:[%s1 + $0x80] sm:$0xff]
        %v362 = vld [vmem:[%s1 + $0x88] sm:$0xff]
        %v363 = vld [vmem:[%s1 + $0x90] sm:$0xff]
        %v364 = vld [vmem:[%s1 + $0x98] sm:$0xff]
        %v365 = vld [vmem:[%s1 + $0xa0] sm:$0xff]
        %v366 = vld [vmem:[%s1 + $0xa8] sm:$0xff]
        %v367 = vld [vmem:[%s1 + $0xb0] sm:$0xff]
        %v368 = vld [vmem:[%s1 + $0xb8] sm:$0xff]
        %v369 = vld [vmem:[%s1 + $0xc0] sm:$0xff]
        %v370 = vld [vmem:[%s1 + $0xc8] sm:$0xff]
        %v371 = vld [vmem:[%s1 + $0xd0] sm:$0xff]
        %v372 = vld [vmem:[%s1 + $0xd8] sm:$0xff]
        %v373 = vld [vmem:[%s1 + $0xe0] sm:$0xff]
        %v374 = vld [vmem:[%s1 + $0xe8] sm:$0xff]
        %v375 = vld [vmem:[%s1 + $0xf0] sm:$0xff]
        %v376 = vld [vmem:[%s1 + $0xf8] sm:$0xff]
        %v377 = vld [vmem:[%s1 + $0x100] sm:$0xff]
        %v378 = vld [vmem:[%s1 + $0x108] sm:$0xff]
        %v379 = vld [vmem:[%s1 + $0x110] sm:$0xff]
        %v380 = vld [vmem:[%s1 + $0x118] sm:$0xff]
        %v381 = vld [vmem:[%s4] sm:$0x1]
        %v382 = vld [vmem:[#allocation2] sm:$0xff]
        %v383 = vld [vmem:[#allocation2 + $0x10] sm:$0xff]
        %v384 = vld [vmem:[#allocation2 + $0x20] sm:$0xff]
        %v385 = vld [vmem:[#allocation2 + $0x30] sm:$0xff]
        %v386 = vld [vmem:[#allocation2 + $0x40] sm:$0xff]
        %v387 = vld [vmem:[#allocation2 + $0x50] sm:$0xff]
        %v388 = vld [vmem:[#allocation2 + $0x60] sm:$0xff]
        %v389 = vld [vmem:[#allocation2 + $0x70] sm:$0xff]
        %390 = vst.msk [vmem:[#allocation5] sm:$0xff] %vm250, %v382
        %391 = vst.msk [vmem:[#allocation5 + $0x18] sm:$0xff] %vm250, %v383
        %392 = vst.msk [vmem:[#allocation5 + $0x30] sm:$0xff] %vm250, %v384
        %393 = vst.msk [vmem:[#allocation5 + $0x48] sm:$0xff] %vm250, %v385
        %394 = vst.msk [vmem:[#allocation5 + $0x60] sm:$0xff] %vm250, %v386
        %395 = vst.msk [vmem:[#allocation5 + $0x78] sm:$0xff] %vm250, %v387
        %396 = vst.msk [vmem:[#allocation5 + $0x90] sm:$0xff] %vm250, %v388
        %397 = vst.msk [vmem:[#allocation5 + $0xa8] sm:$0xff] %vm250, %v389
        %v398 = vld [vmem:[#allocation2 + $0x1] sm:$0xff]
        %v399 = vld [vmem:[#allocation2 + $0x11] sm:$0xff]
        %v400 = vld [vmem:[#allocation2 + $0x21] sm:$0xff]
        %v401 = vld [vmem:[#allocation2 + $0x31] sm:$0xff]
        %v402 = vld [vmem:[#allocation2 + $0x41] sm:$0xff]
        %v403 = vld [vmem:[#allocation2 + $0x51] sm:$0xff]
        %v404 = vld [vmem:[#allocation2 + $0x61] sm:$0xff]
        %v405 = vld [vmem:[#allocation2 + $0x71] sm:$0xff]
        %414 = vrot.lane.b32.xlu0 %v398, 32
        %v415 = vpop.permute.xlu0 %414
        %416 = vrot.lane.b32.xlu0 %v399, 32
        %v417 = vpop.permute.xlu0 %416
        %418 = vrot.lane.b32.xlu0 %v400, 32
        %v419 = vpop.permute.xlu0 %418
        %420 = vrot.lane.b32.xlu0 %v401, 32
        %v421 = vpop.permute.xlu0 %420
        %422 = vrot.lane.b32.xlu0 %v402, 32
        %v423 = vpop.permute.xlu0 %422
        %424 = vrot.lane.b32.xlu0 %v403, 32
        %v425 = vpop.permute.xlu0 %424
        %426 = vrot.lane.b32.xlu0 %v404, 32
        %v427 = vpop.permute.xlu0 %426
        %428 = vrot.lane.b32.xlu0 %v405, 32
        %v429 = vpop.permute.xlu0 %428
        %vm438 = vcmask 523520
        %439 = vst.msk [vmem:[#allocation5] sm:$0xff] %vm438, %v415
        %440 = vst.msk [vmem:[#allocation5 + $0x18] sm:$0xff] %vm438, %v417
        %441 = vst.msk [vmem:[#allocation5 + $0x30] sm:$0xff] %vm438, %v419
        %442 = vst.msk [vmem:[#allocation5 + $0x48] sm:$0xff] %vm438, %v421
        %443 = vst.msk [vmem:[#allocation5 + $0x60] sm:$0xff] %vm438, %v423
        %444 = vst.msk [vmem:[#allocation5 + $0x78] sm:$0xff] %vm438, %v425
        %445 = vst.msk [vmem:[#allocation5 + $0x90] sm:$0xff] %vm438, %v427
        %446 = vst.msk [vmem:[#allocation5 + $0xa8] sm:$0xff] %vm438, %v429
        %v447 = vld [vmem:[#allocation2 + $0x2] sm:$0xff]
        %v448 = vld [vmem:[#allocation2 + $0x12] sm:$0xff]
        %v449 = vld [vmem:[#allocation2 + $0x22] sm:$0xff]
        %v450 = vld [vmem:[#allocation2 + $0x32] sm:$0xff]
        %v451 = vld [vmem:[#allocation2 + $0x42] sm:$0xff]
        %v452 = vld [vmem:[#allocation2 + $0x52] sm:$0xff]
        %v453 = vld [vmem:[#allocation2 + $0x62] sm:$0xff]
        %v454 = vld [vmem:[#allocation2 + $0x72] sm:$0xff]
        %463 = vrot.lane.b32.xlu0 %v447, 64
        %v464 = vpop.permute.xlu0 %463
        %465 = vrot.lane.b32.xlu0 %v448, 64
        %v466 = vpop.permute.xlu0 %465
        %467 = vrot.lane.b32.xlu0 %v449, 64
        %v468 = vpop.permute.xlu0 %467
        %469 = vrot.lane.b32.xlu0 %v450, 64
        %v470 = vpop.permute.xlu0 %469
        %471 = vrot.lane.b32.xlu0 %v451, 64
        %v472 = vpop.permute.xlu0 %471
        %473 = vrot.lane.b32.xlu0 %v452, 64
        %v474 = vpop.permute.xlu0 %473
        %475 = vrot.lane.b32.xlu0 %v453, 64
        %v476 = vpop.permute.xlu0 %475
        %477 = vrot.lane.b32.xlu0 %v454, 64
        %v478 = vpop.permute.xlu0 %477
        %vm487 = vcmask 785920
        %488 = vst.msk [vmem:[#allocation5] sm:$0xff] %vm487, %v464
        %489 = vst.msk [vmem:[#allocation5 + $0x18] sm:$0xff] %vm487, %v466
        %490 = vst.msk [vmem:[#allocation5 + $0x30] sm:$0xff] %vm487, %v468
        %491 = vst.msk [vmem:[#allocation5 + $0x48] sm:$0xff] %vm487, %v470
        %492 = vst.msk [vmem:[#allocation5 + $0x60] sm:$0xff] %vm487, %v472
        %493 = vst.msk [vmem:[#allocation5 + $0x78] sm:$0xff] %vm487, %v474
        %494 = vst.msk [vmem:[#allocation5 + $0x90] sm:$0xff] %vm487, %v476
        %495 = vst.msk [vmem:[#allocation5 + $0xa8] sm:$0xff] %vm487, %v478
        %v496 = vld [vmem:[%s336] sm:$0xff]
        %v497 = vld [vmem:[%s336 + $0x10] sm:$0xff]
        %v498 = vld [vmem:[%s336 + $0x20] sm:$0xff]
        %v499 = vld [vmem:[%s336 + $0x30] sm:$0xff]
        %v500 = vld [vmem:[%s336 + $0x40] sm:$0xff]
        %v501 = vld [vmem:[%s336 + $0x50] sm:$0xff]
        %v502 = vld [vmem:[%s336 + $0x60] sm:$0xff]
        %v503 = vld [vmem:[%s336 + $0x70] sm:$0xff]
        %512 = vrot.lane.b32.xlu0 %v496, 96
        %v513 = vpop.permute.xlu0 %512
        %514 = vrot.lane.b32.xlu0 %v497, 96
        %v515 = vpop.permute.xlu0 %514
        %516 = vrot.lane.b32.xlu0 %v498, 96
        %v517 = vpop.permute.xlu0 %516
        %518 = vrot.lane.b32.xlu0 %v499, 96
        %v519 = vpop.permute.xlu0 %518
        %520 = vrot.lane.b32.xlu0 %v500, 96
        %v521 = vpop.permute.xlu0 %520
        %522 = vrot.lane.b32.xlu0 %v501, 96
        %v523 = vpop.permute.xlu0 %522
        %524 = vrot.lane.b32.xlu0 %v502, 96
        %v525 = vpop.permute.xlu0 %524
        %526 = vrot.lane.b32.xlu0 %v503, 96
        %v527 = vpop.permute.xlu0 %526
        %vm536 = vcmask 1048320
        %537 = vst.msk [vmem:[#allocation5] sm:$0xff] %vm536, %v513
        %538 = vst.msk [vmem:[#allocation5 + $0x18] sm:$0xff] %vm536, %v515
        %539 = vst.msk [vmem:[#allocation5 + $0x30] sm:$0xff] %vm536, %v517
        %540 = vst.msk [vmem:[#allocation5 + $0x48] sm:$0xff] %vm536, %v519
        %541 = vst.msk [vmem:[#allocation5 + $0x60] sm:$0xff] %vm536, %v521
        %542 = vst.msk [vmem:[#allocation5 + $0x78] sm:$0xff] %vm536, %v523
        %543 = vst.msk [vmem:[#allocation5 + $0x90] sm:$0xff] %vm536, %v525
        %544 = vst.msk [vmem:[#allocation5 + $0xa8] sm:$0xff] %vm536, %v527
        %v545 = vld [vmem:[%s336 + $0x1] sm:$0xff]
        %v546 = vld [vmem:[%s336 + $0x11] sm:$0xff]
        %v547 = vld [vmem:[%s336 + $0x21] sm:$0xff]
        %v548 = vld [vmem:[%s336 + $0x31] sm:$0xff]
        %v549 = vld [vmem:[%s336 + $0x41] sm:$0xff]
        %v550 = vld [vmem:[%s336 + $0x51] sm:$0xff]
        %v551 = vld [vmem:[%s336 + $0x61] sm:$0xff]
        %v552 = vld [vmem:[%s336 + $0x71] sm:$0xff]
        %553 = vst.msk [vmem:[#allocation5 + $0x8] sm:$0xff] %vm250, %v545
        %554 = vst.msk [vmem:[#allocation5 + $0x20] sm:$0xff] %vm250, %v546
        %555 = vst.msk [vmem:[#allocation5 + $0x38] sm:$0xff] %vm250, %v547
        %556 = vst.msk [vmem:[#allocation5 + $0x50] sm:$0xff] %vm250, %v548
        %557 = vst.msk [vmem:[#allocation5 + $0x68] sm:$0xff] %vm250, %v549
        %558 = vst.msk [vmem:[#allocation5 + $0x80] sm:$0xff] %vm250, %v550
        %559 = vst.msk [vmem:[#allocation5 + $0x98] sm:$0xff] %vm250, %v551
        %560 = vst.msk [vmem:[#allocation5 + $0xb0] sm:$0xff] %vm250, %v552
        %v561 = vld [vmem:[%s336 + $0x2] sm:$0xff]
        %v562 = vld [vmem:[%s336 + $0x12] sm:$0xff]
        %v563 = vld [vmem:[%s336 + $0x22] sm:$0xff]
        %v564 = vld [vmem:[%s336 + $0x32] sm:$0xff]
        %v565 = vld [vmem:[%s336 + $0x42] sm:$0xff]
        %v566 = vld [vmem:[%s336 + $0x52] sm:$0xff]
        %v567 = vld [vmem:[%s336 + $0x62] sm:$0xff]
        %v568 = vld [vmem:[%s336 + $0x72] sm:$0xff]
        %577 = vrot.lane.b32.xlu0 %v561, 32
        %v578 = vpop.permute.xlu0 %577
        %579 = vrot.lane.b32.xlu0 %v562, 32
        %v580 = vpop.permute.xlu0 %579
        %581 = vrot.lane.b32.xlu0 %v563, 32
        %v582 = vpop.permute.xlu0 %581
        %583 = vrot.lane.b32.xlu0 %v564, 32
        %v584 = vpop.permute.xlu0 %583
        %585 = vrot.lane.b32.xlu0 %v565, 32
        %v586 = vpop.permute.xlu0 %585
        %587 = vrot.lane.b32.xlu0 %v566, 32
        %v588 = vpop.permute.xlu0 %587
        %589 = vrot.lane.b32.xlu0 %v567, 32
        %v590 = vpop.permute.xlu0 %589
        %591 = vrot.lane.b32.xlu0 %v568, 32
        %v592 = vpop.permute.xlu0 %591
        %601 = vst.msk [vmem:[#allocation5 + $0x8] sm:$0xff] %vm438, %v578
        %602 = vst.msk [vmem:[#allocation5 + $0x20] sm:$0xff] %vm438, %v580
        %603 = vst.msk [vmem:[#allocation5 + $0x38] sm:$0xff] %vm438, %v582
        %604 = vst.msk [vmem:[#allocation5 + $0x50] sm:$0xff] %vm438, %v584
        %605 = vst.msk [vmem:[#allocation5 + $0x68] sm:$0xff] %vm438, %v586
        %606 = vst.msk [vmem:[#allocation5 + $0x80] sm:$0xff] %vm438, %v588
        %607 = vst.msk [vmem:[#allocation5 + $0x98] sm:$0xff] %vm438, %v590
        %608 = vst.msk [vmem:[#allocation5 + $0xb0] sm:$0xff] %vm438, %v592
        %s609 = scalar_lea.vmem [#allocation2], 32
        %v610 = vld [vmem:[%s609] sm:$0xff]
        %v611 = vld [vmem:[%s609 + $0x10] sm:$0xff]
        %v612 = vld [vmem:[%s609 + $0x20] sm:$0xff]
        %v613 = vld [vmem:[%s609 + $0x30] sm:$0xff]
        %v614 = vld [vmem:[%s609 + $0x40] sm:$0xff]
        %v615 = vld [vmem:[%s609 + $0x50] sm:$0xff]
        %v616 = vld [vmem:[%s609 + $0x60] sm:$0xff]
        %v617 = vld [vmem:[%s609 + $0x70] sm:$0xff]
        %626 = vrot.lane.b32.xlu0 %v610, 64
        %v627 = vpop.permute.xlu0 %626
        %628 = vrot.lane.b32.xlu0 %v611, 64
        %v629 = vpop.permute.xlu0 %628
        %630 = vrot.lane.b32.xlu0 %v612, 64
        %v631 = vpop.permute.xlu0 %630
        %632 = vrot.lane.b32.xlu0 %v613, 64
        %v633 = vpop.permute.xlu0 %632
        %634 = vrot.lane.b32.xlu0 %v614, 64
        %v635 = vpop.permute.xlu0 %634
        %636 = vrot.lane.b32.xlu0 %v615, 64
        %v637 = vpop.permute.xlu0 %636
        %638 = vrot.lane.b32.xlu0 %v616, 64
        %v639 = vpop.permute.xlu0 %638
        %640 = vrot.lane.b32.xlu0 %v617, 64
        %v641 = vpop.permute.xlu0 %640
        %650 = vst.msk [vmem:[#allocation5 + $0x8] sm:$0xff] %vm487, %v627
        %651 = vst.msk [vmem:[#allocation5 + $0x20] sm:$0xff] %vm487, %v629
        %652 = vst.msk [vmem:[#allocation5 + $0x38] sm:$0xff] %vm487, %v631
        %653 = vst.msk [vmem:[#allocation5 + $0x50] sm:$0xff] %vm487, %v633
        %654 = vst.msk [vmem:[#allocation5 + $0x68] sm:$0xff] %vm487, %v635
        %655 = vst.msk [vmem:[#allocation5 + $0x80] sm:$0xff] %vm487, %v637
        %656 = vst.msk [vmem:[#allocation5 + $0x98] sm:$0xff] %vm487, %v639
        %657 = vst.msk [vmem:[#allocation5 + $0xb0] sm:$0xff] %vm487, %v641
        %v658 = vld [vmem:[%s609 + $0x1] sm:$0xff]
        %v659 = vld [vmem:[%s609 + $0x11] sm:$0xff]
        %v660 = vld [vmem:[%s609 + $0x21] sm:$0xff]
        %v661 = vld [vmem:[%s609 + $0x31] sm:$0xff]
        %v662 = vld [vmem:[%s609 + $0x41] sm:$0xff]
        %v663 = vld [vmem:[%s609 + $0x51] sm:$0xff]
        %v664 = vld [vmem:[%s609 + $0x61] sm:$0xff]
        %v665 = vld [vmem:[%s609 + $0x71] sm:$0xff]
        %674 = vrot.lane.b32.xlu0 %v658, 96
        %v675 = vpop.permute.xlu0 %674
        %676 = vrot.lane.b32.xlu0 %v659, 96
        %v677 = vpop.permute.xlu0 %676
        %678 = vrot.lane.b32.xlu0 %v660, 96
        %v679 = vpop.permute.xlu0 %678
        %680 = vrot.lane.b32.xlu0 %v661, 96
        %v681 = vpop.permute.xlu0 %680
        %682 = vrot.lane.b32.xlu0 %v662, 96
        %v683 = vpop.permute.xlu0 %682
        %684 = vrot.lane.b32.xlu0 %v663, 96
        %v685 = vpop.permute.xlu0 %684
        %686 = vrot.lane.b32.xlu0 %v664, 96
        %v687 = vpop.permute.xlu0 %686
        %688 = vrot.lane.b32.xlu0 %v665, 96
        %v689 = vpop.permute.xlu0 %688
        %698 = vst.msk [vmem:[#allocation5 + $0x8] sm:$0xff] %vm536, %v675
        %699 = vst.msk [vmem:[#allocation5 + $0x20] sm:$0xff] %vm536, %v677
        %700 = vst.msk [vmem:[#allocation5 + $0x38] sm:$0xff] %vm536, %v679
        %701 = vst.msk [vmem:[#allocation5 + $0x50] sm:$0xff] %vm536, %v681
        %702 = vst.msk [vmem:[#allocation5 + $0x68] sm:$0xff] %vm536, %v683
        %703 = vst.msk [vmem:[#allocation5 + $0x80] sm:$0xff] %vm536, %v685
        %704 = vst.msk [vmem:[#allocation5 + $0x98] sm:$0xff] %vm536, %v687
        %705 = vst.msk [vmem:[#allocation5 + $0xb0] sm:$0xff] %vm536, %v689
        %v706 = vld [vmem:[%s609 + $0x2] sm:$0xff]
        %v707 = vld [vmem:[%s609 + $0x12] sm:$0xff]
        %v708 = vld [vmem:[%s609 + $0x22] sm:$0xff]
        %v709 = vld [vmem:[%s609 + $0x32] sm:$0xff]
        %v710 = vld [vmem:[%s609 + $0x42] sm:$0xff]
        %v711 = vld [vmem:[%s609 + $0x52] sm:$0xff]
        %v712 = vld [vmem:[%s609 + $0x62] sm:$0xff]
        %v713 = vld [vmem:[%s609 + $0x72] sm:$0xff]
        %714 = vst.msk [vmem:[#allocation5 + $0x10] sm:$0xff] %vm250, %v706
        %715 = vst.msk [vmem:[#allocation5 + $0x28] sm:$0xff] %vm250, %v707
        %716 = vst.msk [vmem:[#allocation5 + $0x40] sm:$0xff] %vm250, %v708
        %717 = vst.msk [vmem:[#allocation5 + $0x58] sm:$0xff] %vm250, %v709
        %718 = vst.msk [vmem:[#allocation5 + $0x70] sm:$0xff] %vm250, %v710
        %719 = vst.msk [vmem:[#allocation5 + $0x88] sm:$0xff] %vm250, %v711
        %720 = vst.msk [vmem:[#allocation5 + $0xa0] sm:$0xff] %vm250, %v712
        %721 = vst.msk [vmem:[#allocation5 + $0xb8] sm:$0xff] %vm250, %v713
        %v722 = vld [vmem:[#allocation5] sm:$0xff]
        %v723 = vld [vmem:[#allocation5 + $0x8] sm:$0xff]
        %v724 = vld [vmem:[#allocation5 + $0x10] sm:$0xff]
        %v725 = vld [vmem:[#allocation5 + $0x18] sm:$0xff]
        %v726 = vld [vmem:[#allocation5 + $0x20] sm:$0xff]
        %v727 = vld [vmem:[#allocation5 + $0x28] sm:$0xff]
        %v728 = vld [vmem:[#allocation5 + $0x30] sm:$0xff]
        %v729 = vld [vmem:[#allocation5 + $0x38] sm:$0xff]
        %v730 = vld [vmem:[#allocation5 + $0x40] sm:$0xff]
        %v731 = vld [vmem:[#allocation5 + $0x48] sm:$0xff]
        %v732 = vld [vmem:[#allocation5 + $0x50] sm:$0xff]
        %v733 = vld [vmem:[#allocation5 + $0x58] sm:$0xff]
        %v734 = vld [vmem:[#allocation5 + $0x60] sm:$0xff]
        %v735 = vld [vmem:[#allocation5 + $0x68] sm:$0xff]
        %v736 = vld [vmem:[#allocation5 + $0x70] sm:$0xff]
        %v737 = vld [vmem:[#allocation5 + $0x78] sm:$0xff]
        %v738 = vld [vmem:[#allocation5 + $0x80] sm:$0xff]
        %v739 = vld [vmem:[#allocation5 + $0x88] sm:$0xff]
        %v740 = vld [vmem:[#allocation5 + $0x90] sm:$0xff]
        %v741 = vld [vmem:[#allocation5 + $0x98] sm:$0xff]
        %v742 = vld [vmem:[#allocation5 + $0xa0] sm:$0xff]
        %v743 = vld [vmem:[#allocation5 + $0xa8] sm:$0xff]
        %v744 = vld [vmem:[#allocation5 + $0xb0] sm:$0xff]
        %v745 = vld [vmem:[#allocation5 + $0xb8] sm:$0xff]
        %v747 = vlaneseq
        %v748 = vshrl.u32 %v747, 7
        %v749 = vsub.s32 0, %v748
        %v750 = vrot.slane %v381, %v749
        %v753 = vsel %vm250, %v724, 0
        %v756 = vsel %vm250, %v727, 0
        %v759 = vsel %vm250, %v730, 0
        %v762 = vsel %vm250, %v733, 0
        %v765 = vsel %vm250, %v736, 0
        %v768 = vsel %vm250, %v739, 0
        %v771 = vsel %vm250, %v742, 0
        %v774 = vsel %vm250, %v745, 0
        %776 = vmatprep.subr.mxu0 0.0
        %777 = vmatpush1.msra.mxu0 %v345
        %778 = vmatprep.subr.mxu0 0.0
        %779 = vmatpush1.msra.mxu0 %v346
        %780 = vmatprep.subr.mxu0 0.0
        %781 = vmatpush1.msra.mxu0 %v347
        %782 = vmatprep.subr.mxu0 0.0
        %783 = vmatpush1.msra.mxu0 %v348
        %784 = vmatprep.subr.mxu0 0.0
        %785 = vmatpush1.msra.mxu0 %v349
        %786 = vmatprep.subr.mxu0 0.0
        %787 = vmatpush1.msra.mxu0 %v350
        %788 = vmatprep.subr.mxu0 0.0
        %789 = vmatpush1.msra.mxu0 %v351
        %790 = vmatprep.subr.mxu0 0.0
        %791 = vmatpush1.msra.mxu0 %v352
        %792 = vmatprep.subr.mxu0 0.0
        %793 = vmatpush1.msra.mxu0 %v353
        %794 = vmatprep.subr.mxu0 0.0
        %795 = vmatpush1.msra.mxu0 %v354
        %796 = vmatprep.subr.mxu0 0.0
        %797 = vmatpush1.msra.mxu0 %v355
        %798 = vmatprep.subr.mxu0 0.0
        %799 = vmatpush1.msra.mxu0 %v356
        %800 = vmatprep.subr.mxu0 0.0
        %801 = vmatpush1.msra.mxu0 %v357
        %802 = vmatprep.subr.mxu0 0.0
        %803 = vmatpush1.msra.mxu0 %v358
        %804 = vmatprep.subr.mxu0 0.0
        %805 = vmatpush1.msra.mxu0 %v359
        %806 = vmatprep.subr.mxu0 0.0
        %807 = vmatpush1.msra.mxu0 %v360
        %808 = vmatprep.subr.mxu0 0.0
        %809 = vmatpush1.msra.mxu0 %v361
        %810 = vmatprep.subr.mxu0 0.0
        %811 = vmatpush1.msra.mxu0 %v362
        %812 = vmatprep.subr.mxu0 0.0
        %813 = vmatpush1.msra.mxu0 %v363
        %814 = vmatprep.subr.mxu0 0.0
        %815 = vmatpush1.msra.mxu0 %v364
        %816 = vmatprep.subr.mxu0 0.0
        %817 = vmatpush1.msra.mxu0 %v365
        %818 = vmatprep.subr.mxu0 0.0
        %819 = vmatpush1.msra.mxu0 %v366
        %820 = vmatprep.subr.mxu0 0.0
        %821 = vmatpush1.msra.mxu0 %v367
        %822 = vmatprep.subr.mxu0 0.0
        %823 = vmatpush1.msra.mxu0 %v368
        %824 = vmatprep.subr.mxu0 0.0
        %825 = vmatpush1.msra.mxu0 %v369
        %826 = vmatprep.subr.mxu0 0.0
        %827 = vmatpush1.msra.mxu0 %v370
        %828 = vmatprep.subr.mxu0 0.0
        %829 = vmatpush1.msra.mxu0 %v371
        %830 = vmatprep.subr.mxu0 0.0
        %831 = vmatpush1.msra.mxu0 %v372
        %832 = vmatprep.subr.mxu0 0.0
        %833 = vmatpush1.msra.mxu0 %v373
        %834 = vmatprep.subr.mxu0 0.0
        %835 = vmatpush1.msra.mxu0 %v374
        %836 = vmatprep.subr.mxu0 0.0
        %837 = vmatpush1.msra.mxu0 %v375
        %838 = vmatprep.subr.mxu0 0.0
        %839 = vmatpush1.msra.mxu0 %v376
        %840 = vmatprep.mubr.f32.mxu0 %v723
        %841 = vmatmul.mubr.f32.gmra.mrb[0].mxu0 %v722
        %v842 = vpop.f32.mrb[0].mxu0
        %v843 = vadd.f32 %v750, %v842
        %v844 = vpop.f32.mrb[0].mxu0
        %845 = vmatprep.mubr.f32.mxu0 %v726
        %846 = vmatmul.mubr.f32.gmra.mrb[0].mxu0 %v725
        %v847 = vpop.f32.mrb[0].mxu0
        %v848 = vadd.f32 %v750, %v847
        %v849 = vpop.f32.mrb[0].mxu0
        %850 = vmatprep.mubr.f32.mxu0 %v729
        %851 = vmatmul.mubr.f32.gmra.mrb[0].mxu0 %v728
        %v852 = vpop.f32.mrb[0].mxu0
        %v853 = vadd.f32 %v750, %v852
        %v854 = vpop.f32.mrb[0].mxu0
        %855 = vmatprep.mubr.f32.mxu0 %v732
        %856 = vmatmul.mubr.f32.gmra.mrb[0].mxu0 %v731
        %v857 = vpop.f32.mrb[0].mxu0
        %v858 = vadd.f32 %v750, %v857
        %v859 = vpop.f32.mrb[0].mxu0
        %860 = vmatprep.mubr.f32.mxu0 %v735
        %861 = vmatmul.mubr.f32.gmra.mrb[0].mxu0 %v734
        %v862 = vpop.f32.mrb[0].mxu0
        %v863 = vadd.f32 %v750, %v862
        %v864 = vpop.f32.mrb[0].mxu0
        %865 = vmatprep.mubr.f32.mxu0 %v738
        %866 = vmatmul.mubr.f32.gmra.mrb[0].mxu0 %v737
        %v867 = vpop.f32.mrb[0].mxu0
        %v868 = vadd.f32 %v750, %v867
        %v869 = vpop.f32.mrb[0].mxu0
        %870 = vmatprep.mubr.f32.mxu0 %v741
        %871 = vmatmul.mubr.f32.gmra.mrb[0].mxu0 %v740
        %v872 = vpop.f32.mrb[0].mxu0
        %v873 = vadd.f32 %v750, %v872
        %v874 = vpop.f32.mrb[0].mxu0
        %875 = vmatprep.mubr.f32.mxu0 %v744
        %876 = vmatmul.mubr.f32.gmra.mrb[0].mxu0 %v743
        %v877 = vpop.f32.mrb[0].mxu0
        %v878 = vadd.f32 %v750, %v877
        %v879 = vpop.f32.mrb[0].mxu0
        %880 = vdwg.mxu0
        %881 = vmatprep.subr.mxu0 0.0
        %882 = vmatpush1.msra.mxu0 %v377
        %883 = vmatprep.subr.mxu0 0.0
        %884 = vmatpush1.msra.mxu0 %v378
        %885 = vmatprep.subr.mxu0 0.0
        %886 = vmatpush1.msra.mxu0 %v379
        %887 = vmatprep.subr.mxu0 0.0
        %888 = vmatpush1.msra.mxu0 %v380
        %889 = vmatprep.subr.mxu0 0.0
        %890 = vmatpush1.msra.mxu0 0.0
        %891 = vmatprep.subr.mxu0 0.0
        %892 = vmatpush1.msra.mxu0 0.0
        %893 = vmatprep.subr.mxu0 0.0
        %894 = vmatpush1.msra.mxu0 0.0
        %895 = vmatprep.subr.mxu0 0.0
        %896 = vmatpush1.msra.mxu0 0.0
        %897 = vmatprep.subr.mxu0 0.0
        %898 = vmatpush1.msra.mxu0 0.0
        %899 = vmatprep.subr.mxu0 0.0
        %900 = vmatpush1.msra.mxu0 0.0
        %901 = vmatprep.subr.mxu0 0.0
        %902 = vmatpush1.msra.mxu0 0.0
        %903 = vmatprep.subr.mxu0 0.0
        %904 = vmatpush1.msra.mxu0 0.0
        %905 = vmatprep.subr.mxu0 0.0
        %906 = vmatpush1.msra.mxu0 0.0
        %907 = vmatprep.subr.mxu0 0.0
        %908 = vmatpush1.msra.mxu0 0.0
        %909 = vmatprep.subr.mxu0 0.0
        %910 = vmatpush1.msra.mxu0 0.0
        %911 = vmatprep.subr.mxu0 0.0
        %912 = vmatpush1.msra.mxu0 0.0
        %913 = vmatprep.subr.mxu0 0.0
        %914 = vmatpush1.msra.mxu0 0.0
        %915 = vmatprep.subr.mxu0 0.0
        %916 = vmatpush1.msra.mxu0 0.0
        %917 = vmatprep.subr.mxu0 0.0
        %918 = vmatpush1.msra.mxu0 0.0
        %919 = vmatprep.subr.mxu0 0.0
        %920 = vmatpush1.msra.mxu0 0.0
        %921 = vmatprep.subr.mxu0 0.0
        %922 = vmatpush1.msra.mxu0 0.0
        %923 = vmatprep.subr.mxu0 0.0
        %924 = vmatpush1.msra.mxu0 0.0
        %925 = vmatprep.subr.mxu0 0.0
        %926 = vmatpush1.msra.mxu0 0.0
        %927 = vmatprep.subr.mxu0 0.0
        %928 = vmatpush1.msra.mxu0 0.0
        %929 = vmatprep.subr.mxu0 0.0
        %930 = vmatpush1.msra.mxu0 0.0
        %931 = vmatprep.subr.mxu0 0.0
        %932 = vmatpush1.msra.mxu0 0.0
        %933 = vmatprep.subr.mxu0 0.0
        %934 = vmatpush1.msra.mxu0 0.0
        %935 = vmatprep.subr.mxu0 0.0
        %936 = vmatpush1.msra.mxu0 0.0
        %937 = vmatprep.subr.mxu0 0.0
        %938 = vmatpush1.msra.mxu0 0.0
        %939 = vmatprep.subr.mxu0 0.0
        %940 = vmatpush1.msra.mxu0 0.0
        %941 = vmatprep.subr.mxu0 0.0
        %942 = vmatpush1.msra.mxu0 0.0
        %943 = vmatprep.subr.mxu0 0.0
        %944 = vmatpush1.msra.mxu0 0.0
        %945 = vmatprep.mubr.f32.mxu0 0.0
        %946 = vmatmul.mubr.f32.gmra.mrb[0].mxu0 %v753
        %v947 = vpop.f32.mrb[0].mxu0
        %v948 = vadd.f32 %v843, %v947
        %v949 = vpop.f32.mrb[0].mxu0
        %950 = vmatprep.mubr.f32.mxu0 0.0
        %951 = vmatmul.mubr.f32.gmra.mrb[0].mxu0 %v756
        %v952 = vpop.f32.mrb[0].mxu0
        %v953 = vadd.f32 %v848, %v952
        %v954 = vpop.f32.mrb[0].mxu0
        %955 = vmatprep.mubr.f32.mxu0 0.0
        %956 = vmatmul.mubr.f32.gmra.mrb[0].mxu0 %v759
        %v957 = vpop.f32.mrb[0].mxu0
        %v958 = vadd.f32 %v853, %v957
        %v959 = vpop.f32.mrb[0].mxu0
        %960 = vmatprep.mubr.f32.mxu0 0.0
        %961 = vmatmul.mubr.f32.gmra.mrb[0].mxu0 %v762
        %v962 = vpop.f32.mrb[0].mxu0
        %v963 = vadd.f32 %v858, %v962
        %v964 = vpop.f32.mrb[0].mxu0
        %965 = vmatprep.mubr.f32.mxu0 0.0
        %966 = vmatmul.mubr.f32.gmra.mrb[0].mxu0 %v765
        %v967 = vpop.f32.mrb[0].mxu0
        %v968 = vadd.f32 %v863, %v967
        %v969 = vpop.f32.mrb[0].mxu0
        %970 = vmatprep.mubr.f32.mxu0 0.0
        %971 = vmatmul.mubr.f32.gmra.mrb[0].mxu0 %v768
        %v972 = vpop.f32.mrb[0].mxu0
        %v973 = vadd.f32 %v868, %v972
        %v974 = vpop.f32.mrb[0].mxu0
        %975 = vmatprep.mubr.f32.mxu0 0.0
        %976 = vmatmul.mubr.f32.gmra.mrb[0].mxu0 %v771
        %v977 = vpop.f32.mrb[0].mxu0
        %v978 = vadd.f32 %v873, %v977
        %v979 = vpop.f32.mrb[0].mxu0
        %980 = vmatprep.mubr.f32.mxu0 0.0
        %981 = vmatmul.mubr.f32.gmra.mrb[0].mxu0 %v774
        %v982 = vpop.f32.mrb[0].mxu0
        %v983 = vadd.f32 %v878, %v982
        %v984 = vpop.f32.mrb[0].mxu0
        %985 = vdwg.mxu0
        %v986 = vmax.f32 %v948, 0.0
        %v987 = vmax.f32 %v953, 0.0
        %v988 = vmax.f32 %v958, 0.0
        %v989 = vmax.f32 %v963, 0.0
        %v990 = vmax.f32 %v968, 0.0
        %v991 = vmax.f32 %v973, 0.0
        %v992 = vmax.f32 %v978, 0.0
        %v993 = vmax.f32 %v983, 0.0
        %s994 = scalar_lea.vmem [#allocation3], 16
        %995 = vst.msk [vmem:[%s994 + $0x1] sm:$0xff] %vm250, %v986
        %996 = vst.msk [vmem:[%s994 + $0x11] sm:$0xff] %vm250, %v987
        %997 = vst.msk [vmem:[%s994 + $0x21] sm:$0xff] %vm250, %v988
        %998 = vst.msk [vmem:[%s994 + $0x31] sm:$0xff] %vm250, %v989
        %999 = vst.msk [vmem:[%s994 + $0x41] sm:$0xff] %vm250, %v990
        %1000 = vst.msk [vmem:[%s994 + $0x51] sm:$0xff] %vm250, %v991
        %1001 = vst.msk [vmem:[%s994 + $0x61] sm:$0xff] %vm250, %v992
        %1002 = vst.msk [vmem:[%s994 + $0x71] sm:$0xff] %vm250, %v993
        %v1003 = vld [vmem:[%s2] sm:$0xff]
        %v1004 = vld [vmem:[%s2 + $0x8] sm:$0xff]
        %v1005 = vld [vmem:[%s2 + $0x10] sm:$0xff]
        %v1006 = vld [vmem:[%s2 + $0x18] sm:$0xff]
        %v1007 = vld [vmem:[%s2 + $0x20] sm:$0xff]
        %v1008 = vld [vmem:[%s2 + $0x28] sm:$0xff]
        %v1009 = vld [vmem:[%s2 + $0x30] sm:$0xff]
        %v1010 = vld [vmem:[%s2 + $0x38] sm:$0xff]
        %v1011 = vld [vmem:[%s2 + $0x40] sm:$0xff]
        %v1012 = vld [vmem:[%s2 + $0x48] sm:$0xff]
        %v1013 = vld [vmem:[%s2 + $0x50] sm:$0xff]
        %v1014 = vld [vmem:[%s2 + $0x58] sm:$0xff]
        %v1015 = vld [vmem:[%s2 + $0x60] sm:$0xff]
        %v1016 = vld [vmem:[%s2 + $0x68] sm:$0xff]
        %v1017 = vld [vmem:[%s2 + $0x70] sm:$0xff]
        %v1018 = vld [vmem:[%s2 + $0x78] sm:$0xff]
        %v1019 = vld [vmem:[%s2 + $0x80] sm:$0xff]
        %v1020 = vld [vmem:[%s2 + $0x88] sm:$0xff]
        %v1021 = vld [vmem:[%s2 + $0x90] sm:$0xff]
        %v1022 = vld [vmem:[%s2 + $0x98] sm:$0xff]
        %v1023 = vld [vmem:[%s2 + $0xa0] sm:$0xff]
        %v1024 = vld [vmem:[%s2 + $0xa8] sm:$0xff]
        %v1025 = vld [vmem:[%s2 + $0xb0] sm:$0xff]
        %v1026 = vld [vmem:[%s2 + $0xb8] sm:$0xff]
        %v1027 = vld [vmem:[%s2 + $0xc0] sm:$0xff]
        %v1028 = vld [vmem:[%s2 + $0xc8] sm:$0xff]
        %v1029 = vld [vmem:[%s2 + $0xd0] sm:$0xff]
        %v1030 = vld [vmem:[%s2 + $0xd8] sm:$0xff]
        %v1031 = vld [vmem:[%s2 + $0xe0] sm:$0xff]
        %v1032 = vld [vmem:[%s2 + $0xe8] sm:$0xff]
        %v1033 = vld [vmem:[%s2 + $0xf0] sm:$0xff]
        %v1034 = vld [vmem:[%s2 + $0xf8] sm:$0xff]
        %v1035 = vld [vmem:[%s2 + $0x100] sm:$0xff]
        %v1036 = vld [vmem:[%s2 + $0x108] sm:$0xff]
        %v1037 = vld [vmem:[%s2 + $0x110] sm:$0xff]
        %v1038 = vld [vmem:[%s2 + $0x118] sm:$0xff]
        %s1039 = scalar_lea.vmem %s4, 1
        %v1040 = vld [vmem:[%s1039] sm:$0x1]
        %v1041 = vld [vmem:[#allocation3] sm:$0xff]
        %v1042 = vld [vmem:[#allocation3 + $0x10] sm:$0xff]
        %v1043 = vld [vmem:[#allocation3 + $0x20] sm:$0xff]
        %v1044 = vld [vmem:[#allocation3 + $0x30] sm:$0xff]
        %v1045 = vld [vmem:[#allocation3 + $0x40] sm:$0xff]
        %v1046 = vld [vmem:[#allocation3 + $0x50] sm:$0xff]
        %v1047 = vld [vmem:[#allocation3 + $0x60] sm:$0xff]
        %v1048 = vld [vmem:[#allocation3 + $0x70] sm:$0xff]
        %1049 = vst.msk [vmem:[#allocation5] sm:$0xff] %vm250, %v1041
        %1050 = vst.msk [vmem:[#allocation5 + $0x18] sm:$0xff] %vm250, %v1042
        %1051 = vst.msk [vmem:[#allocation5 + $0x30] sm:$0xff] %vm250, %v1043
        %1052 = vst.msk [vmem:[#allocation5 + $0x48] sm:$0xff] %vm250, %v1044
        %1053 = vst.msk [vmem:[#allocation5 + $0x60] sm:$0xff] %vm250, %v1045
        %1054 = vst.msk [vmem:[#allocation5 + $0x78] sm:$0xff] %vm250, %v1046
        %1055 = vst.msk [vmem:[#allocation5 + $0x90] sm:$0xff] %vm250, %v1047
        %1056 = vst.msk [vmem:[#allocation5 + $0xa8] sm:$0xff] %vm250, %v1048
        %v1057 = vld [vmem:[#allocation3 + $0x1] sm:$0xff]
        %v1058 = vld [vmem:[#allocation3 + $0x11] sm:$0xff]
        %v1059 = vld [vmem:[#allocation3 + $0x21] sm:$0xff]
        %v1060 = vld [vmem:[#allocation3 + $0x31] sm:$0xff]
        %v1061 = vld [vmem:[#allocation3 + $0x41] sm:$0xff]
        %v1062 = vld [vmem:[#allocation3 + $0x51] sm:$0xff]
        %v1063 = vld [vmem:[#allocation3 + $0x61] sm:$0xff]
        %v1064 = vld [vmem:[#allocation3 + $0x71] sm:$0xff]
        %1073 = vrot.lane.b32.xlu0 %v1057, 32
        %v1074 = vpop.permute.xlu0 %1073
        %1075 = vrot.lane.b32.xlu0 %v1058, 32
        %v1076 = vpop.permute.xlu0 %1075
        %1077 = vrot.lane.b32.xlu0 %v1059, 32
        %v1078 = vpop.permute.xlu0 %1077
        %1079 = vrot.lane.b32.xlu0 %v1060, 32
        %v1080 = vpop.permute.xlu0 %1079
        %1081 = vrot.lane.b32.xlu0 %v1061, 32
        %v1082 = vpop.permute.xlu0 %1081
        %1083 = vrot.lane.b32.xlu0 %v1062, 32
        %v1084 = vpop.permute.xlu0 %1083
        %1085 = vrot.lane.b32.xlu0 %v1063, 32
        %v1086 = vpop.permute.xlu0 %1085
        %1087 = vrot.lane.b32.xlu0 %v1064, 32
        %v1088 = vpop.permute.xlu0 %1087
        %1097 = vst.msk [vmem:[#allocation5] sm:$0xff] %vm438, %v1074
        %1098 = vst.msk [vmem:[#allocation5 + $0x18] sm:$0xff] %vm438, %v1076
        %1099 = vst.msk [vmem:[#allocation5 + $0x30] sm:$0xff] %vm438, %v1078
        %1100 = vst.msk [vmem:[#allocation5 + $0x48] sm:$0xff] %vm438, %v1080
        %1101 = vst.msk [vmem:[#allocation5 + $0x60] sm:$0xff] %vm438, %v1082
        %1102 = vst.msk [vmem:[#allocation5 + $0x78] sm:$0xff] %vm438, %v1084
        %1103 = vst.msk [vmem:[#allocation5 + $0x90] sm:$0xff] %vm438, %v1086
        %1104 = vst.msk [vmem:[#allocation5 + $0xa8] sm:$0xff] %vm438, %v1088
        %v1105 = vld [vmem:[#allocation3 + $0x2] sm:$0xff]
        %v1106 = vld [vmem:[#allocation3 + $0x12] sm:$0xff]
        %v1107 = vld [vmem:[#allocation3 + $0x22] sm:$0xff]
        %v1108 = vld [vmem:[#allocation3 + $0x32] sm:$0xff]
        %v1109 = vld [vmem:[#allocation3 + $0x42] sm:$0xff]
        %v1110 = vld [vmem:[#allocation3 + $0x52] sm:$0xff]
        %v1111 = vld [vmem:[#allocation3 + $0x62] sm:$0xff]
        %v1112 = vld [vmem:[#allocation3 + $0x72] sm:$0xff]
        %1121 = vrot.lane.b32.xlu0 %v1105, 64
        %v1122 = vpop.permute.xlu0 %1121
        %1123 = vrot.lane.b32.xlu0 %v1106, 64
        %v1124 = vpop.permute.xlu0 %1123
        %1125 = vrot.lane.b32.xlu0 %v1107, 64
        %v1126 = vpop.permute.xlu0 %1125
        %1127 = vrot.lane.b32.xlu0 %v1108, 64
        %v1128 = vpop.permute.xlu0 %1127
        %1129 = vrot.lane.b32.xlu0 %v1109, 64
        %v1130 = vpop.permute.xlu0 %1129
        %1131 = vrot.lane.b32.xlu0 %v1110, 64
        %v1132 = vpop.permute.xlu0 %1131
        %1133 = vrot.lane.b32.xlu0 %v1111, 64
        %v1134 = vpop.permute.xlu0 %1133
        %1135 = vrot.lane.b32.xlu0 %v1112, 64
        %v1136 = vpop.permute.xlu0 %1135
        %1145 = vst.msk [vmem:[#allocation5] sm:$0xff] %vm487, %v1122
        %1146 = vst.msk [vmem:[#allocation5 + $0x18] sm:$0xff] %vm487, %v1124
        %1147 = vst.msk [vmem:[#allocation5 + $0x30] sm:$0xff] %vm487, %v1126
        %1148 = vst.msk [vmem:[#allocation5 + $0x48] sm:$0xff] %vm487, %v1128
        %1149 = vst.msk [vmem:[#allocation5 + $0x60] sm:$0xff] %vm487, %v1130
        %1150 = vst.msk [vmem:[#allocation5 + $0x78] sm:$0xff] %vm487, %v1132
        %1151 = vst.msk [vmem:[#allocation5 + $0x90] sm:$0xff] %vm487, %v1134
        %1152 = vst.msk [vmem:[#allocation5 + $0xa8] sm:$0xff] %vm487, %v1136
        %v1153 = vld [vmem:[%s994] sm:$0xff]
        %v1154 = vld [vmem:[%s994 + $0x10] sm:$0xff]
        %v1155 = vld [vmem:[%s994 + $0x20] sm:$0xff]
        %v1156 = vld [vmem:[%s994 + $0x30] sm:$0xff]
        %v1157 = vld [vmem:[%s994 + $0x40] sm:$0xff]
        %v1158 = vld [vmem:[%s994 + $0x50] sm:$0xff]
        %v1159 = vld [vmem:[%s994 + $0x60] sm:$0xff]
        %v1160 = vld [vmem:[%s994 + $0x70] sm:$0xff]
        %1169 = vrot.lane.b32.xlu0 %v1153, 96
        %v1170 = vpop.permute.xlu0 %1169
        %1171 = vrot.lane.b32.xlu0 %v1154, 96
        %v1172 = vpop.permute.xlu0 %1171
        %1173 = vrot.lane.b32.xlu0 %v1155, 96
        %v1174 = vpop.permute.xlu0 %1173
        %1175 = vrot.lane.b32.xlu0 %v1156, 96
        %v1176 = vpop.permute.xlu0 %1175
        %1177 = vrot.lane.b32.xlu0 %v1157, 96
        %v1178 = vpop.permute.xlu0 %1177
        %1179 = vrot.lane.b32.xlu0 %v1158, 96
        %v1180 = vpop.permute.xlu0 %1179
        %1181 = vrot.lane.b32.xlu0 %v1159, 96
        %v1182 = vpop.permute.xlu0 %1181
        %1183 = vrot.lane.b32.xlu0 %v1160, 96
        %v1184 = vpop.permute.xlu0 %1183
        %1193 = vst.msk [vmem:[#allocation5] sm:$0xff] %vm536, %v1170
        %1194 = vst.msk [vmem:[#allocation5 + $0x18] sm:$0xff] %vm536, %v1172
        %1195 = vst.msk [vmem:[#allocation5 + $0x30] sm:$0xff] %vm536, %v1174
        %1196 = vst.msk [vmem:[#allocation5 + $0x48] sm:$0xff] %vm536, %v1176
        %1197 = vst.msk [vmem:[#allocation5 + $0x60] sm:$0xff] %vm536, %v1178
        %1198 = vst.msk [vmem:[#allocation5 + $0x78] sm:$0xff] %vm536, %v1180
        %1199 = vst.msk [vmem:[#allocation5 + $0x90] sm:$0xff] %vm536, %v1182
        %1200 = vst.msk [vmem:[#allocation5 + $0xa8] sm:$0xff] %vm536, %v1184
        %v1201 = vld [vmem:[%s994 + $0x1] sm:$0xff]
        %v1202 = vld [vmem:[%s994 + $0x11] sm:$0xff]
        %v1203 = vld [vmem:[%s994 + $0x21] sm:$0xff]
        %v1204 = vld [vmem:[%s994 + $0x31] sm:$0xff]
        %v1205 = vld [vmem:[%s994 + $0x41] sm:$0xff]
        %v1206 = vld [vmem:[%s994 + $0x51] sm:$0xff]
        %v1207 = vld [vmem:[%s994 + $0x61] sm:$0xff]
        %v1208 = vld [vmem:[%s994 + $0x71] sm:$0xff]
        %1209 = vst.msk [vmem:[#allocation5 + $0x8] sm:$0xff] %vm250, %v1201
        %1210 = vst.msk [vmem:[#allocation5 + $0x20] sm:$0xff] %vm250, %v1202
        %1211 = vst.msk [vmem:[#allocation5 + $0x38] sm:$0xff] %vm250, %v1203
        %1212 = vst.msk [vmem:[#allocation5 + $0x50] sm:$0xff] %vm250, %v1204
        %1213 = vst.msk [vmem:[#allocation5 + $0x68] sm:$0xff] %vm250, %v1205
        %1214 = vst.msk [vmem:[#allocation5 + $0x80] sm:$0xff] %vm250, %v1206
        %1215 = vst.msk [vmem:[#allocation5 + $0x98] sm:$0xff] %vm250, %v1207
        %1216 = vst.msk [vmem:[#allocation5 + $0xb0] sm:$0xff] %vm250, %v1208
        %v1217 = vld [vmem:[%s994 + $0x2] sm:$0xff]
        %v1218 = vld [vmem:[%s994 + $0x12] sm:$0xff]
        %v1219 = vld [vmem:[%s994 + $0x22] sm:$0xff]
        %v1220 = vld [vmem:[%s994 + $0x32] sm:$0xff]
        %v1221 = vld [vmem:[%s994 + $0x42] sm:$0xff]
        %v1222 = vld [vmem:[%s994 + $0x52] sm:$0xff]
        %v1223 = vld [vmem:[%s994 + $0x62] sm:$0xff]
        %v1224 = vld [vmem:[%s994 + $0x72] sm:$0xff]
        %1233 = vrot.lane.b32.xlu0 %v1217, 32
        %v1234 = vpop.permute.xlu0 %1233
        %1235 = vrot.lane.b32.xlu0 %v1218, 32
        %v1236 = vpop.permute.xlu0 %1235
        %1237 = vrot.lane.b32.xlu0 %v1219, 32
        %v1238 = vpop.permute.xlu0 %1237
        %1239 = vrot.lane.b32.xlu0 %v1220, 32
        %v1240 = vpop.permute.xlu0 %1239
        %1241 = vrot.lane.b32.xlu0 %v1221, 32
        %v1242 = vpop.permute.xlu0 %1241
        %1243 = vrot.lane.b32.xlu0 %v1222, 32
        %v1244 = vpop.permute.xlu0 %1243
        %1245 = vrot.lane.b32.xlu0 %v1223, 32
        %v1246 = vpop.permute.xlu0 %1245
        %1247 = vrot.lane.b32.xlu0 %v1224, 32
        %v1248 = vpop.permute.xlu0 %1247
        %1257 = vst.msk [vmem:[#allocation5 + $0x8] sm:$0xff] %vm438, %v1234
        %1258 = vst.msk [vmem:[#allocation5 + $0x20] sm:$0xff] %vm438, %v1236
        %1259 = vst.msk [vmem:[#allocation5 + $0x38] sm:$0xff] %vm438, %v1238
        %1260 = vst.msk [vmem:[#allocation5 + $0x50] sm:$0xff] %vm438, %v1240
        %1261 = vst.msk [vmem:[#allocation5 + $0x68] sm:$0xff] %vm438, %v1242
        %1262 = vst.msk [vmem:[#allocation5 + $0x80] sm:$0xff] %vm438, %v1244
        %1263 = vst.msk [vmem:[#allocation5 + $0x98] sm:$0xff] %vm438, %v1246
        %1264 = vst.msk [vmem:[#allocation5 + $0xb0] sm:$0xff] %vm438, %v1248
        %s1265 = scalar_lea.vmem [#allocation3], 32
        %v1266 = vld [vmem:[%s1265] sm:$0xff]
        %v1267 = vld [vmem:[%s1265 + $0x10] sm:$0xff]
        %v1268 = vld [vmem:[%s1265 + $0x20] sm:$0xff]
        %v1269 = vld [vmem:[%s1265 + $0x30] sm:$0xff]
        %v1270 = vld [vmem:[%s1265 + $0x40] sm:$0xff]
        %v1271 = vld [vmem:[%s1265 + $0x50] sm:$0xff]
        %v1272 = vld [vmem:[%s1265 + $0x60] sm:$0xff]
        %v1273 = vld [vmem:[%s1265 + $0x70] sm:$0xff]
        %1282 = vrot.lane.b32.xlu0 %v1266, 64
        %v1283 = vpop.permute.xlu0 %1282
        %1284 = vrot.lane.b32.xlu0 %v1267, 64
        %v1285 = vpop.permute.xlu0 %1284
        %1286 = vrot.lane.b32.xlu0 %v1268, 64
        %v1287 = vpop.permute.xlu0 %1286
        %1288 = vrot.lane.b32.xlu0 %v1269, 64
        %v1289 = vpop.permute.xlu0 %1288
        %1290 = vrot.lane.b32.xlu0 %v1270, 64
        %v1291 = vpop.permute.xlu0 %1290
        %1292 = vrot.lane.b32.xlu0 %v1271, 64
        %v1293 = vpop.permute.xlu0 %1292
        %1294 = vrot.lane.b32.xlu0 %v1272, 64
        %v1295 = vpop.permute.xlu0 %1294
        %1296 = vrot.lane.b32.xlu0 %v1273, 64
        %v1297 = vpop.permute.xlu0 %1296
        %1306 = vst.msk [vmem:[#allocation5 + $0x8] sm:$0xff] %vm487, %v1283
        %1307 = vst.msk [vmem:[#allocation5 + $0x20] sm:$0xff] %vm487, %v1285
        %1308 = vst.msk [vmem:[#allocation5 + $0x38] sm:$0xff] %vm487, %v1287
        %1309 = vst.msk [vmem:[#allocation5 + $0x50] sm:$0xff] %vm487, %v1289
        %1310 = vst.msk [vmem:[#allocation5 + $0x68] sm:$0xff] %vm487, %v1291
        %1311 = vst.msk [vmem:[#allocation5 + $0x80] sm:$0xff] %vm487, %v1293
        %1312 = vst.msk [vmem:[#allocation5 + $0x98] sm:$0xff] %vm487, %v1295
        %1313 = vst.msk [vmem:[#allocation5 + $0xb0] sm:$0xff] %vm487, %v1297
        %v1314 = vld [vmem:[%s1265 + $0x1] sm:$0xff]
        %v1315 = vld [vmem:[%s1265 + $0x11] sm:$0xff]
        %v1316 = vld [vmem:[%s1265 + $0x21] sm:$0xff]
        %v1317 = vld [vmem:[%s1265 + $0x31] sm:$0xff]
        %v1318 = vld [vmem:[%s1265 + $0x41] sm:$0xff]
        %v1319 = vld [vmem:[%s1265 + $0x51] sm:$0xff]
        %v1320 = vld [vmem:[%s1265 + $0x61] sm:$0xff]
        %v1321 = vld [vmem:[%s1265 + $0x71] sm:$0xff]
        %1330 = vrot.lane.b32.xlu0 %v1314, 96
        %v1331 = vpop.permute.xlu0 %1330
        %1332 = vrot.lane.b32.xlu0 %v1315, 96
        %v1333 = vpop.permute.xlu0 %1332
        %1334 = vrot.lane.b32.xlu0 %v1316, 96
        %v1335 = vpop.permute.xlu0 %1334
        %1336 = vrot.lane.b32.xlu0 %v1317, 96
        %v1337 = vpop.permute.xlu0 %1336
        %1338 = vrot.lane.b32.xlu0 %v1318, 96
        %v1339 = vpop.permute.xlu0 %1338
        %1340 = vrot.lane.b32.xlu0 %v1319, 96
        %v1341 = vpop.permute.xlu0 %1340
        %1342 = vrot.lane.b32.xlu0 %v1320, 96
        %v1343 = vpop.permute.xlu0 %1342
        %1344 = vrot.lane.b32.xlu0 %v1321, 96
        %v1345 = vpop.permute.xlu0 %1344
        %1354 = vst.msk [vmem:[#allocation5 + $0x8] sm:$0xff] %vm536, %v1331
        %1355 = vst.msk [vmem:[#allocation5 + $0x20] sm:$0xff] %vm536, %v1333
        %1356 = vst.msk [vmem:[#allocation5 + $0x38] sm:$0xff] %vm536, %v1335
        %1357 = vst.msk [vmem:[#allocation5 + $0x50] sm:$0xff] %vm536, %v1337
        %1358 = vst.msk [vmem:[#allocation5 + $0x68] sm:$0xff] %vm536, %v1339
        %1359 = vst.msk [vmem:[#allocation5 + $0x80] sm:$0xff] %vm536, %v1341
        %1360 = vst.msk [vmem:[#allocation5 + $0x98] sm:$0xff] %vm536, %v1343
        %1361 = vst.msk [vmem:[#allocation5 + $0xb0] sm:$0xff] %vm536, %v1345
        %v1362 = vld [vmem:[%s1265 + $0x2] sm:$0xff]
        %v1363 = vld [vmem:[%s1265 + $0x12] sm:$0xff]
        %v1364 = vld [vmem:[%s1265 + $0x22] sm:$0xff]
        %v1365 = vld [vmem:[%s1265 + $0x32] sm:$0xff]
        %v1366 = vld [vmem:[%s1265 + $0x42] sm:$0xff]
        %v1367 = vld [vmem:[%s1265 + $0x52] sm:$0xff]
        %v1368 = vld [vmem:[%s1265 + $0x62] sm:$0xff]
        %v1369 = vld [vmem:[%s1265 + $0x72] sm:$0xff]
        %1370 = vst.msk [vmem:[#allocation5 + $0x10] sm:$0xff] %vm250, %v1362
        %1371 = vst.msk [vmem:[#allocation5 + $0x28] sm:$0xff] %vm250, %v1363
        %1372 = vst.msk [vmem:[#allocation5 + $0x40] sm:$0xff] %vm250, %v1364
        %1373 = vst.msk [vmem:[#allocation5 + $0x58] sm:$0xff] %vm250, %v1365
        %1374 = vst.msk [vmem:[#allocation5 + $0x70] sm:$0xff] %vm250, %v1366
        %1375 = vst.msk [vmem:[#allocation5 + $0x88] sm:$0xff] %vm250, %v1367
        %1376 = vst.msk [vmem:[#allocation5 + $0xa0] sm:$0xff] %vm250, %v1368
        %1377 = vst.msk [vmem:[#allocation5 + $0xb8] sm:$0xff] %vm250, %v1369
        %v1378 = vld [vmem:[#allocation5] sm:$0xff]
        %v1379 = vld [vmem:[#allocation5 + $0x8] sm:$0xff]
        %v1380 = vld [vmem:[#allocation5 + $0x10] sm:$0xff]
        %v1381 = vld [vmem:[#allocation5 + $0x18] sm:$0xff]
        %v1382 = vld [vmem:[#allocation5 + $0x20] sm:$0xff]
        %v1383 = vld [vmem:[#allocation5 + $0x28] sm:$0xff]
        %v1384 = vld [vmem:[#allocation5 + $0x30] sm:$0xff]
        %v1385 = vld [vmem:[#allocation5 + $0x38] sm:$0xff]
        %v1386 = vld [vmem:[#allocation5 + $0x40] sm:$0xff]
        %v1387 = vld [vmem:[#allocation5 + $0x48] sm:$0xff]
        %v1388 = vld [vmem:[#allocation5 + $0x50] sm:$0xff]
        %v1389 = vld [vmem:[#allocation5 + $0x58] sm:$0xff]
        %v1390 = vld [vmem:[#allocation5 + $0x60] sm:$0xff]
        %v1391 = vld [vmem:[#allocation5 + $0x68] sm:$0xff]
        %v1392 = vld [vmem:[#allocation5 + $0x70] sm:$0xff]
        %v1393 = vld [vmem:[#allocation5 + $0x78] sm:$0xff]
        %v1394 = vld [vmem:[#allocation5 + $0x80] sm:$0xff]
        %v1395 = vld [vmem:[#allocation5 + $0x88] sm:$0xff]
        %v1396 = vld [vmem:[#allocation5 + $0x90] sm:$0xff]
        %v1397 = vld [vmem:[#allocation5 + $0x98] sm:$0xff]
        %v1398 = vld [vmem:[#allocation5 + $0xa0] sm:$0xff]
        %v1399 = vld [vmem:[#allocation5 + $0xa8] sm:$0xff]
        %v1400 = vld [vmem:[#allocation5 + $0xb0] sm:$0xff]
        %v1401 = vld [vmem:[#allocation5 + $0xb8] sm:$0xff]
        %v1403 = vlaneseq
        %v1404 = vshrl.u32 %v1403, 7
        %v1405 = vsub.s32 0, %v1404
        %v1406 = vrot.slane %v1040, %v1405
        %v1409 = vsel %vm250, %v1380, 0
        %v1412 = vsel %vm250, %v1383, 0
        %v1415 = vsel %vm250, %v1386, 0
        %v1418 = vsel %vm250, %v1389, 0
        %v1421 = vsel %vm250, %v1392, 0
        %v1424 = vsel %vm250, %v1395, 0
        %v1427 = vsel %vm250, %v1398, 0
        %v1430 = vsel %vm250, %v1401, 0
        %1432 = vmatprep.subr.mxu0 0.0
        %1433 = vmatpush1.msra.mxu0 %v1003
        %1434 = vmatprep.subr.mxu0 0.0
        %1435 = vmatpush1.msra.mxu0 %v1004
        %1436 = vmatprep.subr.mxu0 0.0
        %1437 = vmatpush1.msra.mxu0 %v1005
        %1438 = vmatprep.subr.mxu0 0.0
        %1439 = vmatpush1.msra.mxu0 %v1006
        %1440 = vmatprep.subr.mxu0 0.0
        %1441 = vmatpush1.msra.mxu0 %v1007
        %1442 = vmatprep.subr.mxu0 0.0
        %1443 = vmatpush1.msra.mxu0 %v1008
        %1444 = vmatprep.subr.mxu0 0.0
        %1445 = vmatpush1.msra.mxu0 %v1009
        %1446 = vmatprep.subr.mxu0 0.0
        %1447 = vmatpush1.msra.mxu0 %v1010
        %1448 = vmatprep.subr.mxu0 0.0
        %1449 = vmatpush1.msra.mxu0 %v1011
        %1450 = vmatprep.subr.mxu0 0.0
        %1451 = vmatpush1.msra.mxu0 %v1012
        %1452 = vmatprep.subr.mxu0 0.0
        %1453 = vmatpush1.msra.mxu0 %v1013
        %1454 = vmatprep.subr.mxu0 0.0
        %1455 = vmatpush1.msra.mxu0 %v1014
        %1456 = vmatprep.subr.mxu0 0.0
        %1457 = vmatpush1.msra.mxu0 %v1015
        %1458 = vmatprep.subr.mxu0 0.0
        %1459 = vmatpush1.msra.mxu0 %v1016
        %1460 = vmatprep.subr.mxu0 0.0
        %1461 = vmatpush1.msra.mxu0 %v1017
        %1462 = vmatprep.subr.mxu0 0.0
        %1463 = vmatpush1.msra.mxu0 %v1018
        %1464 = vmatprep.subr.mxu0 0.0
        %1465 = vmatpush1.msra.mxu0 %v1019
        %1466 = vmatprep.subr.mxu0 0.0
        %1467 = vmatpush1.msra.mxu0 %v1020
        %1468 = vmatprep.subr.mxu0 0.0
        %1469 = vmatpush1.msra.mxu0 %v1021
        %1470 = vmatprep.subr.mxu0 0.0
        %1471 = vmatpush1.msra.mxu0 %v1022
        %1472 = vmatprep.subr.mxu0 0.0
        %1473 = vmatpush1.msra.mxu0 %v1023
        %1474 = vmatprep.subr.mxu0 0.0
        %1475 = vmatpush1.msra.mxu0 %v1024
        %1476 = vmatprep.subr.mxu0 0.0
        %1477 = vmatpush1.msra.mxu0 %v1025
        %1478 = vmatprep.subr.mxu0 0.0
        %1479 = vmatpush1.msra.mxu0 %v1026
        %1480 = vmatprep.subr.mxu0 0.0
        %1481 = vmatpush1.msra.mxu0 %v1027
        %1482 = vmatprep.subr.mxu0 0.0
        %1483 = vmatpush1.msra.mxu0 %v1028
        %1484 = vmatprep.subr.mxu0 0.0
        %1485 = vmatpush1.msra.mxu0 %v1029
        %1486 = vmatprep.subr.mxu0 0.0
        %1487 = vmatpush1.msra.mxu0 %v1030
        %1488 = vmatprep.subr.mxu0 0.0
        %1489 = vmatpush1.msra.mxu0 %v1031
        %1490 = vmatprep.subr.mxu0 0.0
        %1491 = vmatpush1.msra.mxu0 %v1032
        %1492 = vmatprep.subr.mxu0 0.0
        %1493 = vmatpush1.msra.mxu0 %v1033
        %1494 = vmatprep.subr.mxu0 0.0
        %1495 = vmatpush1.msra.mxu0 %v1034
        %1496 = vmatprep.mubr.f32.mxu0 %v1379
        %1497 = vmatmul.mubr.f32.gmra.mrb[0].mxu0 %v1378
        %v1498 = vpop.f32.mrb[0].mxu0
        %v1499 = vadd.f32 %v1406, %v1498
        %v1500 = vpop.f32.mrb[0].mxu0
        %1501 = vmatprep.mubr.f32.mxu0 %v1382
        %1502 = vmatmul.mubr.f32.gmra.mrb[0].mxu0 %v1381
        %v1503 = vpop.f32.mrb[0].mxu0
        %v1504 = vadd.f32 %v1406, %v1503
        %v1505 = vpop.f32.mrb[0].mxu0
        %1506 = vmatprep.mubr.f32.mxu0 %v1385
        %1507 = vmatmul.mubr.f32.gmra.mrb[0].mxu0 %v1384
        %v1508 = vpop.f32.mrb[0].mxu0
        %v1509 = vadd.f32 %v1406, %v1508
        %v1510 = vpop.f32.mrb[0].mxu0
        %1511 = vmatprep.mubr.f32.mxu0 %v1388
        %1512 = vmatmul.mubr.f32.gmra.mrb[0].mxu0 %v1387
        %v1513 = vpop.f32.mrb[0].mxu0
        %v1514 = vadd.f32 %v1406, %v1513
        %v1515 = vpop.f32.mrb[0].mxu0
        %1516 = vmatprep.mubr.f32.mxu0 %v1391
        %1517 = vmatmul.mubr.f32.gmra.mrb[0].mxu0 %v1390
        %v1518 = vpop.f32.mrb[0].mxu0
        %v1519 = vadd.f32 %v1406, %v1518
        %v1520 = vpop.f32.mrb[0].mxu0
        %1521 = vmatprep.mubr.f32.mxu0 %v1394
        %1522 = vmatmul.mubr.f32.gmra.mrb[0].mxu0 %v1393
        %v1523 = vpop.f32.mrb[0].mxu0
        %v1524 = vadd.f32 %v1406, %v1523
        %v1525 = vpop.f32.mrb[0].mxu0
        %1526 = vmatprep.mubr.f32.mxu0 %v1397
        %1527 = vmatmul.mubr.f32.gmra.mrb[0].mxu0 %v1396
        %v1528 = vpop.f32.mrb[0].mxu0
        %v1529 = vadd.f32 %v1406, %v1528
        %v1530 = vpop.f32.mrb[0].mxu0
        %1531 = vmatprep.mubr.f32.mxu0 %v1400
        %1532 = vmatmul.mubr.f32.gmra.mrb[0].mxu0 %v1399
        %v1533 = vpop.f32.mrb[0].mxu0
        %v1534 = vadd.f32 %v1406, %v1533
        %v1535 = vpop.f32.mrb[0].mxu0
        %1536 = vdwg.mxu0
        %1537 = vmatprep.subr.mxu0 0.0
        %1538 = vmatpush1.msra.mxu0 %v1035
        %1539 = vmatprep.subr.mxu0 0.0
        %1540 = vmatpush1.msra.mxu0 %v1036
        %1541 = vmatprep.subr.mxu0 0.0
        %1542 = vmatpush1.msra.mxu0 %v1037
        %1543 = vmatprep.subr.mxu0 0.0
        %1544 = vmatpush1.msra.mxu0 %v1038
        %1545 = vmatprep.subr.mxu0 0.0
        %1546 = vmatpush1.msra.mxu0 0.0
        %1547 = vmatprep.subr.mxu0 0.0
        %1548 = vmatpush1.msra.mxu0 0.0
        %1549 = vmatprep.subr.mxu0 0.0
        %1550 = vmatpush1.msra.mxu0 0.0
        %1551 = vmatprep.subr.mxu0 0.0
        %1552 = vmatpush1.msra.mxu0 0.0
        %1553 = vmatprep.subr.mxu0 0.0
        %1554 = vmatpush1.msra.mxu0 0.0
        %1555 = vmatprep.subr.mxu0 0.0
        %1556 = vmatpush1.msra.mxu0 0.0
        %1557 = vmatprep.subr.mxu0 0.0
        %1558 = vmatpush1.msra.mxu0 0.0
        %1559 = vmatprep.subr.mxu0 0.0
        %1560 = vmatpush1.msra.mxu0 0.0
        %1561 = vmatprep.subr.mxu0 0.0
        %1562 = vmatpush1.msra.mxu0 0.0
        %1563 = vmatprep.subr.mxu0 0.0
        %1564 = vmatpush1.msra.mxu0 0.0
        %1565 = vmatprep.subr.mxu0 0.0
        %1566 = vmatpush1.msra.mxu0 0.0
        %1567 = vmatprep.subr.mxu0 0.0
        %1568 = vmatpush1.msra.mxu0 0.0
        %1569 = vmatprep.subr.mxu0 0.0
        %1570 = vmatpush1.msra.mxu0 0.0
        %1571 = vmatprep.subr.mxu0 0.0
        %1572 = vmatpush1.msra.mxu0 0.0
        %1573 = vmatprep.subr.mxu0 0.0
        %1574 = vmatpush1.msra.mxu0 0.0
        %1575 = vmatprep.subr.mxu0 0.0
        %1576 = vmatpush1.msra.mxu0 0.0
        %1577 = vmatprep.subr.mxu0 0.0
        %1578 = vmatpush1.msra.mxu0 0.0
        %1579 = vmatprep.subr.mxu0 0.0
        %1580 = vmatpush1.msra.mxu0 0.0
        %1581 = vmatprep.subr.mxu0 0.0
        %1582 = vmatpush1.msra.mxu0 0.0
        %1583 = vmatprep.subr.mxu0 0.0
        %1584 = vmatpush1.msra.mxu0 0.0
        %1585 = vmatprep.subr.mxu0 0.0
        %1586 = vmatpush1.msra.mxu0 0.0
        %1587 = vmatprep.subr.mxu0 0.0
        %1588 = vmatpush1.msra.mxu0 0.0
        %1589 = vmatprep.subr.mxu0 0.0
        %1590 = vmatpush1.msra.mxu0 0.0
        %1591 = vmatprep.subr.mxu0 0.0
        %1592 = vmatpush1.msra.mxu0 0.0
        %1593 = vmatprep.subr.mxu0 0.0
        %1594 = vmatpush1.msra.mxu0 0.0
        %1595 = vmatprep.subr.mxu0 0.0
        %1596 = vmatpush1.msra.mxu0 0.0
        %1597 = vmatprep.subr.mxu0 0.0
        %1598 = vmatpush1.msra.mxu0 0.0
        %1599 = vmatprep.subr.mxu0 0.0
        %1600 = vmatpush1.msra.mxu0 0.0
        %1601 = vmatprep.mubr.f32.mxu0 0.0
        %1602 = vmatmul.mubr.f32.gmra.mrb[0].mxu0 %v1409
        %v1603 = vpop.f32.mrb[0].mxu0
        %v1604 = vadd.f32 %v1499, %v1603
        %v1605 = vpop.f32.mrb[0].mxu0
        %1606 = vmatprep.mubr.f32.mxu0 0.0
        %1607 = vmatmul.mubr.f32.gmra.mrb[0].mxu0 %v1412
        %v1608 = vpop.f32.mrb[0].mxu0
        %v1609 = vadd.f32 %v1504, %v1608
        %v1610 = vpop.f32.mrb[0].mxu0
        %1611 = vmatprep.mubr.f32.mxu0 0.0
        %1612 = vmatmul.mubr.f32.gmra.mrb[0].mxu0 %v1415
        %v1613 = vpop.f32.mrb[0].mxu0
        %v1614 = vadd.f32 %v1509, %v1613
        %v1615 = vpop.f32.mrb[0].mxu0
        %1616 = vmatprep.mubr.f32.mxu0 0.0
        %1617 = vmatmul.mubr.f32.gmra.mrb[0].mxu0 %v1418
        %v1618 = vpop.f32.mrb[0].mxu0
        %v1619 = vadd.f32 %v1514, %v1618
        %v1620 = vpop.f32.mrb[0].mxu0
        %1621 = vmatprep.mubr.f32.mxu0 0.0
        %1622 = vmatmul.mubr.f32.gmra.mrb[0].mxu0 %v1421
        %v1623 = vpop.f32.mrb[0].mxu0
        %v1624 = vadd.f32 %v1519, %v1623
        %v1625 = vpop.f32.mrb[0].mxu0
        %1626 = vmatprep.mubr.f32.mxu0 0.0
        %1627 = vmatmul.mubr.f32.gmra.mrb[0].mxu0 %v1424
        %v1628 = vpop.f32.mrb[0].mxu0
        %v1629 = vadd.f32 %v1524, %v1628
        %v1630 = vpop.f32.mrb[0].mxu0
        %1631 = vmatprep.mubr.f32.mxu0 0.0
        %1632 = vmatmul.mubr.f32.gmra.mrb[0].mxu0 %v1427
        %v1633 = vpop.f32.mrb[0].mxu0
        %v1634 = vadd.f32 %v1529, %v1633
        %v1635 = vpop.f32.mrb[0].mxu0
        %1636 = vmatprep.mubr.f32.mxu0 0.0
        %1637 = vmatmul.mubr.f32.gmra.mrb[0].mxu0 %v1430
        %v1638 = vpop.f32.mrb[0].mxu0
        %v1639 = vadd.f32 %v1534, %v1638
        %v1640 = vpop.f32.mrb[0].mxu0
        %1641 = vdwg.mxu0
        %v1642 = vmax.f32 %v1604, 0.0
        %v1643 = vmax.f32 %v1609, 0.0
        %v1644 = vmax.f32 %v1614, 0.0
        %v1645 = vmax.f32 %v1619, 0.0
        %v1646 = vmax.f32 %v1624, 0.0
        %v1647 = vmax.f32 %v1629, 0.0
        %v1648 = vmax.f32 %v1634, 0.0
        %v1649 = vmax.f32 %v1639, 0.0
        %s1650 = scalar_lea.vmem [#allocation4], 16
        %1651 = vst.msk [vmem:[%s1650 + $0x1] sm:$0xff] %vm250, %v1642
        %1652 = vst.msk [vmem:[%s1650 + $0x11] sm:$0xff] %vm250, %v1643
        %1653 = vst.msk [vmem:[%s1650 + $0x21] sm:$0xff] %vm250, %v1644
        %1654 = vst.msk [vmem:[%s1650 + $0x31] sm:$0xff] %vm250, %v1645
        %1655 = vst.msk [vmem:[%s1650 + $0x41] sm:$0xff] %vm250, %v1646
        %1656 = vst.msk [vmem:[%s1650 + $0x51] sm:$0xff] %vm250, %v1647
        %1657 = vst.msk [vmem:[%s1650 + $0x61] sm:$0xff] %vm250, %v1648
        %1658 = vst.msk [vmem:[%s1650 + $0x71] sm:$0xff] %vm250, %v1649
        %s1659 = scalar_lea.vmem %s2, 288
        %v1660 = vld [vmem:[%s1659] sm:$0xff]
        %v1661 = vld [vmem:[%s1659 + $0x8] sm:$0xff]
        %v1662 = vld [vmem:[%s1659 + $0x10] sm:$0xff]
        %v1663 = vld [vmem:[%s1659 + $0x18] sm:$0xff]
        %v1664 = vld [vmem:[%s1659 + $0x20] sm:$0xff]
        %v1665 = vld [vmem:[%s1659 + $0x28] sm:$0xff]
        %v1666 = vld [vmem:[%s1659 + $0x30] sm:$0xff]
        %v1667 = vld [vmem:[%s1659 + $0x38] sm:$0xff]
        %v1668 = vld [vmem:[%s1659 + $0x40] sm:$0xff]
        %v1669 = vld [vmem:[%s1659 + $0x48] sm:$0xff]
        %v1670 = vld [vmem:[%s1659 + $0x50] sm:$0xff]
        %v1671 = vld [vmem:[%s1659 + $0x58] sm:$0xff]
        %v1672 = vld [vmem:[%s1659 + $0x60] sm:$0xff]
        %v1673 = vld [vmem:[%s1659 + $0x68] sm:$0xff]
        %v1674 = vld [vmem:[%s1659 + $0x70] sm:$0xff]
        %v1675 = vld [vmem:[%s1659 + $0x78] sm:$0xff]
        %v1676 = vld [vmem:[%s1659 + $0x80] sm:$0xff]
        %v1677 = vld [vmem:[%s1659 + $0x88] sm:$0xff]
        %v1678 = vld [vmem:[%s1659 + $0x90] sm:$0xff]
        %v1679 = vld [vmem:[%s1659 + $0x98] sm:$0xff]
        %v1680 = vld [vmem:[%s1659 + $0xa0] sm:$0xff]
        %v1681 = vld [vmem:[%s1659 + $0xa8] sm:$0xff]
        %v1682 = vld [vmem:[%s1659 + $0xb0] sm:$0xff]
        %v1683 = vld [vmem:[%s1659 + $0xb8] sm:$0xff]
        %v1684 = vld [vmem:[%s1659 + $0xc0] sm:$0xff]
        %v1685 = vld [vmem:[%s1659 + $0xc8] sm:$0xff]
        %v1686 = vld [vmem:[%s1659 + $0xd0] sm:$0xff]
        %v1687 = vld [vmem:[%s1659 + $0xd8] sm:$0xff]
        %v1688 = vld [vmem:[%s1659 + $0xe0] sm:$0xff]
        %v1689 = vld [vmem:[%s1659 + $0xe8] sm:$0xff]
        %v1690 = vld [vmem:[%s1659 + $0xf0] sm:$0xff]
        %v1691 = vld [vmem:[%s1659 + $0xf8] sm:$0xff]
        %v1692 = vld [vmem:[%s1659 + $0x100] sm:$0xff]
        %v1693 = vld [vmem:[%s1659 + $0x108] sm:$0xff]
        %v1694 = vld [vmem:[%s1659 + $0x110] sm:$0xff]
        %v1695 = vld [vmem:[%s1659 + $0x118] sm:$0xff]
        %s1696 = scalar_lea.vmem %s4, 2
        %v1697 = vld [vmem:[%s1696] sm:$0x1]
        %v1698 = vld [vmem:[#allocation4] sm:$0xff]
        %v1699 = vld [vmem:[#allocation4 + $0x10] sm:$0xff]
        %v1700 = vld [vmem:[#allocation4 + $0x20] sm:$0xff]
        %v1701 = vld [vmem:[#allocation4 + $0x30] sm:$0xff]
        %v1702 = vld [vmem:[#allocation4 + $0x40] sm:$0xff]
        %v1703 = vld [vmem:[#allocation4 + $0x50] sm:$0xff]
        %v1704 = vld [vmem:[#allocation4 + $0x60] sm:$0xff]
        %v1705 = vld [vmem:[#allocation4 + $0x70] sm:$0xff]
        %1706 = vst.msk [vmem:[#allocation5] sm:$0xff] %vm250, %v1698
        %1707 = vst.msk [vmem:[#allocation5 + $0x18] sm:$0xff] %vm250, %v1699
        %1708 = vst.msk [vmem:[#allocation5 + $0x30] sm:$0xff] %vm250, %v1700
        %1709 = vst.msk [vmem:[#allocation5 + $0x48] sm:$0xff] %vm250, %v1701
        %1710 = vst.msk [vmem:[#allocation5 + $0x60] sm:$0xff] %vm250, %v1702
        %1711 = vst.msk [vmem:[#allocation5 + $0x78] sm:$0xff] %vm250, %v1703
        %1712 = vst.msk [vmem:[#allocation5 + $0x90] sm:$0xff] %vm250, %v1704
        %1713 = vst.msk [vmem:[#allocation5 + $0xa8] sm:$0xff] %vm250, %v1705
        %v1714 = vld [vmem:[#allocation4 + $0x1] sm:$0xff]
        %v1715 = vld [vmem:[#allocation4 + $0x11] sm:$0xff]
        %v1716 = vld [vmem:[#allocation4 + $0x21] sm:$0xff]
        %v1717 = vld [vmem:[#allocation4 + $0x31] sm:$0xff]
        %v1718 = vld [vmem:[#allocation4 + $0x41] sm:$0xff]
        %v1719 = vld [vmem:[#allocation4 + $0x51] sm:$0xff]
        %v1720 = vld [vmem:[#allocation4 + $0x61] sm:$0xff]
        %v1721 = vld [vmem:[#allocation4 + $0x71] sm:$0xff]
        %1730 = vrot.lane.b32.xlu0 %v1714, 32
        %v1731 = vpop.permute.xlu0 %1730
        %1732 = vrot.lane.b32.xlu0 %v1715, 32
        %v1733 = vpop.permute.xlu0 %1732
        %1734 = vrot.lane.b32.xlu0 %v1716, 32
        %v1735 = vpop.permute.xlu0 %1734
        %1736 = vrot.lane.b32.xlu0 %v1717, 32
        %v1737 = vpop.permute.xlu0 %1736
        %1738 = vrot.lane.b32.xlu0 %v1718, 32
        %v1739 = vpop.permute.xlu0 %1738
        %1740 = vrot.lane.b32.xlu0 %v1719, 32
        %v1741 = vpop.permute.xlu0 %1740
        %1742 = vrot.lane.b32.xlu0 %v1720, 32
        %v1743 = vpop.permute.xlu0 %1742
        %1744 = vrot.lane.b32.xlu0 %v1721, 32
        %v1745 = vpop.permute.xlu0 %1744
        %1754 = vst.msk [vmem:[#allocation5] sm:$0xff] %vm438, %v1731
        %1755 = vst.msk [vmem:[#allocation5 + $0x18] sm:$0xff] %vm438, %v1733
        %1756 = vst.msk [vmem:[#allocation5 + $0x30] sm:$0xff] %vm438, %v1735
        %1757 = vst.msk [vmem:[#allocation5 + $0x48] sm:$0xff] %vm438, %v1737
        %1758 = vst.msk [vmem:[#allocation5 + $0x60] sm:$0xff] %vm438, %v1739
        %1759 = vst.msk [vmem:[#allocation5 + $0x78] sm:$0xff] %vm438, %v1741
        %1760 = vst.msk [vmem:[#allocation5 + $0x90] sm:$0xff] %vm438, %v1743
        %1761 = vst.msk [vmem:[#allocation5 + $0xa8] sm:$0xff] %vm438, %v1745
        %v1762 = vld [vmem:[#allocation4 + $0x2] sm:$0xff]
        %v1763 = vld [vmem:[#allocation4 + $0x12] sm:$0xff]
        %v1764 = vld [vmem:[#allocation4 + $0x22] sm:$0xff]
        %v1765 = vld [vmem:[#allocation4 + $0x32] sm:$0xff]
        %v1766 = vld [vmem:[#allocation4 + $0x42] sm:$0xff]
        %v1767 = vld [vmem:[#allocation4 + $0x52] sm:$0xff]
        %v1768 = vld [vmem:[#allocation4 + $0x62] sm:$0xff]
        %v1769 = vld [vmem:[#allocation4 + $0x72] sm:$0xff]
        %1778 = vrot.lane.b32.xlu0 %v1762, 64
        %v1779 = vpop.permute.xlu0 %1778
        %1780 = vrot.lane.b32.xlu0 %v1763, 64
        %v1781 = vpop.permute.xlu0 %1780
        %1782 = vrot.lane.b32.xlu0 %v1764, 64
        %v1783 = vpop.permute.xlu0 %1782
        %1784 = vrot.lane.b32.xlu0 %v1765, 64
        %v1785 = vpop.permute.xlu0 %1784
        %1786 = vrot.lane.b32.xlu0 %v1766, 64
        %v1787 = vpop.permute.xlu0 %1786
        %1788 = vrot.lane.b32.xlu0 %v1767, 64
        %v1789 = vpop.permute.xlu0 %1788
        %1790 = vrot.lane.b32.xlu0 %v1768, 64
        %v1791 = vpop.permute.xlu0 %1790
        %1792 = vrot.lane.b32.xlu0 %v1769, 64
        %v1793 = vpop.permute.xlu0 %1792
        %1802 = vst.msk [vmem:[#allocation5] sm:$0xff] %vm487, %v1779
        %1803 = vst.msk [vmem:[#allocation5 + $0x18] sm:$0xff] %vm487, %v1781
        %1804 = vst.msk [vmem:[#allocation5 + $0x30] sm:$0xff] %vm487, %v1783
        %1805 = vst.msk [vmem:[#allocation5 + $0x48] sm:$0xff] %vm487, %v1785
        %1806 = vst.msk [vmem:[#allocation5 + $0x60] sm:$0xff] %vm487, %v1787
        %1807 = vst.msk [vmem:[#allocation5 + $0x78] sm:$0xff] %vm487, %v1789
        %1808 = vst.msk [vmem:[#allocation5 + $0x90] sm:$0xff] %vm487, %v1791
        %1809 = vst.msk [vmem:[#allocation5 + $0xa8] sm:$0xff] %vm487, %v1793
        %v1810 = vld [vmem:[%s1650] sm:$0xff]
        %v1811 = vld [vmem:[%s1650 + $0x10] sm:$0xff]
        %v1812 = vld [vmem:[%s1650 + $0x20] sm:$0xff]
        %v1813 = vld [vmem:[%s1650 + $0x30] sm:$0xff]
        %v1814 = vld [vmem:[%s1650 + $0x40] sm:$0xff]
        %v1815 = vld [vmem:[%s1650 + $0x50] sm:$0xff]
        %v1816 = vld [vmem:[%s1650 + $0x60] sm:$0xff]
        %v1817 = vld [vmem:[%s1650 + $0x70] sm:$0xff]
        %1826 = vrot.lane.b32.xlu0 %v1810, 96
        %v1827 = vpop.permute.xlu0 %1826
        %1828 = vrot.lane.b32.xlu0 %v1811, 96
        %v1829 = vpop.permute.xlu0 %1828
        %1830 = vrot.lane.b32.xlu0 %v1812, 96
        %v1831 = vpop.permute.xlu0 %1830
        %1832 = vrot.lane.b32.xlu0 %v1813, 96
        %v1833 = vpop.permute.xlu0 %1832
        %1834 = vrot.lane.b32.xlu0 %v1814, 96
        %v1835 = vpop.permute.xlu0 %1834
        %1836 = vrot.lane.b32.xlu0 %v1815, 96
        %v1837 = vpop.permute.xlu0 %1836
        %1838 = vrot.lane.b32.xlu0 %v1816, 96
        %v1839 = vpop.permute.xlu0 %1838
        %1840 = vrot.lane.b32.xlu0 %v1817, 96
        %v1841 = vpop.permute.xlu0 %1840
        %1850 = vst.msk [vmem:[#allocation5] sm:$0xff] %vm536, %v1827
        %1851 = vst.msk [vmem:[#allocation5 + $0x18] sm:$0xff] %vm536, %v1829
        %1852 = vst.msk [vmem:[#allocation5 + $0x30] sm:$0xff] %vm536, %v1831
        %1853 = vst.msk [vmem:[#allocation5 + $0x48] sm:$0xff] %vm536, %v1833
        %1854 = vst.msk [vmem:[#allocation5 + $0x60] sm:$0xff] %vm536, %v1835
        %1855 = vst.msk [vmem:[#allocation5 + $0x78] sm:$0xff] %vm536, %v1837
        %1856 = vst.msk [vmem:[#allocation5 + $0x90] sm:$0xff] %vm536, %v1839
        %1857 = vst.msk [vmem:[#allocation5 + $0xa8] sm:$0xff] %vm536, %v1841
        %v1858 = vld [vmem:[%s1650 + $0x1] sm:$0xff]
        %v1859 = vld [vmem:[%s1650 + $0x11] sm:$0xff]
        %v1860 = vld [vmem:[%s1650 + $0x21] sm:$0xff]
        %v1861 = vld [vmem:[%s1650 + $0x31] sm:$0xff]
        %v1862 = vld [vmem:[%s1650 + $0x41] sm:$0xff]
        %v1863 = vld [vmem:[%s1650 + $0x51] sm:$0xff]
        %v1864 = vld [vmem:[%s1650 + $0x61] sm:$0xff]
        %v1865 = vld [vmem:[%s1650 + $0x71] sm:$0xff]
        %1866 = vst.msk [vmem:[#allocation5 + $0x8] sm:$0xff] %vm250, %v1858
        %1867 = vst.msk [vmem:[#allocation5 + $0x20] sm:$0xff] %vm250, %v1859
        %1868 = vst.msk [vmem:[#allocation5 + $0x38] sm:$0xff] %vm250, %v1860
        %1869 = vst.msk [vmem:[#allocation5 + $0x50] sm:$0xff] %vm250, %v1861
        %1870 = vst.msk [vmem:[#allocation5 + $0x68] sm:$0xff] %vm250, %v1862
        %1871 = vst.msk [vmem:[#allocation5 + $0x80] sm:$0xff] %vm250, %v1863
        %1872 = vst.msk [vmem:[#allocation5 + $0x98] sm:$0xff] %vm250, %v1864
        %1873 = vst.msk [vmem:[#allocation5 + $0xb0] sm:$0xff] %vm250, %v1865
        %v1874 = vld [vmem:[%s1650 + $0x2] sm:$0xff]
        %v1875 = vld [vmem:[%s1650 + $0x12] sm:$0xff]
        %v1876 = vld [vmem:[%s1650 + $0x22] sm:$0xff]
        %v1877 = vld [vmem:[%s1650 + $0x32] sm:$0xff]
        %v1878 = vld [vmem:[%s1650 + $0x42] sm:$0xff]
        %v1879 = vld [vmem:[%s1650 + $0x52] sm:$0xff]
        %v1880 = vld [vmem:[%s1650 + $0x62] sm:$0xff]
        %v1881 = vld [vmem:[%s1650 + $0x72] sm:$0xff]
        %1890 = vrot.lane.b32.xlu0 %v1874, 32
        %v1891 = vpop.permute.xlu0 %1890
        %1892 = vrot.lane.b32.xlu0 %v1875, 32
        %v1893 = vpop.permute.xlu0 %1892
        %1894 = vrot.lane.b32.xlu0 %v1876, 32
        %v1895 = vpop.permute.xlu0 %1894
        %1896 = vrot.lane.b32.xlu0 %v1877, 32
        %v1897 = vpop.permute.xlu0 %1896
        %1898 = vrot.lane.b32.xlu0 %v1878, 32
        %v1899 = vpop.permute.xlu0 %1898
        %1900 = vrot.lane.b32.xlu0 %v1879, 32
        %v1901 = vpop.permute.xlu0 %1900
        %1902 = vrot.lane.b32.xlu0 %v1880, 32
        %v1903 = vpop.permute.xlu0 %1902
        %1904 = vrot.lane.b32.xlu0 %v1881, 32
        %v1905 = vpop.permute.xlu0 %1904
        %1914 = vst.msk [vmem:[#allocation5 + $0x8] sm:$0xff] %vm438, %v1891
        %1915 = vst.msk [vmem:[#allocation5 + $0x20] sm:$0xff] %vm438, %v1893
        %1916 = vst.msk [vmem:[#allocation5 + $0x38] sm:$0xff] %vm438, %v1895
        %1917 = vst.msk [vmem:[#allocation5 + $0x50] sm:$0xff] %vm438, %v1897
        %1918 = vst.msk [vmem:[#allocation5 + $0x68] sm:$0xff] %vm438, %v1899
        %1919 = vst.msk [vmem:[#allocation5 + $0x80] sm:$0xff] %vm438, %v1901
        %1920 = vst.msk [vmem:[#allocation5 + $0x98] sm:$0xff] %vm438, %v1903
        %1921 = vst.msk [vmem:[#allocation5 + $0xb0] sm:$0xff] %vm438, %v1905
        %s1922 = scalar_lea.vmem [#allocation4], 32
        %v1923 = vld [vmem:[%s1922] sm:$0xff]
        %v1924 = vld [vmem:[%s1922 + $0x10] sm:$0xff]
        %v1925 = vld [vmem:[%s1922 + $0x20] sm:$0xff]
        %v1926 = vld [vmem:[%s1922 + $0x30] sm:$0xff]
        %v1927 = vld [vmem:[%s1922 + $0x40] sm:$0xff]
        %v1928 = vld [vmem:[%s1922 + $0x50] sm:$0xff]
        %v1929 = vld [vmem:[%s1922 + $0x60] sm:$0xff]
        %v1930 = vld [vmem:[%s1922 + $0x70] sm:$0xff]
        %1939 = vrot.lane.b32.xlu0 %v1923, 64
        %v1940 = vpop.permute.xlu0 %1939
        %1941 = vrot.lane.b32.xlu0 %v1924, 64
        %v1942 = vpop.permute.xlu0 %1941
        %1943 = vrot.lane.b32.xlu0 %v1925, 64
        %v1944 = vpop.permute.xlu0 %1943
        %1945 = vrot.lane.b32.xlu0 %v1926, 64
        %v1946 = vpop.permute.xlu0 %1945
        %1947 = vrot.lane.b32.xlu0 %v1927, 64
        %v1948 = vpop.permute.xlu0 %1947
        %1949 = vrot.lane.b32.xlu0 %v1928, 64
        %v1950 = vpop.permute.xlu0 %1949
        %1951 = vrot.lane.b32.xlu0 %v1929, 64
        %v1952 = vpop.permute.xlu0 %1951
        %1953 = vrot.lane.b32.xlu0 %v1930, 64
        %v1954 = vpop.permute.xlu0 %1953
        %1963 = vst.msk [vmem:[#allocation5 + $0x8] sm:$0xff] %vm487, %v1940
        %1964 = vst.msk [vmem:[#allocation5 + $0x20] sm:$0xff] %vm487, %v1942
        %1965 = vst.msk [vmem:[#allocation5 + $0x38] sm:$0xff] %vm487, %v1944
        %1966 = vst.msk [vmem:[#allocation5 + $0x50] sm:$0xff] %vm487, %v1946
        %1967 = vst.msk [vmem:[#allocation5 + $0x68] sm:$0xff] %vm487, %v1948
        %1968 = vst.msk [vmem:[#allocation5 + $0x80] sm:$0xff] %vm487, %v1950
        %1969 = vst.msk [vmem:[#allocation5 + $0x98] sm:$0xff] %vm487, %v1952
        %1970 = vst.msk [vmem:[#allocation5 + $0xb0] sm:$0xff] %vm487, %v1954
        %v1971 = vld [vmem:[%s1922 + $0x1] sm:$0xff]
        %v1972 = vld [vmem:[%s1922 + $0x11] sm:$0xff]
        %v1973 = vld [vmem:[%s1922 + $0x21] sm:$0xff]
        %v1974 = vld [vmem:[%s1922 + $0x31] sm:$0xff]
        %v1975 = vld [vmem:[%s1922 + $0x41] sm:$0xff]
        %v1976 = vld [vmem:[%s1922 + $0x51] sm:$0xff]
        %v1977 = vld [vmem:[%s1922 + $0x61] sm:$0xff]
        %v1978 = vld [vmem:[%s1922 + $0x71] sm:$0xff]
        %1987 = vrot.lane.b32.xlu0 %v1971, 96
        %v1988 = vpop.permute.xlu0 %1987
        %1989 = vrot.lane.b32.xlu0 %v1972, 96
        %v1990 = vpop.permute.xlu0 %1989
        %1991 = vrot.lane.b32.xlu0 %v1973, 96
        %v1992 = vpop.permute.xlu0 %1991
        %1993 = vrot.lane.b32.xlu0 %v1974, 96
        %v1994 = vpop.permute.xlu0 %1993
        %1995 = vrot.lane.b32.xlu0 %v1975, 96
        %v1996 = vpop.permute.xlu0 %1995
        %1997 = vrot.lane.b32.xlu0 %v1976, 96
        %v1998 = vpop.permute.xlu0 %1997
        %1999 = vrot.lane.b32.xlu0 %v1977, 96
        %v2000 = vpop.permute.xlu0 %1999
        %2001 = vrot.lane.b32.xlu0 %v1978, 96
        %v2002 = vpop.permute.xlu0 %2001
        %2011 = vst.msk [vmem:[#allocation5 + $0x8] sm:$0xff] %vm536, %v1988
        %2012 = vst.msk [vmem:[#allocation5 + $0x20] sm:$0xff] %vm536, %v1990
        %2013 = vst.msk [vmem:[#allocation5 + $0x38] sm:$0xff] %vm536, %v1992
        %2014 = vst.msk [vmem:[#allocation5 + $0x50] sm:$0xff] %vm536, %v1994
        %2015 = vst.msk [vmem:[#allocation5 + $0x68] sm:$0xff] %vm536, %v1996
        %2016 = vst.msk [vmem:[#allocation5 + $0x80] sm:$0xff] %vm536, %v1998
        %2017 = vst.msk [vmem:[#allocation5 + $0x98] sm:$0xff] %vm536, %v2000
        %2018 = vst.msk [vmem:[#allocation5 + $0xb0] sm:$0xff] %vm536, %v2002
        %v2019 = vld [vmem:[%s1922 + $0x2] sm:$0xff]
        %v2020 = vld [vmem:[%s1922 + $0x12] sm:$0xff]
        %v2021 = vld [vmem:[%s1922 + $0x22] sm:$0xff]
        %v2022 = vld [vmem:[%s1922 + $0x32] sm:$0xff]
        %v2023 = vld [vmem:[%s1922 + $0x42] sm:$0xff]
        %v2024 = vld [vmem:[%s1922 + $0x52] sm:$0xff]
        %v2025 = vld [vmem:[%s1922 + $0x62] sm:$0xff]
        %v2026 = vld [vmem:[%s1922 + $0x72] sm:$0xff]
        %2027 = vst.msk [vmem:[#allocation5 + $0x10] sm:$0xff] %vm250, %v2019
        %2028 = vst.msk [vmem:[#allocation5 + $0x28] sm:$0xff] %vm250, %v2020
        %2029 = vst.msk [vmem:[#allocation5 + $0x40] sm:$0xff] %vm250, %v2021
        %2030 = vst.msk [vmem:[#allocation5 + $0x58] sm:$0xff] %vm250, %v2022
        %2031 = vst.msk [vmem:[#allocation5 + $0x70] sm:$0xff] %vm250, %v2023
        %2032 = vst.msk [vmem:[#allocation5 + $0x88] sm:$0xff] %vm250, %v2024
        %2033 = vst.msk [vmem:[#allocation5 + $0xa0] sm:$0xff] %vm250, %v2025
        %2034 = vst.msk [vmem:[#allocation5 + $0xb8] sm:$0xff] %vm250, %v2026
        %v2035 = vld [vmem:[#allocation5] sm:$0xff]
        %v2036 = vld [vmem:[#allocation5 + $0x8] sm:$0xff]
        %v2037 = vld [vmem:[#allocation5 + $0x10] sm:$0xff]
        %v2038 = vld [vmem:[#allocation5 + $0x18] sm:$0xff]
        %v2039 = vld [vmem:[#allocation5 + $0x20] sm:$0xff]
        %v2040 = vld [vmem:[#allocation5 + $0x28] sm:$0xff]
        %v2041 = vld [vmem:[#allocation5 + $0x30] sm:$0xff]
        %v2042 = vld [vmem:[#allocation5 + $0x38] sm:$0xff]
        %v2043 = vld [vmem:[#allocation5 + $0x40] sm:$0xff]
        %v2044 = vld [vmem:[#allocation5 + $0x48] sm:$0xff]
        %v2045 = vld [vmem:[#allocation5 + $0x50] sm:$0xff]
        %v2046 = vld [vmem:[#allocation5 + $0x58] sm:$0xff]
        %v2047 = vld [vmem:[#allocation5 + $0x60] sm:$0xff]
        %v2048 = vld [vmem:[#allocation5 + $0x68] sm:$0xff]
        %v2049 = vld [vmem:[#allocation5 + $0x70] sm:$0xff]
        %v2050 = vld [vmem:[#allocation5 + $0x78] sm:$0xff]
        %v2051 = vld [vmem:[#allocation5 + $0x80] sm:$0xff]
        %v2052 = vld [vmem:[#allocation5 + $0x88] sm:$0xff]
        %v2053 = vld [vmem:[#allocation5 + $0x90] sm:$0xff]
        %v2054 = vld [vmem:[#allocation5 + $0x98] sm:$0xff]
        %v2055 = vld [vmem:[#allocation5 + $0xa0] sm:$0xff]
        %v2056 = vld [vmem:[#allocation5 + $0xa8] sm:$0xff]
        %v2057 = vld [vmem:[#allocation5 + $0xb0] sm:$0xff]
        %v2058 = vld [vmem:[#allocation5 + $0xb8] sm:$0xff]
        %v2060 = vlaneseq
        %v2061 = vshrl.u32 %v2060, 7
        %v2062 = vsub.s32 0, %v2061
        %v2063 = vrot.slane %v1697, %v2062
        %v2066 = vsel %vm250, %v2037, 0
        %v2069 = vsel %vm250, %v2040, 0
        %v2072 = vsel %vm250, %v2043, 0
        %v2075 = vsel %vm250, %v2046, 0
        %v2078 = vsel %vm250, %v2049, 0
        %v2081 = vsel %vm250, %v2052, 0
        %v2084 = vsel %vm250, %v2055, 0
        %v2087 = vsel %vm250, %v2058, 0
        %2089 = vmatprep.subr.mxu0 0.0
        %2090 = vmatpush1.msra.mxu0 %v1660
        %2091 = vmatprep.subr.mxu0 0.0
        %2092 = vmatpush1.msra.mxu0 %v1661
        %2093 = vmatprep.subr.mxu0 0.0
        %2094 = vmatpush1.msra.mxu0 %v1662
        %2095 = vmatprep.subr.mxu0 0.0
        %2096 = vmatpush1.msra.mxu0 %v1663
        %2097 = vmatprep.subr.mxu0 0.0
        %2098 = vmatpush1.msra.mxu0 %v1664
        %2099 = vmatprep.subr.mxu0 0.0
        %2100 = vmatpush1.msra.mxu0 %v1665
        %2101 = vmatprep.subr.mxu0 0.0
        %2102 = vmatpush1.msra.mxu0 %v1666
        %2103 = vmatprep.subr.mxu0 0.0
        %2104 = vmatpush1.msra.mxu0 %v1667
        %2105 = vmatprep.subr.mxu0 0.0
        %2106 = vmatpush1.msra.mxu0 %v1668
        %2107 = vmatprep.subr.mxu0 0.0
        %2108 = vmatpush1.msra.mxu0 %v1669
        %2109 = vmatprep.subr.mxu0 0.0
        %2110 = vmatpush1.msra.mxu0 %v1670
        %2111 = vmatprep.subr.mxu0 0.0
        %2112 = vmatpush1.msra.mxu0 %v1671
        %2113 = vmatprep.subr.mxu0 0.0
        %2114 = vmatpush1.msra.mxu0 %v1672
        %2115 = vmatprep.subr.mxu0 0.0
        %2116 = vmatpush1.msra.mxu0 %v1673
        %2117 = vmatprep.subr.mxu0 0.0
        %2118 = vmatpush1.msra.mxu0 %v1674
        %2119 = vmatprep.subr.mxu0 0.0
        %2120 = vmatpush1.msra.mxu0 %v1675
        %2121 = vmatprep.subr.mxu0 0.0
        %2122 = vmatpush1.msra.mxu0 %v1676
        %2123 = vmatprep.subr.mxu0 0.0
        %2124 = vmatpush1.msra.mxu0 %v1677
        %2125 = vmatprep.subr.mxu0 0.0
        %2126 = vmatpush1.msra.mxu0 %v1678
        %2127 = vmatprep.subr.mxu0 0.0
        %2128 = vmatpush1.msra.mxu0 %v1679
        %2129 = vmatprep.subr.mxu0 0.0
        %2130 = vmatpush1.msra.mxu0 %v1680
        %2131 = vmatprep.subr.mxu0 0.0
        %2132 = vmatpush1.msra.mxu0 %v1681
        %2133 = vmatprep.subr.mxu0 0.0
        %2134 = vmatpush1.msra.mxu0 %v1682
        %2135 = vmatprep.subr.mxu0 0.0
        %2136 = vmatpush1.msra.mxu0 %v1683
        %2137 = vmatprep.subr.mxu0 0.0
        %2138 = vmatpush1.msra.mxu0 %v1684
        %2139 = vmatprep.subr.mxu0 0.0
        %2140 = vmatpush1.msra.mxu0 %v1685
        %2141 = vmatprep.subr.mxu0 0.0
        %2142 = vmatpush1.msra.mxu0 %v1686
        %2143 = vmatprep.subr.mxu0 0.0
        %2144 = vmatpush1.msra.mxu0 %v1687
        %2145 = vmatprep.subr.mxu0 0.0
        %2146 = vmatpush1.msra.mxu0 %v1688
        %2147 = vmatprep.subr.mxu0 0.0
        %2148 = vmatpush1.msra.mxu0 %v1689
        %2149 = vmatprep.subr.mxu0 0.0
        %2150 = vmatpush1.msra.mxu0 %v1690
        %2151 = vmatprep.subr.mxu0 0.0
        %2152 = vmatpush1.msra.mxu0 %v1691
        %2153 = vmatprep.mubr.f32.mxu0 %v2036
        %2154 = vmatmul.mubr.f32.gmra.mrb[0].mxu0 %v2035
        %v2155 = vpop.f32.mrb[0].mxu0
        %v2156 = vadd.f32 %v2063, %v2155
        %v2157 = vpop.f32.mrb[0].mxu0
        %2158 = vmatprep.mubr.f32.mxu0 %v2039
        %2159 = vmatmul.mubr.f32.gmra.mrb[0].mxu0 %v2038
        %v2160 = vpop.f32.mrb[0].mxu0
        %v2161 = vadd.f32 %v2063, %v2160
        %v2162 = vpop.f32.mrb[0].mxu0
        %2163 = vmatprep.mubr.f32.mxu0 %v2042
        %2164 = vmatmul.mubr.f32.gmra.mrb[0].mxu0 %v2041
        %v2165 = vpop.f32.mrb[0].mxu0
        %v2166 = vadd.f32 %v2063, %v2165
        %v2167 = vpop.f32.mrb[0].mxu0
        %2168 = vmatprep.mubr.f32.mxu0 %v2045
        %2169 = vmatmul.mubr.f32.gmra.mrb[0].mxu0 %v2044
        %v2170 = vpop.f32.mrb[0].mxu0
        %v2171 = vadd.f32 %v2063, %v2170
        %v2172 = vpop.f32.mrb[0].mxu0
        %2173 = vmatprep.mubr.f32.mxu0 %v2048
        %2174 = vmatmul.mubr.f32.gmra.mrb[0].mxu0 %v2047
        %v2175 = vpop.f32.mrb[0].mxu0
        %v2176 = vadd.f32 %v2063, %v2175
        %v2177 = vpop.f32.mrb[0].mxu0
        %2178 = vmatprep.mubr.f32.mxu0 %v2051
        %2179 = vmatmul.mubr.f32.gmra.mrb[0].mxu0 %v2050
        %v2180 = vpop.f32.mrb[0].mxu0
        %v2181 = vadd.f32 %v2063, %v2180
        %v2182 = vpop.f32.mrb[0].mxu0
        %2183 = vmatprep.mubr.f32.mxu0 %v2054
        %2184 = vmatmul.mubr.f32.gmra.mrb[0].mxu0 %v2053
        %v2185 = vpop.f32.mrb[0].mxu0
        %v2186 = vadd.f32 %v2063, %v2185
        %v2187 = vpop.f32.mrb[0].mxu0
        %2188 = vmatprep.mubr.f32.mxu0 %v2057
        %2189 = vmatmul.mubr.f32.gmra.mrb[0].mxu0 %v2056
        %v2190 = vpop.f32.mrb[0].mxu0
        %v2191 = vadd.f32 %v2063, %v2190
        %v2192 = vpop.f32.mrb[0].mxu0
        %2193 = vdwg.mxu0
        %2194 = vmatprep.subr.mxu0 0.0
        %2195 = vmatpush1.msra.mxu0 %v1692
        %2196 = vmatprep.subr.mxu0 0.0
        %2197 = vmatpush1.msra.mxu0 %v1693
        %2198 = vmatprep.subr.mxu0 0.0
        %2199 = vmatpush1.msra.mxu0 %v1694
        %2200 = vmatprep.subr.mxu0 0.0
        %2201 = vmatpush1.msra.mxu0 %v1695
        %2202 = vmatprep.subr.mxu0 0.0
        %2203 = vmatpush1.msra.mxu0 0.0
        %2204 = vmatprep.subr.mxu0 0.0
        %2205 = vmatpush1.msra.mxu0 0.0
        %2206 = vmatprep.subr.mxu0 0.0
        %2207 = vmatpush1.msra.mxu0 0.0
        %2208 = vmatprep.subr.mxu0 0.0
        %2209 = vmatpush1.msra.mxu0 0.0
        %2210 = vmatprep.subr.mxu0 0.0
        %2211 = vmatpush1.msra.mxu0 0.0
        %2212 = vmatprep.subr.mxu0 0.0
        %2213 = vmatpush1.msra.mxu0 0.0
        %2214 = vmatprep.subr.mxu0 0.0
        %2215 = vmatpush1.msra.mxu0 0.0
        %2216 = vmatprep.subr.mxu0 0.0
        %2217 = vmatpush1.msra.mxu0 0.0
        %2218 = vmatprep.subr.mxu0 0.0
        %2219 = vmatpush1.msra.mxu0 0.0
        %2220 = vmatprep.subr.mxu0 0.0
        %2221 = vmatpush1.msra.mxu0 0.0
        %2222 = vmatprep.subr.mxu0 0.0
        %2223 = vmatpush1.msra.mxu0 0.0
        %2224 = vmatprep.subr.mxu0 0.0
        %2225 = vmatpush1.msra.mxu0 0.0
        %2226 = vmatprep.subr.mxu0 0.0
        %2227 = vmatpush1.msra.mxu0 0.0
        %2228 = vmatprep.subr.mxu0 0.0
        %2229 = vmatpush1.msra.mxu0 0.0
        %2230 = vmatprep.subr.mxu0 0.0
        %2231 = vmatpush1.msra.mxu0 0.0
        %2232 = vmatprep.subr.mxu0 0.0
        %2233 = vmatpush1.msra.mxu0 0.0
        %2234 = vmatprep.subr.mxu0 0.0
        %2235 = vmatpush1.msra.mxu0 0.0
        %2236 = vmatprep.subr.mxu0 0.0
        %2237 = vmatpush1.msra.mxu0 0.0
        %2238 = vmatprep.subr.mxu0 0.0
        %2239 = vmatpush1.msra.mxu0 0.0
        %2240 = vmatprep.subr.mxu0 0.0
        %2241 = vmatpush1.msra.mxu0 0.0
        %2242 = vmatprep.subr.mxu0 0.0
        %2243 = vmatpush1.msra.mxu0 0.0
        %2244 = vmatprep.subr.mxu0 0.0
        %2245 = vmatpush1.msra.mxu0 0.0
        %2246 = vmatprep.subr.mxu0 0.0
        %2247 = vmatpush1.msra.mxu0 0.0
        %2248 = vmatprep.subr.mxu0 0.0
        %2249 = vmatpush1.msra.mxu0 0.0
        %2250 = vmatprep.subr.mxu0 0.0
        %2251 = vmatpush1.msra.mxu0 0.0
        %2252 = vmatprep.subr.mxu0 0.0
        %2253 = vmatpush1.msra.mxu0 0.0
        %2254 = vmatprep.subr.mxu0 0.0
        %2255 = vmatpush1.msra.mxu0 0.0
        %2256 = vmatprep.subr.mxu0 0.0
        %2257 = vmatpush1.msra.mxu0 0.0
        %2258 = vmatprep.mubr.f32.mxu0 0.0
        %2259 = vmatmul.mubr.f32.gmra.mrb[0].mxu0 %v2066
        %v2260 = vpop.f32.mrb[0].mxu0
        %v2261 = vadd.f32 %v2156, %v2260
        %v2262 = vpop.f32.mrb[0].mxu0
        %2263 = vmatprep.mubr.f32.mxu0 0.0
        %2264 = vmatmul.mubr.f32.gmra.mrb[0].mxu0 %v2069
        %v2265 = vpop.f32.mrb[0].mxu0
        %v2266 = vadd.f32 %v2161, %v2265
        %v2267 = vpop.f32.mrb[0].mxu0
        %2268 = vmatprep.mubr.f32.mxu0 0.0
        %2269 = vmatmul.mubr.f32.gmra.mrb[0].mxu0 %v2072
        %v2270 = vpop.f32.mrb[0].mxu0
        %v2271 = vadd.f32 %v2166, %v2270
        %v2272 = vpop.f32.mrb[0].mxu0
        %2273 = vmatprep.mubr.f32.mxu0 0.0
        %2274 = vmatmul.mubr.f32.gmra.mrb[0].mxu0 %v2075
        %v2275 = vpop.f32.mrb[0].mxu0
        %v2276 = vadd.f32 %v2171, %v2275
        %v2277 = vpop.f32.mrb[0].mxu0
        %2278 = vmatprep.mubr.f32.mxu0 0.0
        %2279 = vmatmul.mubr.f32.gmra.mrb[0].mxu0 %v2078
        %v2280 = vpop.f32.mrb[0].mxu0
        %v2281 = vadd.f32 %v2176, %v2280
        %v2282 = vpop.f32.mrb[0].mxu0
        %2283 = vmatprep.mubr.f32.mxu0 0.0
        %2284 = vmatmul.mubr.f32.gmra.mrb[0].mxu0 %v2081
        %v2285 = vpop.f32.mrb[0].mxu0
        %v2286 = vadd.f32 %v2181, %v2285
        %v2287 = vpop.f32.mrb[0].mxu0
        %2288 = vmatprep.mubr.f32.mxu0 0.0
        %2289 = vmatmul.mubr.f32.gmra.mrb[0].mxu0 %v2084
        %v2290 = vpop.f32.mrb[0].mxu0
        %v2291 = vadd.f32 %v2186, %v2290
        %v2292 = vpop.f32.mrb[0].mxu0
        %2293 = vmatprep.mubr.f32.mxu0 0.0
        %2294 = vmatmul.mubr.f32.gmra.mrb[0].mxu0 %v2087
        %v2295 = vpop.f32.mrb[0].mxu0
        %v2296 = vadd.f32 %v2191, %v2295
        %v2297 = vpop.f32.mrb[0].mxu0
        %2298 = vdwg.mxu0
        %v2299 = vmax.f32 %v2261, 0.0
        %v2300 = vmax.f32 %v2266, 0.0
        %v2301 = vmax.f32 %v2271, 0.0
        %v2302 = vmax.f32 %v2276, 0.0
        %v2303 = vmax.f32 %v2281, 0.0
        %v2304 = vmax.f32 %v2286, 0.0
        %v2305 = vmax.f32 %v2291, 0.0
        %v2306 = vmax.f32 %v2296, 0.0
        %2307 = vst.msk [vmem:[%s994 + $0x1] sm:$0xff] %vm250, %v2299
        %2308 = vst.msk [vmem:[%s994 + $0x11] sm:$0xff] %vm250, %v2300
        %2309 = vst.msk [vmem:[%s994 + $0x21] sm:$0xff] %vm250, %v2301
        %2310 = vst.msk [vmem:[%s994 + $0x31] sm:$0xff] %vm250, %v2302
        %2311 = vst.msk [vmem:[%s994 + $0x41] sm:$0xff] %vm250, %v2303
        %2312 = vst.msk [vmem:[%s994 + $0x51] sm:$0xff] %vm250, %v2304
        %2313 = vst.msk [vmem:[%s994 + $0x61] sm:$0xff] %vm250, %v2305
        %2314 = vst.msk [vmem:[%s994 + $0x71] sm:$0xff] %vm250, %v2306
        %s2315 = scalar_lea.vmem %s2, 576
        %v2316 = vld [vmem:[%s2315] sm:$0xff]
        %v2317 = vld [vmem:[%s2315 + $0x8] sm:$0xff]
        %v2318 = vld [vmem:[%s2315 + $0x10] sm:$0xff]
        %v2319 = vld [vmem:[%s2315 + $0x18] sm:$0xff]
        %v2320 = vld [vmem:[%s2315 + $0x20] sm:$0xff]
        %v2321 = vld [vmem:[%s2315 + $0x28] sm:$0xff]
        %v2322 = vld [vmem:[%s2315 + $0x30] sm:$0xff]
        %v2323 = vld [vmem:[%s2315 + $0x38] sm:$0xff]
        %v2324 = vld [vmem:[%s2315 + $0x40] sm:$0xff]
        %v2325 = vld [vmem:[%s2315 + $0x48] sm:$0xff]
        %v2326 = vld [vmem:[%s2315 + $0x50] sm:$0xff]
        %v2327 = vld [vmem:[%s2315 + $0x58] sm:$0xff]
        %v2328 = vld [vmem:[%s2315 + $0x60] sm:$0xff]
        %v2329 = vld [vmem:[%s2315 + $0x68] sm:$0xff]
        %v2330 = vld [vmem:[%s2315 + $0x70] sm:$0xff]
        %v2331 = vld [vmem:[%s2315 + $0x78] sm:$0xff]
        %v2332 = vld [vmem:[%s2315 + $0x80] sm:$0xff]
        %v2333 = vld [vmem:[%s2315 + $0x88] sm:$0xff]
        %v2334 = vld [vmem:[%s2315 + $0x90] sm:$0xff]
        %v2335 = vld [vmem:[%s2315 + $0x98] sm:$0xff]
        %v2336 = vld [vmem:[%s2315 + $0xa0] sm:$0xff]
        %v2337 = vld [vmem:[%s2315 + $0xa8] sm:$0xff]
        %v2338 = vld [vmem:[%s2315 + $0xb0] sm:$0xff]
        %v2339 = vld [vmem:[%s2315 + $0xb8] sm:$0xff]
        %v2340 = vld [vmem:[%s2315 + $0xc0] sm:$0xff]
        %v2341 = vld [vmem:[%s2315 + $0xc8] sm:$0xff]
        %v2342 = vld [vmem:[%s2315 + $0xd0] sm:$0xff]
        %v2343 = vld [vmem:[%s2315 + $0xd8] sm:$0xff]
        %v2344 = vld [vmem:[%s2315 + $0xe0] sm:$0xff]
        %v2345 = vld [vmem:[%s2315 + $0xe8] sm:$0xff]
        %v2346 = vld [vmem:[%s2315 + $0xf0] sm:$0xff]
        %v2347 = vld [vmem:[%s2315 + $0xf8] sm:$0xff]
        %v2348 = vld [vmem:[%s2315 + $0x100] sm:$0xff]
        %v2349 = vld [vmem:[%s2315 + $0x108] sm:$0xff]
        %v2350 = vld [vmem:[%s2315 + $0x110] sm:$0xff]
        %v2351 = vld [vmem:[%s2315 + $0x118] sm:$0xff]
        %s2352 = scalar_lea.vmem %s4, 3
        %v2353 = vld [vmem:[%s2352] sm:$0x1]
        %v2354 = vld [vmem:[#allocation3] sm:$0xff]
        %v2355 = vld [vmem:[#allocation3 + $0x10] sm:$0xff]
        %v2356 = vld [vmem:[#allocation3 + $0x20] sm:$0xff]
        %v2357 = vld [vmem:[#allocation3 + $0x30] sm:$0xff]
        %v2358 = vld [vmem:[#allocation3 + $0x40] sm:$0xff]
        %v2359 = vld [vmem:[#allocation3 + $0x50] sm:$0xff]
        %v2360 = vld [vmem:[#allocation3 + $0x60] sm:$0xff]
        %v2361 = vld [vmem:[#allocation3 + $0x70] sm:$0xff]
        %2362 = vst.msk [vmem:[#allocation5] sm:$0xff] %vm250, %v2354
        %2363 = vst.msk [vmem:[#allocation5 + $0x18] sm:$0xff] %vm250, %v2355
        %2364 = vst.msk [vmem:[#allocation5 + $0x30] sm:$0xff] %vm250, %v2356
        %2365 = vst.msk [vmem:[#allocation5 + $0x48] sm:$0xff] %vm250, %v2357
        %2366 = vst.msk [vmem:[#allocation5 + $0x60] sm:$0xff] %vm250, %v2358
        %2367 = vst.msk [vmem:[#allocation5 + $0x78] sm:$0xff] %vm250, %v2359
        %2368 = vst.msk [vmem:[#allocation5 + $0x90] sm:$0xff] %vm250, %v2360
        %2369 = vst.msk [vmem:[#allocation5 + $0xa8] sm:$0xff] %vm250, %v2361
        %v2370 = vld [vmem:[#allocation3 + $0x1] sm:$0xff]
        %v2371 = vld [vmem:[#allocation3 + $0x11] sm:$0xff]
        %v2372 = vld [vmem:[#allocation3 + $0x21] sm:$0xff]
        %v2373 = vld [vmem:[#allocation3 + $0x31] sm:$0xff]
        %v2374 = vld [vmem:[#allocation3 + $0x41] sm:$0xff]
        %v2375 = vld [vmem:[#allocation3 + $0x51] sm:$0xff]
        %v2376 = vld [vmem:[#allocation3 + $0x61] sm:$0xff]
        %v2377 = vld [vmem:[#allocation3 + $0x71] sm:$0xff]
        %2386 = vrot.lane.b32.xlu0 %v2370, 32
        %v2387 = vpop.permute.xlu0 %2386
        %2388 = vrot.lane.b32.xlu0 %v2371, 32
        %v2389 = vpop.permute.xlu0 %2388
        %2390 = vrot.lane.b32.xlu0 %v2372, 32
        %v2391 = vpop.permute.xlu0 %2390
        %2392 = vrot.lane.b32.xlu0 %v2373, 32
        %v2393 = vpop.permute.xlu0 %2392
        %2394 = vrot.lane.b32.xlu0 %v2374, 32
        %v2395 = vpop.permute.xlu0 %2394
        %2396 = vrot.lane.b32.xlu0 %v2375, 32
        %v2397 = vpop.permute.xlu0 %2396
        %2398 = vrot.lane.b32.xlu0 %v2376, 32
        %v2399 = vpop.permute.xlu0 %2398
        %2400 = vrot.lane.b32.xlu0 %v2377, 32
        %v2401 = vpop.permute.xlu0 %2400
        %2410 = vst.msk [vmem:[#allocation5] sm:$0xff] %vm438, %v2387
        %2411 = vst.msk [vmem:[#allocation5 + $0x18] sm:$0xff] %vm438, %v2389
        %2412 = vst.msk [vmem:[#allocation5 + $0x30] sm:$0xff] %vm438, %v2391
        %2413 = vst.msk [vmem:[#allocation5 + $0x48] sm:$0xff] %vm438, %v2393
        %2414 = vst.msk [vmem:[#allocation5 + $0x60] sm:$0xff] %vm438, %v2395
        %2415 = vst.msk [vmem:[#allocation5 + $0x78] sm:$0xff] %vm438, %v2397
        %2416 = vst.msk [vmem:[#allocation5 + $0x90] sm:$0xff] %vm438, %v2399
        %2417 = vst.msk [vmem:[#allocation5 + $0xa8] sm:$0xff] %vm438, %v2401
        %v2418 = vld [vmem:[#allocation3 + $0x2] sm:$0xff]
        %v2419 = vld [vmem:[#allocation3 + $0x12] sm:$0xff]
        %v2420 = vld [vmem:[#allocation3 + $0x22] sm:$0xff]
        %v2421 = vld [vmem:[#allocation3 + $0x32] sm:$0xff]
        %v2422 = vld [vmem:[#allocation3 + $0x42] sm:$0xff]
        %v2423 = vld [vmem:[#allocation3 + $0x52] sm:$0xff]
        %v2424 = vld [vmem:[#allocation3 + $0x62] sm:$0xff]
        %v2425 = vld [vmem:[#allocation3 + $0x72] sm:$0xff]
        %2434 = vrot.lane.b32.xlu0 %v2418, 64
        %v2435 = vpop.permute.xlu0 %2434
        %2436 = vrot.lane.b32.xlu0 %v2419, 64
        %v2437 = vpop.permute.xlu0 %2436
        %2438 = vrot.lane.b32.xlu0 %v2420, 64
        %v2439 = vpop.permute.xlu0 %2438
        %2440 = vrot.lane.b32.xlu0 %v2421, 64
        %v2441 = vpop.permute.xlu0 %2440
        %2442 = vrot.lane.b32.xlu0 %v2422, 64
        %v2443 = vpop.permute.xlu0 %2442
        %2444 = vrot.lane.b32.xlu0 %v2423, 64
        %v2445 = vpop.permute.xlu0 %2444
        %2446 = vrot.lane.b32.xlu0 %v2424, 64
        %v2447 = vpop.permute.xlu0 %2446
        %2448 = vrot.lane.b32.xlu0 %v2425, 64
        %v2449 = vpop.permute.xlu0 %2448
        %2458 = vst.msk [vmem:[#allocation5] sm:$0xff] %vm487, %v2435
        %2459 = vst.msk [vmem:[#allocation5 + $0x18] sm:$0xff] %vm487, %v2437
        %2460 = vst.msk [vmem:[#allocation5 + $0x30] sm:$0xff] %vm487, %v2439
        %2461 = vst.msk [vmem:[#allocation5 + $0x48] sm:$0xff] %vm487, %v2441
        %2462 = vst.msk [vmem:[#allocation5 + $0x60] sm:$0xff] %vm487, %v2443
        %2463 = vst.msk [vmem:[#allocation5 + $0x78] sm:$0xff] %vm487, %v2445
        %2464 = vst.msk [vmem:[#allocation5 + $0x90] sm:$0xff] %vm487, %v2447
        %2465 = vst.msk [vmem:[#allocation5 + $0xa8] sm:$0xff] %vm487, %v2449
        %v2466 = vld [vmem:[%s994] sm:$0xff]
        %v2467 = vld [vmem:[%s994 + $0x10] sm:$0xff]
        %v2468 = vld [vmem:[%s994 + $0x20] sm:$0xff]
        %v2469 = vld [vmem:[%s994 + $0x30] sm:$0xff]
        %v2470 = vld [vmem:[%s994 + $0x40] sm:$0xff]
        %v2471 = vld [vmem:[%s994 + $0x50] sm:$0xff]
        %v2472 = vld [vmem:[%s994 + $0x60] sm:$0xff]
        %v2473 = vld [vmem:[%s994 + $0x70] sm:$0xff]
        %2482 = vrot.lane.b32.xlu0 %v2466, 96
        %v2483 = vpop.permute.xlu0 %2482
        %2484 = vrot.lane.b32.xlu0 %v2467, 96
        %v2485 = vpop.permute.xlu0 %2484
        %2486 = vrot.lane.b32.xlu0 %v2468, 96
        %v2487 = vpop.permute.xlu0 %2486
        %2488 = vrot.lane.b32.xlu0 %v2469, 96
        %v2489 = vpop.permute.xlu0 %2488
        %2490 = vrot.lane.b32.xlu0 %v2470, 96
        %v2491 = vpop.permute.xlu0 %2490
        %2492 = vrot.lane.b32.xlu0 %v2471, 96
        %v2493 = vpop.permute.xlu0 %2492
        %2494 = vrot.lane.b32.xlu0 %v2472, 96
        %v2495 = vpop.permute.xlu0 %2494
        %2496 = vrot.lane.b32.xlu0 %v2473, 96
        %v2497 = vpop.permute.xlu0 %2496
        %2506 = vst.msk [vmem:[#allocation5] sm:$0xff] %vm536, %v2483
        %2507 = vst.msk [vmem:[#allocation5 + $0x18] sm:$0xff] %vm536, %v2485
        %2508 = vst.msk [vmem:[#allocation5 + $0x30] sm:$0xff] %vm536, %v2487
        %2509 = vst.msk [vmem:[#allocation5 + $0x48] sm:$0xff] %vm536, %v2489
        %2510 = vst.msk [vmem:[#allocation5 + $0x60] sm:$0xff] %vm536, %v2491
        %2511 = vst.msk [vmem:[#allocation5 + $0x78] sm:$0xff] %vm536, %v2493
        %2512 = vst.msk [vmem:[#allocation5 + $0x90] sm:$0xff] %vm536, %v2495
        %2513 = vst.msk [vmem:[#allocation5 + $0xa8] sm:$0xff] %vm536, %v2497
        %v2514 = vld [vmem:[%s994 + $0x1] sm:$0xff]
        %v2515 = vld [vmem:[%s994 + $0x11] sm:$0xff]
        %v2516 = vld [vmem:[%s994 + $0x21] sm:$0xff]
        %v2517 = vld [vmem:[%s994 + $0x31] sm:$0xff]
        %v2518 = vld [vmem:[%s994 + $0x41] sm:$0xff]
        %v2519 = vld [vmem:[%s994 + $0x51] sm:$0xff]
        %v2520 = vld [vmem:[%s994 + $0x61] sm:$0xff]
        %v2521 = vld [vmem:[%s994 + $0x71] sm:$0xff]
        %2522 = vst.msk [vmem:[#allocation5 + $0x8] sm:$0xff] %vm250, %v2514
        %2523 = vst.msk [vmem:[#allocation5 + $0x20] sm:$0xff] %vm250, %v2515
        %2524 = vst.msk [vmem:[#allocation5 + $0x38] sm:$0xff] %vm250, %v2516
        %2525 = vst.msk [vmem:[#allocation5 + $0x50] sm:$0xff] %vm250, %v2517
        %2526 = vst.msk [vmem:[#allocation5 + $0x68] sm:$0xff] %vm250, %v2518
        %2527 = vst.msk [vmem:[#allocation5 + $0x80] sm:$0xff] %vm250, %v2519
        %2528 = vst.msk [vmem:[#allocation5 + $0x98] sm:$0xff] %vm250, %v2520
        %2529 = vst.msk [vmem:[#allocation5 + $0xb0] sm:$0xff] %vm250, %v2521
        %v2530 = vld [vmem:[%s994 + $0x2] sm:$0xff]
        %v2531 = vld [vmem:[%s994 + $0x12] sm:$0xff]
        %v2532 = vld [vmem:[%s994 + $0x22] sm:$0xff]
        %v2533 = vld [vmem:[%s994 + $0x32] sm:$0xff]
        %v2534 = vld [vmem:[%s994 + $0x42] sm:$0xff]
        %v2535 = vld [vmem:[%s994 + $0x52] sm:$0xff]
        %v2536 = vld [vmem:[%s994 + $0x62] sm:$0xff]
        %v2537 = vld [vmem:[%s994 + $0x72] sm:$0xff]
        %2546 = vrot.lane.b32.xlu0 %v2530, 32
        %v2547 = vpop.permute.xlu0 %2546
        %2548 = vrot.lane.b32.xlu0 %v2531, 32
        %v2549 = vpop.permute.xlu0 %2548
        %2550 = vrot.lane.b32.xlu0 %v2532, 32
        %v2551 = vpop.permute.xlu0 %2550
        %2552 = vrot.lane.b32.xlu0 %v2533, 32
        %v2553 = vpop.permute.xlu0 %2552
        %2554 = vrot.lane.b32.xlu0 %v2534, 32
        %v2555 = vpop.permute.xlu0 %2554
        %2556 = vrot.lane.b32.xlu0 %v2535, 32
        %v2557 = vpop.permute.xlu0 %2556
        %2558 = vrot.lane.b32.xlu0 %v2536, 32
        %v2559 = vpop.permute.xlu0 %2558
        %2560 = vrot.lane.b32.xlu0 %v2537, 32
        %v2561 = vpop.permute.xlu0 %2560
        %2570 = vst.msk [vmem:[#allocation5 + $0x8] sm:$0xff] %vm438, %v2547
        %2571 = vst.msk [vmem:[#allocation5 + $0x20] sm:$0xff] %vm438, %v2549
        %2572 = vst.msk [vmem:[#allocation5 + $0x38] sm:$0xff] %vm438, %v2551
        %2573 = vst.msk [vmem:[#allocation5 + $0x50] sm:$0xff] %vm438, %v2553
        %2574 = vst.msk [vmem:[#allocation5 + $0x68] sm:$0xff] %vm438, %v2555
        %2575 = vst.msk [vmem:[#allocation5 + $0x80] sm:$0xff] %vm438, %v2557
        %2576 = vst.msk [vmem:[#allocation5 + $0x98] sm:$0xff] %vm438, %v2559
        %2577 = vst.msk [vmem:[#allocation5 + $0xb0] sm:$0xff] %vm438, %v2561
        %v2578 = vld [vmem:[%s1265] sm:$0xff]
        %v2579 = vld [vmem:[%s1265 + $0x10] sm:$0xff]
        %v2580 = vld [vmem:[%s1265 + $0x20] sm:$0xff]
        %v2581 = vld [vmem:[%s1265 + $0x30] sm:$0xff]
        %v2582 = vld [vmem:[%s1265 + $0x40] sm:$0xff]
        %v2583 = vld [vmem:[%s1265 + $0x50] sm:$0xff]
        %v2584 = vld [vmem:[%s1265 + $0x60] sm:$0xff]
        %v2585 = vld [vmem:[%s1265 + $0x70] sm:$0xff]
        %2594 = vrot.lane.b32.xlu0 %v2578, 64
        %v2595 = vpop.permute.xlu0 %2594
        %2596 = vrot.lane.b32.xlu0 %v2579, 64
        %v2597 = vpop.permute.xlu0 %2596
        %2598 = vrot.lane.b32.xlu0 %v2580, 64
        %v2599 = vpop.permute.xlu0 %2598
        %2600 = vrot.lane.b32.xlu0 %v2581, 64
        %v2601 = vpop.permute.xlu0 %2600
        %2602 = vrot.lane.b32.xlu0 %v2582, 64
        %v2603 = vpop.permute.xlu0 %2602
        %2604 = vrot.lane.b32.xlu0 %v2583, 64
        %v2605 = vpop.permute.xlu0 %2604
        %2606 = vrot.lane.b32.xlu0 %v2584, 64
        %v2607 = vpop.permute.xlu0 %2606
        %2608 = vrot.lane.b32.xlu0 %v2585, 64
        %v2609 = vpop.permute.xlu0 %2608
        %2618 = vst.msk [vmem:[#allocation5 + $0x8] sm:$0xff] %vm487, %v2595
        %2619 = vst.msk [vmem:[#allocation5 + $0x20] sm:$0xff] %vm487, %v2597
        %2620 = vst.msk [vmem:[#allocation5 + $0x38] sm:$0xff] %vm487, %v2599
        %2621 = vst.msk [vmem:[#allocation5 + $0x50] sm:$0xff] %vm487, %v2601
        %2622 = vst.msk [vmem:[#allocation5 + $0x68] sm:$0xff] %vm487, %v2603
        %2623 = vst.msk [vmem:[#allocation5 + $0x80] sm:$0xff] %vm487, %v2605
        %2624 = vst.msk [vmem:[#allocation5 + $0x98] sm:$0xff] %vm487, %v2607
        %2625 = vst.msk [vmem:[#allocation5 + $0xb0] sm:$0xff] %vm487, %v2609
        %v2626 = vld [vmem:[%s1265 + $0x1] sm:$0xff]
        %v2627 = vld [vmem:[%s1265 + $0x11] sm:$0xff]
        %v2628 = vld [vmem:[%s1265 + $0x21] sm:$0xff]
        %v2629 = vld [vmem:[%s1265 + $0x31] sm:$0xff]
        %v2630 = vld [vmem:[%s1265 + $0x41] sm:$0xff]
        %v2631 = vld [vmem:[%s1265 + $0x51] sm:$0xff]
        %v2632 = vld [vmem:[%s1265 + $0x61] sm:$0xff]
        %v2633 = vld [vmem:[%s1265 + $0x71] sm:$0xff]
        %2642 = vrot.lane.b32.xlu0 %v2626, 96
        %v2643 = vpop.permute.xlu0 %2642
        %2644 = vrot.lane.b32.xlu0 %v2627, 96
        %v2645 = vpop.permute.xlu0 %2644
        %2646 = vrot.lane.b32.xlu0 %v2628, 96
        %v2647 = vpop.permute.xlu0 %2646
        %2648 = vrot.lane.b32.xlu0 %v2629, 96
        %v2649 = vpop.permute.xlu0 %2648
        %2650 = vrot.lane.b32.xlu0 %v2630, 96
        %v2651 = vpop.permute.xlu0 %2650
        %2652 = vrot.lane.b32.xlu0 %v2631, 96
        %v2653 = vpop.permute.xlu0 %2652
        %2654 = vrot.lane.b32.xlu0 %v2632, 96
        %v2655 = vpop.permute.xlu0 %2654
        %2656 = vrot.lane.b32.xlu0 %v2633, 96
        %v2657 = vpop.permute.xlu0 %2656
        %2666 = vst.msk [vmem:[#allocation5 + $0x8] sm:$0xff] %vm536, %v2643
        %2667 = vst.msk [vmem:[#allocation5 + $0x20] sm:$0xff] %vm536, %v2645
        %2668 = vst.msk [vmem:[#allocation5 + $0x38] sm:$0xff] %vm536, %v2647
        %2669 = vst.msk [vmem:[#allocation5 + $0x50] sm:$0xff] %vm536, %v2649
        %2670 = vst.msk [vmem:[#allocation5 + $0x68] sm:$0xff] %vm536, %v2651
        %2671 = vst.msk [vmem:[#allocation5 + $0x80] sm:$0xff] %vm536, %v2653
        %2672 = vst.msk [vmem:[#allocation5 + $0x98] sm:$0xff] %vm536, %v2655
        %2673 = vst.msk [vmem:[#allocation5 + $0xb0] sm:$0xff] %vm536, %v2657
        %v2674 = vld [vmem:[%s1265 + $0x2] sm:$0xff]
        %v2675 = vld [vmem:[%s1265 + $0x12] sm:$0xff]
        %v2676 = vld [vmem:[%s1265 + $0x22] sm:$0xff]
        %v2677 = vld [vmem:[%s1265 + $0x32] sm:$0xff]
        %v2678 = vld [vmem:[%s1265 + $0x42] sm:$0xff]
        %v2679 = vld [vmem:[%s1265 + $0x52] sm:$0xff]
        %v2680 = vld [vmem:[%s1265 + $0x62] sm:$0xff]
        %v2681 = vld [vmem:[%s1265 + $0x72] sm:$0xff]
        %2682 = vst.msk [vmem:[#allocation5 + $0x10] sm:$0xff] %vm250, %v2674
        %2683 = vst.msk [vmem:[#allocation5 + $0x28] sm:$0xff] %vm250, %v2675
        %2684 = vst.msk [vmem:[#allocation5 + $0x40] sm:$0xff] %vm250, %v2676
        %2685 = vst.msk [vmem:[#allocation5 + $0x58] sm:$0xff] %vm250, %v2677
        %2686 = vst.msk [vmem:[#allocation5 + $0x70] sm:$0xff] %vm250, %v2678
        %2687 = vst.msk [vmem:[#allocation5 + $0x88] sm:$0xff] %vm250, %v2679
        %2688 = vst.msk [vmem:[#allocation5 + $0xa0] sm:$0xff] %vm250, %v2680
        %2689 = vst.msk [vmem:[#allocation5 + $0xb8] sm:$0xff] %vm250, %v2681
        %v2690 = vld [vmem:[#allocation5] sm:$0xff]
        %v2691 = vld [vmem:[#allocation5 + $0x8] sm:$0xff]
        %v2692 = vld [vmem:[#allocation5 + $0x10] sm:$0xff]
        %v2693 = vld [vmem:[#allocation5 + $0x18] sm:$0xff]
        %v2694 = vld [vmem:[#allocation5 + $0x20] sm:$0xff]
        %v2695 = vld [vmem:[#allocation5 + $0x28] sm:$0xff]
        %v2696 = vld [vmem:[#allocation5 + $0x30] sm:$0xff]
        %v2697 = vld [vmem:[#allocation5 + $0x38] sm:$0xff]
        %v2698 = vld [vmem:[#allocation5 + $0x40] sm:$0xff]
        %v2699 = vld [vmem:[#allocation5 + $0x48] sm:$0xff]
        %v2700 = vld [vmem:[#allocation5 + $0x50] sm:$0xff]
        %v2701 = vld [vmem:[#allocation5 + $0x58] sm:$0xff]
        %v2702 = vld [vmem:[#allocation5 + $0x60] sm:$0xff]
        %v2703 = vld [vmem:[#allocation5 + $0x68] sm:$0xff]
        %v2704 = vld [vmem:[#allocation5 + $0x70] sm:$0xff]
        %v2705 = vld [vmem:[#allocation5 + $0x78] sm:$0xff]
        %v2706 = vld [vmem:[#allocation5 + $0x80] sm:$0xff]
        %v2707 = vld [vmem:[#allocation5 + $0x88] sm:$0xff]
        %v2708 = vld [vmem:[#allocation5 + $0x90] sm:$0xff]
        %v2709 = vld [vmem:[#allocation5 + $0x98] sm:$0xff]
        %v2710 = vld [vmem:[#allocation5 + $0xa0] sm:$0xff]
        %v2711 = vld [vmem:[#allocation5 + $0xa8] sm:$0xff]
        %v2712 = vld [vmem:[#allocation5 + $0xb0] sm:$0xff]
        %v2713 = vld [vmem:[#allocation5 + $0xb8] sm:$0xff]
        %v2715 = vlaneseq
        %v2716 = vshrl.u32 %v2715, 7
        %v2717 = vsub.s32 0, %v2716
        %v2718 = vrot.slane %v2353, %v2717
        %v2721 = vsel %vm250, %v2692, 0
        %v2724 = vsel %vm250, %v2695, 0
        %v2727 = vsel %vm250, %v2698, 0
        %v2730 = vsel %vm250, %v2701, 0
        %v2733 = vsel %vm250, %v2704, 0
        %v2736 = vsel %vm250, %v2707, 0
        %v2739 = vsel %vm250, %v2710, 0
        %v2742 = vsel %vm250, %v2713, 0
        %2744 = vmatprep.subr.mxu0 0.0
        %2745 = vmatpush1.msra.mxu0 %v2316
        %2746 = vmatprep.subr.mxu0 0.0
        %2747 = vmatpush1.msra.mxu0 %v2317
        %2748 = vmatprep.subr.mxu0 0.0
        %2749 = vmatpush1.msra.mxu0 %v2318
        %2750 = vmatprep.subr.mxu0 0.0
        %2751 = vmatpush1.msra.mxu0 %v2319
        %2752 = vmatprep.subr.mxu0 0.0
        %2753 = vmatpush1.msra.mxu0 %v2320
        %2754 = vmatprep.subr.mxu0 0.0
        %2755 = vmatpush1.msra.mxu0 %v2321
        %2756 = vmatprep.subr.mxu0 0.0
        %2757 = vmatpush1.msra.mxu0 %v2322
        %2758 = vmatprep.subr.mxu0 0.0
        %2759 = vmatpush1.msra.mxu0 %v2323
        %2760 = vmatprep.subr.mxu0 0.0
        %2761 = vmatpush1.msra.mxu0 %v2324
        %2762 = vmatprep.subr.mxu0 0.0
        %2763 = vmatpush1.msra.mxu0 %v2325
        %2764 = vmatprep.subr.mxu0 0.0
        %2765 = vmatpush1.msra.mxu0 %v2326
        %2766 = vmatprep.subr.mxu0 0.0
        %2767 = vmatpush1.msra.mxu0 %v2327
        %2768 = vmatprep.subr.mxu0 0.0
        %2769 = vmatpush1.msra.mxu0 %v2328
        %2770 = vmatprep.subr.mxu0 0.0
        %2771 = vmatpush1.msra.mxu0 %v2329
        %2772 = vmatprep.subr.mxu0 0.0
        %2773 = vmatpush1.msra.mxu0 %v2330
        %2774 = vmatprep.subr.mxu0 0.0
        %2775 = vmatpush1.msra.mxu0 %v2331
        %2776 = vmatprep.subr.mxu0 0.0
        %2777 = vmatpush1.msra.mxu0 %v2332
        %2778 = vmatprep.subr.mxu0 0.0
        %2779 = vmatpush1.msra.mxu0 %v2333
        %2780 = vmatprep.subr.mxu0 0.0
        %2781 = vmatpush1.msra.mxu0 %v2334
        %2782 = vmatprep.subr.mxu0 0.0
        %2783 = vmatpush1.msra.mxu0 %v2335
        %2784 = vmatprep.subr.mxu0 0.0
        %2785 = vmatpush1.msra.mxu0 %v2336
        %2786 = vmatprep.subr.mxu0 0.0
        %2787 = vmatpush1.msra.mxu0 %v2337
        %2788 = vmatprep.subr.mxu0 0.0
        %2789 = vmatpush1.msra.mxu0 %v2338
        %2790 = vmatprep.subr.mxu0 0.0
        %2791 = vmatpush1.msra.mxu0 %v2339
        %2792 = vmatprep.subr.mxu0 0.0
        %2793 = vmatpush1.msra.mxu0 %v2340
        %2794 = vmatprep.subr.mxu0 0.0
        %2795 = vmatpush1.msra.mxu0 %v2341
        %2796 = vmatprep.subr.mxu0 0.0
        %2797 = vmatpush1.msra.mxu0 %v2342
        %2798 = vmatprep.subr.mxu0 0.0
        %2799 = vmatpush1.msra.mxu0 %v2343
        %2800 = vmatprep.subr.mxu0 0.0
        %2801 = vmatpush1.msra.mxu0 %v2344
        %2802 = vmatprep.subr.mxu0 0.0
        %2803 = vmatpush1.msra.mxu0 %v2345
        %2804 = vmatprep.subr.mxu0 0.0
        %2805 = vmatpush1.msra.mxu0 %v2346
        %2806 = vmatprep.subr.mxu0 0.0
        %2807 = vmatpush1.msra.mxu0 %v2347
        %2808 = vmatprep.mubr.f32.mxu0 %v2691
        %2809 = vmatmul.mubr.f32.gmra.mrb[0].mxu0 %v2690
        %v2810 = vpop.f32.mrb[0].mxu0
        %v2811 = vadd.f32 %v2718, %v2810
        %v2812 = vpop.f32.mrb[0].mxu0
        %2813 = vmatprep.mubr.f32.mxu0 %v2694
        %2814 = vmatmul.mubr.f32.gmra.mrb[0].mxu0 %v2693
        %v2815 = vpop.f32.mrb[0].mxu0
        %v2816 = vadd.f32 %v2718, %v2815
        %v2817 = vpop.f32.mrb[0].mxu0
        %2818 = vmatprep.mubr.f32.mxu0 %v2697
        %2819 = vmatmul.mubr.f32.gmra.mrb[0].mxu0 %v2696
        %v2820 = vpop.f32.mrb[0].mxu0
        %v2821 = vadd.f32 %v2718, %v2820
        %v2822 = vpop.f32.mrb[0].mxu0
        %2823 = vmatprep.mubr.f32.mxu0 %v2700
        %2824 = vmatmul.mubr.f32.gmra.mrb[0].mxu0 %v2699
        %v2825 = vpop.f32.mrb[0].mxu0
        %v2826 = vadd.f32 %v2718, %v2825
        %v2827 = vpop.f32.mrb[0].mxu0
        %2828 = vmatprep.mubr.f32.mxu0 %v2703
        %2829 = vmatmul.mubr.f32.gmra.mrb[0].mxu0 %v2702
        %v2830 = vpop.f32.mrb[0].mxu0
        %v2831 = vadd.f32 %v2718, %v2830
        %v2832 = vpop.f32.mrb[0].mxu0
        %2833 = vmatprep.mubr.f32.mxu0 %v2706
        %2834 = vmatmul.mubr.f32.gmra.mrb[0].mxu0 %v2705
        %v2835 = vpop.f32.mrb[0].mxu0
        %v2836 = vadd.f32 %v2718, %v2835
        %v2837 = vpop.f32.mrb[0].mxu0
        %2838 = vmatprep.mubr.f32.mxu0 %v2709
        %2839 = vmatmul.mubr.f32.gmra.mrb[0].mxu0 %v2708
        %v2840 = vpop.f32.mrb[0].mxu0
        %v2841 = vadd.f32 %v2718, %v2840
        %v2842 = vpop.f32.mrb[0].mxu0
        %2843 = vmatprep.mubr.f32.mxu0 %v2712
        %2844 = vmatmul.mubr.f32.gmra.mrb[0].mxu0 %v2711
        %v2845 = vpop.f32.mrb[0].mxu0
        %v2846 = vadd.f32 %v2718, %v2845
        %v2847 = vpop.f32.mrb[0].mxu0
        %2848 = vdwg.mxu0
        %2849 = vmatprep.subr.mxu0 0.0
        %2850 = vmatpush1.msra.mxu0 %v2348
        %2851 = vmatprep.subr.mxu0 0.0
        %2852 = vmatpush1.msra.mxu0 %v2349
        %2853 = vmatprep.subr.mxu0 0.0
        %2854 = vmatpush1.msra.mxu0 %v2350
        %2855 = vmatprep.subr.mxu0 0.0
        %2856 = vmatpush1.msra.mxu0 %v2351
        %2857 = vmatprep.subr.mxu0 0.0
        %2858 = vmatpush1.msra.mxu0 0.0
        %2859 = vmatprep.subr.mxu0 0.0
        %2860 = vmatpush1.msra.mxu0 0.0
        %2861 = vmatprep.subr.mxu0 0.0
        %2862 = vmatpush1.msra.mxu0 0.0
        %2863 = vmatprep.subr.mxu0 0.0
        %2864 = vmatpush1.msra.mxu0 0.0
        %2865 = vmatprep.subr.mxu0 0.0
        %2866 = vmatpush1.msra.mxu0 0.0
        %2867 = vmatprep.subr.mxu0 0.0
        %2868 = vmatpush1.msra.mxu0 0.0
        %2869 = vmatprep.subr.mxu0 0.0
        %2870 = vmatpush1.msra.mxu0 0.0
        %2871 = vmatprep.subr.mxu0 0.0
        %2872 = vmatpush1.msra.mxu0 0.0
        %2873 = vmatprep.subr.mxu0 0.0
        %2874 = vmatpush1.msra.mxu0 0.0
        %2875 = vmatprep.subr.mxu0 0.0
        %2876 = vmatpush1.msra.mxu0 0.0
        %2877 = vmatprep.subr.mxu0 0.0
        %2878 = vmatpush1.msra.mxu0 0.0
        %2879 = vmatprep.subr.mxu0 0.0
        %2880 = vmatpush1.msra.mxu0 0.0
        %2881 = vmatprep.subr.mxu0 0.0
        %2882 = vmatpush1.msra.mxu0 0.0
        %2883 = vmatprep.subr.mxu0 0.0
        %2884 = vmatpush1.msra.mxu0 0.0
        %2885 = vmatprep.subr.mxu0 0.0
        %2886 = vmatpush1.msra.mxu0 0.0
        %2887 = vmatprep.subr.mxu0 0.0
        %2888 = vmatpush1.msra.mxu0 0.0
        %2889 = vmatprep.subr.mxu0 0.0
        %2890 = vmatpush1.msra.mxu0 0.0
        %2891 = vmatprep.subr.mxu0 0.0
        %2892 = vmatpush1.msra.mxu0 0.0
        %2893 = vmatprep.subr.mxu0 0.0
        %2894 = vmatpush1.msra.mxu0 0.0
        %2895 = vmatprep.subr.mxu0 0.0
        %2896 = vmatpush1.msra.mxu0 0.0
        %2897 = vmatprep.subr.mxu0 0.0
        %2898 = vmatpush1.msra.mxu0 0.0
        %2899 = vmatprep.subr.mxu0 0.0
        %2900 = vmatpush1.msra.mxu0 0.0
        %2901 = vmatprep.subr.mxu0 0.0
        %2902 = vmatpush1.msra.mxu0 0.0
        %2903 = vmatprep.subr.mxu0 0.0
        %2904 = vmatpush1.msra.mxu0 0.0
        %2905 = vmatprep.subr.mxu0 0.0
        %2906 = vmatpush1.msra.mxu0 0.0
        %2907 = vmatprep.subr.mxu0 0.0
        %2908 = vmatpush1.msra.mxu0 0.0
        %2909 = vmatprep.subr.mxu0 0.0
        %2910 = vmatpush1.msra.mxu0 0.0
        %2911 = vmatprep.subr.mxu0 0.0
        %2912 = vmatpush1.msra.mxu0 0.0
        %2913 = vmatprep.mubr.f32.mxu0 0.0
        %2914 = vmatmul.mubr.f32.gmra.mrb[0].mxu0 %v2721
        %v2915 = vpop.f32.mrb[0].mxu0
        %v2916 = vadd.f32 %v2811, %v2915
        %v2917 = vpop.f32.mrb[0].mxu0
        %2918 = vmatprep.mubr.f32.mxu0 0.0
        %2919 = vmatmul.mubr.f32.gmra.mrb[0].mxu0 %v2724
        %v2920 = vpop.f32.mrb[0].mxu0
        %v2921 = vadd.f32 %v2816, %v2920
        %v2922 = vpop.f32.mrb[0].mxu0
        %2923 = vmatprep.mubr.f32.mxu0 0.0
        %2924 = vmatmul.mubr.f32.gmra.mrb[0].mxu0 %v2727
        %v2925 = vpop.f32.mrb[0].mxu0
        %v2926 = vadd.f32 %v2821, %v2925
        %v2927 = vpop.f32.mrb[0].mxu0
        %2928 = vmatprep.mubr.f32.mxu0 0.0
        %2929 = vmatmul.mubr.f32.gmra.mrb[0].mxu0 %v2730
        %v2930 = vpop.f32.mrb[0].mxu0
        %v2931 = vadd.f32 %v2826, %v2930
        %v2932 = vpop.f32.mrb[0].mxu0
        %2933 = vmatprep.mubr.f32.mxu0 0.0
        %2934 = vmatmul.mubr.f32.gmra.mrb[0].mxu0 %v2733
        %v2935 = vpop.f32.mrb[0].mxu0
        %v2936 = vadd.f32 %v2831, %v2935
        %v2937 = vpop.f32.mrb[0].mxu0
        %2938 = vmatprep.mubr.f32.mxu0 0.0
        %2939 = vmatmul.mubr.f32.gmra.mrb[0].mxu0 %v2736
        %v2940 = vpop.f32.mrb[0].mxu0
        %v2941 = vadd.f32 %v2836, %v2940
        %v2942 = vpop.f32.mrb[0].mxu0
        %2943 = vmatprep.mubr.f32.mxu0 0.0
        %2944 = vmatmul.mubr.f32.gmra.mrb[0].mxu0 %v2739
        %v2945 = vpop.f32.mrb[0].mxu0
        %v2946 = vadd.f32 %v2841, %v2945
        %v2947 = vpop.f32.mrb[0].mxu0
        %2948 = vmatprep.mubr.f32.mxu0 0.0
        %2949 = vmatmul.mubr.f32.gmra.mrb[0].mxu0 %v2742
        %v2950 = vpop.f32.mrb[0].mxu0
        %v2951 = vadd.f32 %v2846, %v2950
        %v2952 = vpop.f32.mrb[0].mxu0
        %2953 = vdwg.mxu0
        %v2954 = vmax.f32 %v2916, 0.0
        %v2955 = vmax.f32 %v2921, 0.0
        %v2956 = vmax.f32 %v2926, 0.0
        %v2957 = vmax.f32 %v2931, 0.0
        %v2958 = vmax.f32 %v2936, 0.0
        %v2959 = vmax.f32 %v2941, 0.0
        %v2960 = vmax.f32 %v2946, 0.0
        %v2961 = vmax.f32 %v2951, 0.0
        %2962 = vst.msk [vmem:[%s1650 + $0x1] sm:$0xff] %vm250, %v2954
        %2963 = vst.msk [vmem:[%s1650 + $0x11] sm:$0xff] %vm250, %v2955
        %2964 = vst.msk [vmem:[%s1650 + $0x21] sm:$0xff] %vm250, %v2956
        %2965 = vst.msk [vmem:[%s1650 + $0x31] sm:$0xff] %vm250, %v2957
        %2966 = vst.msk [vmem:[%s1650 + $0x41] sm:$0xff] %vm250, %v2958
        %2967 = vst.msk [vmem:[%s1650 + $0x51] sm:$0xff] %vm250, %v2959
        %2968 = vst.msk [vmem:[%s1650 + $0x61] sm:$0xff] %vm250, %v2960
        %2969 = vst.msk [vmem:[%s1650 + $0x71] sm:$0xff] %vm250, %v2961
        %v2970 = vld [vmem:[%s3] sm:$0xff]
        %v2971 = vld [vmem:[%s3 + $0x8] sm:$0xff]
        %v2972 = vld [vmem:[%s3 + $0x10] sm:$0xff]
        %v2973 = vld [vmem:[%s3 + $0x18] sm:$0xff]
        %v2974 = vld [vmem:[%s3 + $0x20] sm:$0xff]
        %v2975 = vld [vmem:[%s3 + $0x28] sm:$0xff]
        %v2976 = vld [vmem:[%s3 + $0x30] sm:$0xff]
        %v2977 = vld [vmem:[%s3 + $0x38] sm:$0xff]
        %v2978 = vld [vmem:[%s3 + $0x40] sm:$0xff]
        %v2979 = vld [vmem:[%s3 + $0x48] sm:$0xff]
        %v2980 = vld [vmem:[%s3 + $0x50] sm:$0xff]
        %v2981 = vld [vmem:[%s3 + $0x58] sm:$0xff]
        %v2982 = vld [vmem:[%s3 + $0x60] sm:$0xff]
        %v2983 = vld [vmem:[%s3 + $0x68] sm:$0xff]
        %v2984 = vld [vmem:[%s3 + $0x70] sm:$0xff]
        %v2985 = vld [vmem:[%s3 + $0x78] sm:$0xff]
        %v2986 = vld [vmem:[%s3 + $0x80] sm:$0xff]
        %v2987 = vld [vmem:[%s3 + $0x88] sm:$0xff]
        %v2988 = vld [vmem:[%s3 + $0x90] sm:$0xff]
        %v2989 = vld [vmem:[%s3 + $0x98] sm:$0xff]
        %v2990 = vld [vmem:[%s3 + $0xa0] sm:$0xff]
        %v2991 = vld [vmem:[%s3 + $0xa8] sm:$0xff]
        %v2992 = vld [vmem:[%s3 + $0xb0] sm:$0xff]
        %v2993 = vld [vmem:[%s3 + $0xb8] sm:$0xff]
        %v2994 = vld [vmem:[%s3 + $0xc0] sm:$0xff]
        %v2995 = vld [vmem:[%s3 + $0xc8] sm:$0xff]
        %v2996 = vld [vmem:[%s3 + $0xd0] sm:$0xff]
        %v2997 = vld [vmem:[%s3 + $0xd8] sm:$0xff]
        %v2998 = vld [vmem:[%s3 + $0xe0] sm:$0xff]
        %v2999 = vld [vmem:[%s3 + $0xe8] sm:$0xff]
        %v3000 = vld [vmem:[%s3 + $0xf0] sm:$0xff]
        %v3001 = vld [vmem:[%s3 + $0xf8] sm:$0xff]
        %v3002 = vld [vmem:[%s3 + $0x100] sm:$0xff]
        %v3003 = vld [vmem:[%s3 + $0x108] sm:$0xff]
        %v3004 = vld [vmem:[%s3 + $0x110] sm:$0xff]
        %v3005 = vld [vmem:[%s3 + $0x118] sm:$0xff]
        %v3006 = vld [vmem:[%s5] sm:$0x1]
        %v3007 = vld [vmem:[#allocation4] sm:$0xff]
        %v3008 = vld [vmem:[#allocation4 + $0x10] sm:$0xff]
        %v3009 = vld [vmem:[#allocation4 + $0x20] sm:$0xff]
        %v3010 = vld [vmem:[#allocation4 + $0x30] sm:$0xff]
        %v3011 = vld [vmem:[#allocation4 + $0x40] sm:$0xff]
        %v3012 = vld [vmem:[#allocation4 + $0x50] sm:$0xff]
        %v3013 = vld [vmem:[#allocation4 + $0x60] sm:$0xff]
        %v3014 = vld [vmem:[#allocation4 + $0x70] sm:$0xff]
        %3015 = vst.msk [vmem:[#allocation5] sm:$0xff] %vm250, %v3007
        %3016 = vst.msk [vmem:[#allocation5 + $0x18] sm:$0xff] %vm250, %v3008
        %3017 = vst.msk [vmem:[#allocation5 + $0x30] sm:$0xff] %vm250, %v3009
        %3018 = vst.msk [vmem:[#allocation5 + $0x48] sm:$0xff] %vm250, %v3010
        %3019 = vst.msk [vmem:[#allocation5 + $0x60] sm:$0xff] %vm250, %v3011
        %3020 = vst.msk [vmem:[#allocation5 + $0x78] sm:$0xff] %vm250, %v3012
        %3021 = vst.msk [vmem:[#allocation5 + $0x90] sm:$0xff] %vm250, %v3013
        %3022 = vst.msk [vmem:[#allocation5 + $0xa8] sm:$0xff] %vm250, %v3014
        %v3023 = vld [vmem:[#allocation4 + $0x1] sm:$0xff]
        %v3024 = vld [vmem:[#allocation4 + $0x11] sm:$0xff]
        %v3025 = vld [vmem:[#allocation4 + $0x21] sm:$0xff]
        %v3026 = vld [vmem:[#allocation4 + $0x31] sm:$0xff]
        %v3027 = vld [vmem:[#allocation4 + $0x41] sm:$0xff]
        %v3028 = vld [vmem:[#allocation4 + $0x51] sm:$0xff]
        %v3029 = vld [vmem:[#allocation4 + $0x61] sm:$0xff]
        %v3030 = vld [vmem:[#allocation4 + $0x71] sm:$0xff]
        %3039 = vrot.lane.b32.xlu0 %v3023, 32
        %v3040 = vpop.permute.xlu0 %3039
        %3041 = vrot.lane.b32.xlu0 %v3024, 32
        %v3042 = vpop.permute.xlu0 %3041
        %3043 = vrot.lane.b32.xlu0 %v3025, 32
        %v3044 = vpop.permute.xlu0 %3043
        %3045 = vrot.lane.b32.xlu0 %v3026, 32
        %v3046 = vpop.permute.xlu0 %3045
        %3047 = vrot.lane.b32.xlu0 %v3027, 32
        %v3048 = vpop.permute.xlu0 %3047
        %3049 = vrot.lane.b32.xlu0 %v3028, 32
        %v3050 = vpop.permute.xlu0 %3049
        %3051 = vrot.lane.b32.xlu0 %v3029, 32
        %v3052 = vpop.permute.xlu0 %3051
        %3053 = vrot.lane.b32.xlu0 %v3030, 32
        %v3054 = vpop.permute.xlu0 %3053
        %3063 = vst.msk [vmem:[#allocation5] sm:$0xff] %vm438, %v3040
        %3064 = vst.msk [vmem:[#allocation5 + $0x18] sm:$0xff] %vm438, %v3042
        %3065 = vst.msk [vmem:[#allocation5 + $0x30] sm:$0xff] %vm438, %v3044
        %3066 = vst.msk [vmem:[#allocation5 + $0x48] sm:$0xff] %vm438, %v3046
        %3067 = vst.msk [vmem:[#allocation5 + $0x60] sm:$0xff] %vm438, %v3048
        %3068 = vst.msk [vmem:[#allocation5 + $0x78] sm:$0xff] %vm438, %v3050
        %3069 = vst.msk [vmem:[#allocation5 + $0x90] sm:$0xff] %vm438, %v3052
        %3070 = vst.msk [vmem:[#allocation5 + $0xa8] sm:$0xff] %vm438, %v3054
        %v3071 = vld [vmem:[#allocation4 + $0x2] sm:$0xff]
        %v3072 = vld [vmem:[#allocation4 + $0x12] sm:$0xff]
        %v3073 = vld [vmem:[#allocation4 + $0x22] sm:$0xff]
        %v3074 = vld [vmem:[#allocation4 + $0x32] sm:$0xff]
        %v3075 = vld [vmem:[#allocation4 + $0x42] sm:$0xff]
        %v3076 = vld [vmem:[#allocation4 + $0x52] sm:$0xff]
        %v3077 = vld [vmem:[#allocation4 + $0x62] sm:$0xff]
        %v3078 = vld [vmem:[#allocation4 + $0x72] sm:$0xff]
        %3087 = vrot.lane.b32.xlu0 %v3071, 64
        %v3088 = vpop.permute.xlu0 %3087
        %3089 = vrot.lane.b32.xlu0 %v3072, 64
        %v3090 = vpop.permute.xlu0 %3089
        %3091 = vrot.lane.b32.xlu0 %v3073, 64
        %v3092 = vpop.permute.xlu0 %3091
        %3093 = vrot.lane.b32.xlu0 %v3074, 64
        %v3094 = vpop.permute.xlu0 %3093
        %3095 = vrot.lane.b32.xlu0 %v3075, 64
        %v3096 = vpop.permute.xlu0 %3095
        %3097 = vrot.lane.b32.xlu0 %v3076, 64
        %v3098 = vpop.permute.xlu0 %3097
        %3099 = vrot.lane.b32.xlu0 %v3077, 64
        %v3100 = vpop.permute.xlu0 %3099
        %3101 = vrot.lane.b32.xlu0 %v3078, 64
        %v3102 = vpop.permute.xlu0 %3101
        %3111 = vst.msk [vmem:[#allocation5] sm:$0xff] %vm487, %v3088
        %3112 = vst.msk [vmem:[#allocation5 + $0x18] sm:$0xff] %vm487, %v3090
        %3113 = vst.msk [vmem:[#allocation5 + $0x30] sm:$0xff] %vm487, %v3092
        %3114 = vst.msk [vmem:[#allocation5 + $0x48] sm:$0xff] %vm487, %v3094
        %3115 = vst.msk [vmem:[#allocation5 + $0x60] sm:$0xff] %vm487, %v3096
        %3116 = vst.msk [vmem:[#allocation5 + $0x78] sm:$0xff] %vm487, %v3098
        %3117 = vst.msk [vmem:[#allocation5 + $0x90] sm:$0xff] %vm487, %v3100
        %3118 = vst.msk [vmem:[#allocation5 + $0xa8] sm:$0xff] %vm487, %v3102
        %v3119 = vld [vmem:[%s1650] sm:$0xff]
        %v3120 = vld [vmem:[%s1650 + $0x10] sm:$0xff]
        %v3121 = vld [vmem:[%s1650 + $0x20] sm:$0xff]
        %v3122 = vld [vmem:[%s1650 + $0x30] sm:$0xff]
        %v3123 = vld [vmem:[%s1650 + $0x40] sm:$0xff]
        %v3124 = vld [vmem:[%s1650 + $0x50] sm:$0xff]
        %v3125 = vld [vmem:[%s1650 + $0x60] sm:$0xff]
        %v3126 = vld [vmem:[%s1650 + $0x70] sm:$0xff]
        %3135 = vrot.lane.b32.xlu0 %v3119, 96
        %v3136 = vpop.permute.xlu0 %3135
        %3137 = vrot.lane.b32.xlu0 %v3120, 96
        %v3138 = vpop.permute.xlu0 %3137
        %3139 = vrot.lane.b32.xlu0 %v3121, 96
        %v3140 = vpop.permute.xlu0 %3139
        %3141 = vrot.lane.b32.xlu0 %v3122, 96
        %v3142 = vpop.permute.xlu0 %3141
        %3143 = vrot.lane.b32.xlu0 %v3123, 96
        %v3144 = vpop.permute.xlu0 %3143
        %3145 = vrot.lane.b32.xlu0 %v3124, 96
        %v3146 = vpop.permute.xlu0 %3145
        %3147 = vrot.lane.b32.xlu0 %v3125, 96
        %v3148 = vpop.permute.xlu0 %3147
        %3149 = vrot.lane.b32.xlu0 %v3126, 96
        %v3150 = vpop.permute.xlu0 %3149
        %3159 = vst.msk [vmem:[#allocation5] sm:$0xff] %vm536, %v3136
        %3160 = vst.msk [vmem:[#allocation5 + $0x18] sm:$0xff] %vm536, %v3138
        %3161 = vst.msk [vmem:[#allocation5 + $0x30] sm:$0xff] %vm536, %v3140
        %3162 = vst.msk [vmem:[#allocation5 + $0x48] sm:$0xff] %vm536, %v3142
        %3163 = vst.msk [vmem:[#allocation5 + $0x60] sm:$0xff] %vm536, %v3144
        %3164 = vst.msk [vmem:[#allocation5 + $0x78] sm:$0xff] %vm536, %v3146
        %3165 = vst.msk [vmem:[#allocation5 + $0x90] sm:$0xff] %vm536, %v3148
        %3166 = vst.msk [vmem:[#allocation5 + $0xa8] sm:$0xff] %vm536, %v3150
        %v3167 = vld [vmem:[%s1650 + $0x1] sm:$0xff]
        %v3168 = vld [vmem:[%s1650 + $0x11] sm:$0xff]
        %v3169 = vld [vmem:[%s1650 + $0x21] sm:$0xff]
        %v3170 = vld [vmem:[%s1650 + $0x31] sm:$0xff]
        %v3171 = vld [vmem:[%s1650 + $0x41] sm:$0xff]
        %v3172 = vld [vmem:[%s1650 + $0x51] sm:$0xff]
        %v3173 = vld [vmem:[%s1650 + $0x61] sm:$0xff]
        %v3174 = vld [vmem:[%s1650 + $0x71] sm:$0xff]
        %3175 = vst.msk [vmem:[#allocation5 + $0x8] sm:$0xff] %vm250, %v3167
        %3176 = vst.msk [vmem:[#allocation5 + $0x20] sm:$0xff] %vm250, %v3168
        %3177 = vst.msk [vmem:[#allocation5 + $0x38] sm:$0xff] %vm250, %v3169
        %3178 = vst.msk [vmem:[#allocation5 + $0x50] sm:$0xff] %vm250, %v3170
        %3179 = vst.msk [vmem:[#allocation5 + $0x68] sm:$0xff] %vm250, %v3171
        %3180 = vst.msk [vmem:[#allocation5 + $0x80] sm:$0xff] %vm250, %v3172
        %3181 = vst.msk [vmem:[#allocation5 + $0x98] sm:$0xff] %vm250, %v3173
        %3182 = vst.msk [vmem:[#allocation5 + $0xb0] sm:$0xff] %vm250, %v3174
        %v3183 = vld [vmem:[%s1650 + $0x2] sm:$0xff]
        %v3184 = vld [vmem:[%s1650 + $0x12] sm:$0xff]
        %v3185 = vld [vmem:[%s1650 + $0x22] sm:$0xff]
        %v3186 = vld [vmem:[%s1650 + $0x32] sm:$0xff]
        %v3187 = vld [vmem:[%s1650 + $0x42] sm:$0xff]
        %v3188 = vld [vmem:[%s1650 + $0x52] sm:$0xff]
        %v3189 = vld [vmem:[%s1650 + $0x62] sm:$0xff]
        %v3190 = vld [vmem:[%s1650 + $0x72] sm:$0xff]
        %3199 = vrot.lane.b32.xlu0 %v3183, 32
        %v3200 = vpop.permute.xlu0 %3199
        %3201 = vrot.lane.b32.xlu0 %v3184, 32
        %v3202 = vpop.permute.xlu0 %3201
        %3203 = vrot.lane.b32.xlu0 %v3185, 32
        %v3204 = vpop.permute.xlu0 %3203
        %3205 = vrot.lane.b32.xlu0 %v3186, 32
        %v3206 = vpop.permute.xlu0 %3205
        %3207 = vrot.lane.b32.xlu0 %v3187, 32
        %v3208 = vpop.permute.xlu0 %3207
        %3209 = vrot.lane.b32.xlu0 %v3188, 32
        %v3210 = vpop.permute.xlu0 %3209
        %3211 = vrot.lane.b32.xlu0 %v3189, 32
        %v3212 = vpop.permute.xlu0 %3211
        %3213 = vrot.lane.b32.xlu0 %v3190, 32
        %v3214 = vpop.permute.xlu0 %3213
        %3223 = vst.msk [vmem:[#allocation5 + $0x8] sm:$0xff] %vm438, %v3200
        %3224 = vst.msk [vmem:[#allocation5 + $0x20] sm:$0xff] %vm438, %v3202
        %3225 = vst.msk [vmem:[#allocation5 + $0x38] sm:$0xff] %vm438, %v3204
        %3226 = vst.msk [vmem:[#allocation5 + $0x50] sm:$0xff] %vm438, %v3206
        %3227 = vst.msk [vmem:[#allocation5 + $0x68] sm:$0xff] %vm438, %v3208
        %3228 = vst.msk [vmem:[#allocation5 + $0x80] sm:$0xff] %vm438, %v3210
        %3229 = vst.msk [vmem:[#allocation5 + $0x98] sm:$0xff] %vm438, %v3212
        %3230 = vst.msk [vmem:[#allocation5 + $0xb0] sm:$0xff] %vm438, %v3214
        %v3231 = vld [vmem:[%s1922] sm:$0xff]
        %v3232 = vld [vmem:[%s1922 + $0x10] sm:$0xff]
        %v3233 = vld [vmem:[%s1922 + $0x20] sm:$0xff]
        %v3234 = vld [vmem:[%s1922 + $0x30] sm:$0xff]
        %v3235 = vld [vmem:[%s1922 + $0x40] sm:$0xff]
        %v3236 = vld [vmem:[%s1922 + $0x50] sm:$0xff]
        %v3237 = vld [vmem:[%s1922 + $0x60] sm:$0xff]
        %v3238 = vld [vmem:[%s1922 + $0x70] sm:$0xff]
        %3247 = vrot.lane.b32.xlu0 %v3231, 64
        %v3248 = vpop.permute.xlu0 %3247
        %3249 = vrot.lane.b32.xlu0 %v3232, 64
        %v3250 = vpop.permute.xlu0 %3249
        %3251 = vrot.lane.b32.xlu0 %v3233, 64
        %v3252 = vpop.permute.xlu0 %3251
        %3253 = vrot.lane.b32.xlu0 %v3234, 64
        %v3254 = vpop.permute.xlu0 %3253
        %3255 = vrot.lane.b32.xlu0 %v3235, 64
        %v3256 = vpop.permute.xlu0 %3255
        %3257 = vrot.lane.b32.xlu0 %v3236, 64
        %v3258 = vpop.permute.xlu0 %3257
        %3259 = vrot.lane.b32.xlu0 %v3237, 64
        %v3260 = vpop.permute.xlu0 %3259
        %3261 = vrot.lane.b32.xlu0 %v3238, 64
        %v3262 = vpop.permute.xlu0 %3261
        %3271 = vst.msk [vmem:[#allocation5 + $0x8] sm:$0xff] %vm487, %v3248
        %3272 = vst.msk [vmem:[#allocation5 + $0x20] sm:$0xff] %vm487, %v3250
        %3273 = vst.msk [vmem:[#allocation5 + $0x38] sm:$0xff] %vm487, %v3252
        %3274 = vst.msk [vmem:[#allocation5 + $0x50] sm:$0xff] %vm487, %v3254
        %3275 = vst.msk [vmem:[#allocation5 + $0x68] sm:$0xff] %vm487, %v3256
        %3276 = vst.msk [vmem:[#allocation5 + $0x80] sm:$0xff] %vm487, %v3258
        %3277 = vst.msk [vmem:[#allocation5 + $0x98] sm:$0xff] %vm487, %v3260
        %3278 = vst.msk [vmem:[#allocation5 + $0xb0] sm:$0xff] %vm487, %v3262
        %v3279 = vld [vmem:[%s1922 + $0x1] sm:$0xff]
        %v3280 = vld [vmem:[%s1922 + $0x11] sm:$0xff]
        %v3281 = vld [vmem:[%s1922 + $0x21] sm:$0xff]
        %v3282 = vld [vmem:[%s1922 + $0x31] sm:$0xff]
        %v3283 = vld [vmem:[%s1922 + $0x41] sm:$0xff]
        %v3284 = vld [vmem:[%s1922 + $0x51] sm:$0xff]
        %v3285 = vld [vmem:[%s1922 + $0x61] sm:$0xff]
        %v3286 = vld [vmem:[%s1922 + $0x71] sm:$0xff]
        %3295 = vrot.lane.b32.xlu0 %v3279, 96
        %v3296 = vpop.permute.xlu0 %3295
        %3297 = vrot.lane.b32.xlu0 %v3280, 96
        %v3298 = vpop.permute.xlu0 %3297
        %3299 = vrot.lane.b32.xlu0 %v3281, 96
        %v3300 = vpop.permute.xlu0 %3299
        %3301 = vrot.lane.b32.xlu0 %v3282, 96
        %v3302 = vpop.permute.xlu0 %3301
        %3303 = vrot.lane.b32.xlu0 %v3283, 96
        %v3304 = vpop.permute.xlu0 %3303
        %3305 = vrot.lane.b32.xlu0 %v3284, 96
        %v3306 = vpop.permute.xlu0 %3305
        %3307 = vrot.lane.b32.xlu0 %v3285, 96
        %v3308 = vpop.permute.xlu0 %3307
        %3309 = vrot.lane.b32.xlu0 %v3286, 96
        %v3310 = vpop.permute.xlu0 %3309
        %3319 = vst.msk [vmem:[#allocation5 + $0x8] sm:$0xff] %vm536, %v3296
        %3320 = vst.msk [vmem:[#allocation5 + $0x20] sm:$0xff] %vm536, %v3298
        %3321 = vst.msk [vmem:[#allocation5 + $0x38] sm:$0xff] %vm536, %v3300
        %3322 = vst.msk [vmem:[#allocation5 + $0x50] sm:$0xff] %vm536, %v3302
        %3323 = vst.msk [vmem:[#allocation5 + $0x68] sm:$0xff] %vm536, %v3304
        %3324 = vst.msk [vmem:[#allocation5 + $0x80] sm:$0xff] %vm536, %v3306
        %3325 = vst.msk [vmem:[#allocation5 + $0x98] sm:$0xff] %vm536, %v3308
        %3326 = vst.msk [vmem:[#allocation5 + $0xb0] sm:$0xff] %vm536, %v3310
        %v3327 = vld [vmem:[%s1922 + $0x2] sm:$0xff]
        %v3328 = vld [vmem:[%s1922 + $0x12] sm:$0xff]
        %v3329 = vld [vmem:[%s1922 + $0x22] sm:$0xff]
        %v3330 = vld [vmem:[%s1922 + $0x32] sm:$0xff]
        %v3331 = vld [vmem:[%s1922 + $0x42] sm:$0xff]
        %v3332 = vld [vmem:[%s1922 + $0x52] sm:$0xff]
        %v3333 = vld [vmem:[%s1922 + $0x62] sm:$0xff]
        %v3334 = vld [vmem:[%s1922 + $0x72] sm:$0xff]
        %3335 = vst.msk [vmem:[#allocation5 + $0x10] sm:$0xff] %vm250, %v3327
        %3336 = vst.msk [vmem:[#allocation5 + $0x28] sm:$0xff] %vm250, %v3328
        %3337 = vst.msk [vmem:[#allocation5 + $0x40] sm:$0xff] %vm250, %v3329
        %3338 = vst.msk [vmem:[#allocation5 + $0x58] sm:$0xff] %vm250, %v3330
        %3339 = vst.msk [vmem:[#allocation5 + $0x70] sm:$0xff] %vm250, %v3331
        %3340 = vst.msk [vmem:[#allocation5 + $0x88] sm:$0xff] %vm250, %v3332
        %3341 = vst.msk [vmem:[#allocation5 + $0xa0] sm:$0xff] %vm250, %v3333
        %3342 = vst.msk [vmem:[#allocation5 + $0xb8] sm:$0xff] %vm250, %v3334
        %v3343 = vld [vmem:[#allocation5] sm:$0xff]
        %v3344 = vld [vmem:[#allocation5 + $0x8] sm:$0xff]
        %v3345 = vld [vmem:[#allocation5 + $0x10] sm:$0xff]
        %v3346 = vld [vmem:[#allocation5 + $0x18] sm:$0xff]
        %v3347 = vld [vmem:[#allocation5 + $0x20] sm:$0xff]
        %v3348 = vld [vmem:[#allocation5 + $0x28] sm:$0xff]
        %v3349 = vld [vmem:[#allocation5 + $0x30] sm:$0xff]
        %v3350 = vld [vmem:[#allocation5 + $0x38] sm:$0xff]
        %v3351 = vld [vmem:[#allocation5 + $0x40] sm:$0xff]
        %v3352 = vld [vmem:[#allocation5 + $0x48] sm:$0xff]
        %v3353 = vld [vmem:[#allocation5 + $0x50] sm:$0xff]
        %v3354 = vld [vmem:[#allocation5 + $0x58] sm:$0xff]
        %v3355 = vld [vmem:[#allocation5 + $0x60] sm:$0xff]
        %v3356 = vld [vmem:[#allocation5 + $0x68] sm:$0xff]
        %v3357 = vld [vmem:[#allocation5 + $0x70] sm:$0xff]
        %v3358 = vld [vmem:[#allocation5 + $0x78] sm:$0xff]
        %v3359 = vld [vmem:[#allocation5 + $0x80] sm:$0xff]
        %v3360 = vld [vmem:[#allocation5 + $0x88] sm:$0xff]
        %v3361 = vld [vmem:[#allocation5 + $0x90] sm:$0xff]
        %v3362 = vld [vmem:[#allocation5 + $0x98] sm:$0xff]
        %v3363 = vld [vmem:[#allocation5 + $0xa0] sm:$0xff]
        %v3364 = vld [vmem:[#allocation5 + $0xa8] sm:$0xff]
        %v3365 = vld [vmem:[#allocation5 + $0xb0] sm:$0xff]
        %v3366 = vld [vmem:[#allocation5 + $0xb8] sm:$0xff]
        %v3368 = vlaneseq
        %v3369 = vshrl.u32 %v3368, 7
        %v3370 = vsub.s32 0, %v3369
        %v3371 = vrot.slane %v3006, %v3370
        %v3374 = vsel %vm250, %v3345, 0
        %v3377 = vsel %vm250, %v3348, 0
        %v3380 = vsel %vm250, %v3351, 0
        %v3383 = vsel %vm250, %v3354, 0
        %v3386 = vsel %vm250, %v3357, 0
        %v3389 = vsel %vm250, %v3360, 0
        %v3392 = vsel %vm250, %v3363, 0
        %v3395 = vsel %vm250, %v3366, 0
        %3397 = vmatprep.subr.mxu0 0.0
        %3398 = vmatpush1.msra.mxu0 %v2970
        %3399 = vmatprep.subr.mxu0 0.0
        %3400 = vmatpush1.msra.mxu0 %v2971
        %3401 = vmatprep.subr.mxu0 0.0
        %3402 = vmatpush1.msra.mxu0 %v2972
        %3403 = vmatprep.subr.mxu0 0.0
        %3404 = vmatpush1.msra.mxu0 %v2973
        %3405 = vmatprep.subr.mxu0 0.0
        %3406 = vmatpush1.msra.mxu0 %v2974
        %3407 = vmatprep.subr.mxu0 0.0
        %3408 = vmatpush1.msra.mxu0 %v2975
        %3409 = vmatprep.subr.mxu0 0.0
        %3410 = vmatpush1.msra.mxu0 %v2976
        %3411 = vmatprep.subr.mxu0 0.0
        %3412 = vmatpush1.msra.mxu0 %v2977
        %3413 = vmatprep.subr.mxu0 0.0
        %3414 = vmatpush1.msra.mxu0 %v2978
        %3415 = vmatprep.subr.mxu0 0.0
        %3416 = vmatpush1.msra.mxu0 %v2979
        %3417 = vmatprep.subr.mxu0 0.0
        %3418 = vmatpush1.msra.mxu0 %v2980
        %3419 = vmatprep.subr.mxu0 0.0
        %3420 = vmatpush1.msra.mxu0 %v2981
        %3421 = vmatprep.subr.mxu0 0.0
        %3422 = vmatpush1.msra.mxu0 %v2982
        %3423 = vmatprep.subr.mxu0 0.0
        %3424 = vmatpush1.msra.mxu0 %v2983
        %3425 = vmatprep.subr.mxu0 0.0
        %3426 = vmatpush1.msra.mxu0 %v2984
        %3427 = vmatprep.subr.mxu0 0.0
        %3428 = vmatpush1.msra.mxu0 %v2985
        %3429 = vmatprep.subr.mxu0 0.0
        %3430 = vmatpush1.msra.mxu0 %v2986
        %3431 = vmatprep.subr.mxu0 0.0
        %3432 = vmatpush1.msra.mxu0 %v2987
        %3433 = vmatprep.subr.mxu0 0.0
        %3434 = vmatpush1.msra.mxu0 %v2988
        %3435 = vmatprep.subr.mxu0 0.0
        %3436 = vmatpush1.msra.mxu0 %v2989
        %3437 = vmatprep.subr.mxu0 0.0
        %3438 = vmatpush1.msra.mxu0 %v2990
        %3439 = vmatprep.subr.mxu0 0.0
        %3440 = vmatpush1.msra.mxu0 %v2991
        %3441 = vmatprep.subr.mxu0 0.0
        %3442 = vmatpush1.msra.mxu0 %v2992
        %3443 = vmatprep.subr.mxu0 0.0
        %3444 = vmatpush1.msra.mxu0 %v2993
        %3445 = vmatprep.subr.mxu0 0.0
        %3446 = vmatpush1.msra.mxu0 %v2994
        %3447 = vmatprep.subr.mxu0 0.0
        %3448 = vmatpush1.msra.mxu0 %v2995
        %3449 = vmatprep.subr.mxu0 0.0
        %3450 = vmatpush1.msra.mxu0 %v2996
        %3451 = vmatprep.subr.mxu0 0.0
        %3452 = vmatpush1.msra.mxu0 %v2997
        %3453 = vmatprep.subr.mxu0 0.0
        %3454 = vmatpush1.msra.mxu0 %v2998
        %3455 = vmatprep.subr.mxu0 0.0
        %3456 = vmatpush1.msra.mxu0 %v2999
        %3457 = vmatprep.subr.mxu0 0.0
        %3458 = vmatpush1.msra.mxu0 %v3000
        %3459 = vmatprep.subr.mxu0 0.0
        %3460 = vmatpush1.msra.mxu0 %v3001
        %3461 = vmatprep.mubr.f32.mxu0 %v3344
        %3462 = vmatmul.mubr.f32.gmra.mrb[0].mxu0 %v3343
        %v3463 = vpop.f32.mrb[0].mxu0
        %v3464 = vadd.f32 %v3371, %v3463
        %v3465 = vpop.f32.mrb[0].mxu0
        %3466 = vmatprep.mubr.f32.mxu0 %v3347
        %3467 = vmatmul.mubr.f32.gmra.mrb[0].mxu0 %v3346
        %v3468 = vpop.f32.mrb[0].mxu0
        %v3469 = vadd.f32 %v3371, %v3468
        %v3470 = vpop.f32.mrb[0].mxu0
        %3471 = vmatprep.mubr.f32.mxu0 %v3350
        %3472 = vmatmul.mubr.f32.gmra.mrb[0].mxu0 %v3349
        %v3473 = vpop.f32.mrb[0].mxu0
        %v3474 = vadd.f32 %v3371, %v3473
        %v3475 = vpop.f32.mrb[0].mxu0
        %3476 = vmatprep.mubr.f32.mxu0 %v3353
        %3477 = vmatmul.mubr.f32.gmra.mrb[0].mxu0 %v3352
        %v3478 = vpop.f32.mrb[0].mxu0
        %v3479 = vadd.f32 %v3371, %v3478
        %v3480 = vpop.f32.mrb[0].mxu0
        %3481 = vmatprep.mubr.f32.mxu0 %v3356
        %3482 = vmatmul.mubr.f32.gmra.mrb[0].mxu0 %v3355
        %v3483 = vpop.f32.mrb[0].mxu0
        %v3484 = vadd.f32 %v3371, %v3483
        %v3485 = vpop.f32.mrb[0].mxu0
        %3486 = vmatprep.mubr.f32.mxu0 %v3359
        %3487 = vmatmul.mubr.f32.gmra.mrb[0].mxu0 %v3358
        %v3488 = vpop.f32.mrb[0].mxu0
        %v3489 = vadd.f32 %v3371, %v3488
        %v3490 = vpop.f32.mrb[0].mxu0
        %3491 = vmatprep.mubr.f32.mxu0 %v3362
        %3492 = vmatmul.mubr.f32.gmra.mrb[0].mxu0 %v3361
        %v3493 = vpop.f32.mrb[0].mxu0
        %v3494 = vadd.f32 %v3371, %v3493
        %v3495 = vpop.f32.mrb[0].mxu0
        %3496 = vmatprep.mubr.f32.mxu0 %v3365
        %3497 = vmatmul.mubr.f32.gmra.mrb[0].mxu0 %v3364
        %v3498 = vpop.f32.mrb[0].mxu0
        %v3499 = vadd.f32 %v3371, %v3498
        %v3500 = vpop.f32.mrb[0].mxu0
        %3501 = vdwg.mxu0
        %3502 = vmatprep.subr.mxu0 0.0
        %3503 = vmatpush1.msra.mxu0 %v3002
        %3504 = vmatprep.subr.mxu0 0.0
        %3505 = vmatpush1.msra.mxu0 %v3003
        %3506 = vmatprep.subr.mxu0 0.0
        %3507 = vmatpush1.msra.mxu0 %v3004
        %3508 = vmatprep.subr.mxu0 0.0
        %3509 = vmatpush1.msra.mxu0 %v3005
        %3510 = vmatprep.subr.mxu0 0.0
        %3511 = vmatpush1.msra.mxu0 0.0
        %3512 = vmatprep.subr.mxu0 0.0
        %3513 = vmatpush1.msra.mxu0 0.0
        %3514 = vmatprep.subr.mxu0 0.0
        %3515 = vmatpush1.msra.mxu0 0.0
        %3516 = vmatprep.subr.mxu0 0.0
        %3517 = vmatpush1.msra.mxu0 0.0
        %3518 = vmatprep.subr.mxu0 0.0
        %3519 = vmatpush1.msra.mxu0 0.0
        %3520 = vmatprep.subr.mxu0 0.0
        %3521 = vmatpush1.msra.mxu0 0.0
        %3522 = vmatprep.subr.mxu0 0.0
        %3523 = vmatpush1.msra.mxu0 0.0
        %3524 = vmatprep.subr.mxu0 0.0
        %3525 = vmatpush1.msra.mxu0 0.0
        %3526 = vmatprep.subr.mxu0 0.0
        %3527 = vmatpush1.msra.mxu0 0.0
        %3528 = vmatprep.subr.mxu0 0.0
        %3529 = vmatpush1.msra.mxu0 0.0
        %3530 = vmatprep.subr.mxu0 0.0
        %3531 = vmatpush1.msra.mxu0 0.0
        %3532 = vmatprep.subr.mxu0 0.0
        %3533 = vmatpush1.msra.mxu0 0.0
        %3534 = vmatprep.subr.mxu0 0.0
        %3535 = vmatpush1.msra.mxu0 0.0
        %3536 = vmatprep.subr.mxu0 0.0
        %3537 = vmatpush1.msra.mxu0 0.0
        %3538 = vmatprep.subr.mxu0 0.0
        %3539 = vmatpush1.msra.mxu0 0.0
        %3540 = vmatprep.subr.mxu0 0.0
        %3541 = vmatpush1.msra.mxu0 0.0
        %3542 = vmatprep.subr.mxu0 0.0
        %3543 = vmatpush1.msra.mxu0 0.0
        %3544 = vmatprep.subr.mxu0 0.0
        %3545 = vmatpush1.msra.mxu0 0.0
        %3546 = vmatprep.subr.mxu0 0.0
        %3547 = vmatpush1.msra.mxu0 0.0
        %3548 = vmatprep.subr.mxu0 0.0
        %3549 = vmatpush1.msra.mxu0 0.0
        %3550 = vmatprep.subr.mxu0 0.0
        %3551 = vmatpush1.msra.mxu0 0.0
        %3552 = vmatprep.subr.mxu0 0.0
        %3553 = vmatpush1.msra.mxu0 0.0
        %3554 = vmatprep.subr.mxu0 0.0
        %3555 = vmatpush1.msra.mxu0 0.0
        %3556 = vmatprep.subr.mxu0 0.0
        %3557 = vmatpush1.msra.mxu0 0.0
        %3558 = vmatprep.subr.mxu0 0.0
        %3559 = vmatpush1.msra.mxu0 0.0
        %3560 = vmatprep.subr.mxu0 0.0
        %3561 = vmatpush1.msra.mxu0 0.0
        %3562 = vmatprep.subr.mxu0 0.0
        %3563 = vmatpush1.msra.mxu0 0.0
        %3564 = vmatprep.subr.mxu0 0.0
        %3565 = vmatpush1.msra.mxu0 0.0
        %3566 = vmatprep.mubr.f32.mxu0 0.0
        %3567 = vmatmul.mubr.f32.gmra.mrb[0].mxu0 %v3374
        %v3568 = vpop.f32.mrb[0].mxu0
        %v3569 = vadd.f32 %v3464, %v3568
        %v3570 = vpop.f32.mrb[0].mxu0
        %3571 = vmatprep.mubr.f32.mxu0 0.0
        %3572 = vmatmul.mubr.f32.gmra.mrb[0].mxu0 %v3377
        %v3573 = vpop.f32.mrb[0].mxu0
        %v3574 = vadd.f32 %v3469, %v3573
        %v3575 = vpop.f32.mrb[0].mxu0
        %3576 = vmatprep.mubr.f32.mxu0 0.0
        %3577 = vmatmul.mubr.f32.gmra.mrb[0].mxu0 %v3380
        %v3578 = vpop.f32.mrb[0].mxu0
        %v3579 = vadd.f32 %v3474, %v3578
        %v3580 = vpop.f32.mrb[0].mxu0
        %3581 = vmatprep.mubr.f32.mxu0 0.0
        %3582 = vmatmul.mubr.f32.gmra.mrb[0].mxu0 %v3383
        %v3583 = vpop.f32.mrb[0].mxu0
        %v3584 = vadd.f32 %v3479, %v3583
        %v3585 = vpop.f32.mrb[0].mxu0
        %3586 = vmatprep.mubr.f32.mxu0 0.0
        %3587 = vmatmul.mubr.f32.gmra.mrb[0].mxu0 %v3386
        %v3588 = vpop.f32.mrb[0].mxu0
        %v3589 = vadd.f32 %v3484, %v3588
        %v3590 = vpop.f32.mrb[0].mxu0
        %3591 = vmatprep.mubr.f32.mxu0 0.0
        %3592 = vmatmul.mubr.f32.gmra.mrb[0].mxu0 %v3389
        %v3593 = vpop.f32.mrb[0].mxu0
        %v3594 = vadd.f32 %v3489, %v3593
        %v3595 = vpop.f32.mrb[0].mxu0
        %3596 = vmatprep.mubr.f32.mxu0 0.0
        %3597 = vmatmul.mubr.f32.gmra.mrb[0].mxu0 %v3392
        %v3598 = vpop.f32.mrb[0].mxu0
        %v3599 = vadd.f32 %v3494, %v3598
        %v3600 = vpop.f32.mrb[0].mxu0
        %3601 = vmatprep.mubr.f32.mxu0 0.0
        %3602 = vmatmul.mubr.f32.gmra.mrb[0].mxu0 %v3395
        %v3603 = vpop.f32.mrb[0].mxu0
        %v3604 = vadd.f32 %v3499, %v3603
        %v3605 = vpop.f32.mrb[0].mxu0
        %3606 = vdwg.mxu0
        %3607 = vst [vmem:[%s244] sm:$0xff] %v3569
        %3608 = vst [vmem:[%s244 + $0x8] sm:$0xff] %v3574
        %3609 = vst [vmem:[%s244 + $0x10] sm:$0xff] %v3579
        %3610 = vst [vmem:[%s244 + $0x18] sm:$0xff] %v3584
        %3611 = vst [vmem:[%s244 + $0x20] sm:$0xff] %v3589
        %3612 = vst [vmem:[%s244 + $0x28] sm:$0xff] %v3594
        %3613 = vst [vmem:[%s244 + $0x30] sm:$0xff] %v3599
        %3614 = vst [vmem:[%s244 + $0x38] sm:$0xff] %v3604
        %s3615 = sand.u32 %s159, 1
        %s3616 = scalar_lea.sflag [#allocation7], %s3615
        %s3617 = sand.u32 %s159, 1
        %s3618 = smul.addr %s3617, 64
        %s3619 = scalar_lea.vmem [#allocation6], %s3618
        // Predicated region
        $region45: #{tpu_custom_call.1} parent=43 // pred_check
          %p3620 = pneg %p169
        $region46: #{tpu_custom_call.1} parent=43 // pred_check_branch
          %3622 = sbr.rel (%p3620) target = $region48
        $region47: #{tpu_custom_call.1} parent=43 // pred_region
          %s3624 = ssub.s32 1024, 1024
          %3625 = vsyncadd %s3616, %s3624
          %s3626 = smul.addr %s20, 8
          %s3627 = smul.addr %s3626, 128
          %s3628 = scalar_lea.hbm %s6, %s3627
          %s3629 = sshll.u32 %s3619, 4
          %s3630 = int_to_ptr.vmem [resolvable:$true] %s3629
          %3635 = dma.vmem_to_hbm [thread:$0]  %s3630, 1024, %s3628, %s3616, 128, 128, 8
        $region48: #{tpu_custom_call.1} parent=43 // pred_fallthru
          _
      $region44: #{tpu_custom_call.1} parent=5 // pred_fallthru
        _
      %p3636 = scmp.le.s32.totalorder 2, %s15
      // Predicated region
      $region49: #{tpu_custom_call.1} parent=5 // pred_check
        %p3637 = pneg %p3636
      $region50: #{tpu_custom_call.1} parent=5 // pred_check_branch
        %3639 = sbr.rel (%p3637) target = $region52
      $region51: #{tpu_custom_call.1} parent=5 // pred_region
        %s3640 = ssub.s32 %s15, 2
        // Predicated region
        $region53: #{tpu_custom_call.1} parent=51 // pred_check
          %p3641 = pneg %p175
        $region54: #{tpu_custom_call.1} parent=51 // pred_check_branch
          %3643 = sbr.rel (%p3641) target = $region56
        $region55: #{tpu_custom_call.1} parent=51 // pred_region
          %s3644 = sand.u32 %s160, 1
          %s3645 = scalar_lea.sflag [#allocation7], %s3644
          %s3646 = sand.u32 %s160, 1
          %s3647 = smul.addr %s3646, 64
          %s3648 = scalar_lea.vmem [#allocation6], %s3647
          %3649 = dma.done %s3645, 1024
        $region56: #{tpu_custom_call.1} parent=51 // pred_fallthru
          _
      $region52: #{tpu_custom_call.1} parent=5 // pred_fallthru
        _
    $region6: #{tpu_custom_call.1} parent=1 // loop_footer
      %s19 = sadd.s32 1, %s15
    $region7: #{tpu_custom_call.1} parent=1 // loop_footer_branch
      %14 = sbr.rel target = $region3
    $region8: #{tpu_custom_call.1} parent=1 // loop_exit
      _
    %3650 = vsyncpa [#allocation7], 1
    %s3651 = scalar_lea.sflag [#allocation7], 1
    %3652 = vsyncpa %s3651, 1

</llo_original>
